<compile_context>
chip_gen: v6e
topology: v6e:2x2x1
jax: 0.10.0
libtpu: 0.0.40
codegen_flags: <defaults>
</compile_context>

<pallas_src>
import jax
import jax.numpy as jnp
from jax.experimental import pallas as pl
from jax.experimental.pallas import tpu as pltpu


# ----------------------------- fused Pallas kernel (hot path) -----------------------------

def _fused_cnn_kernel(xw_ref, w1_ref, b1_ref, w2_ref, b2_ref, w3_ref, b3_ref,
                      o_ref, act2_ref):
    """Full CNN_preprocess forward for one batch block of bn samples.

    xw_ref  : [9*bn, 147]  7x7 input windows; rows (p=oh*3+ow, n), lanes (u, v, cin)
                           with u, v in 0..6 the offsets inside the p-th 7x7 window of the
                           zero-padded 17x17 input.
    w1_ref  : [147, 800]   tap-expanded conv1 weight: column (t=5*i+j, cout) is W1 scattered
                           to rows (u=i+dy, v=j+dx, cin), zero elsewhere.
    b1_ref  : [1, 800]     conv1 bias tiled per tap.
    w2_ref  : [800, 128]   conv2 weight, rows (t=5*i+j, cin).
    b2_ref  : [1, 128]
    w3_ref  : [9, 128, 64] conv3 weight per tap p=kh*3+kw.
    b3_ref  : [1, 64]
    o_ref   : [bn, 64]     final activations (final spatial is 1x1).
    act2_ref: VMEM scratch [9*bn, 128] conv2 activations, rows (p, n) -- stay on chip.
    """
    bn = o_ref.shape[0]
    f32 = jnp.float32

    # ---- Conv1: 3x3, stride 1, pad 1 (+ bias, ReLU) -- ONE deep GEMM, K=147, N=800.
    # Output rows (p, n), columns (conv2 tap t, cout): exactly the im2col layout conv2 needs,
    # so no in-kernel patch assembly / relayout is required.
    a1 = jnp.dot(xw_ref[...], w1_ref[...], preferred_element_type=f32)
    a1 = jnp.maximum(a1 + b1_ref[...], 0.0)                       # [9*bn, 800]

    # ---- Conv2: 5x5, stride 5 (+ bias, ReLU) -- ONE GEMM, K=800.
    a2 = jnp.dot(a1, w2_ref[...], preferred_element_type=f32)
    act2_ref[...] = jnp.maximum(a2 + b2_ref[...], 0.0)            # [9*bn, 128]

    # ---- Conv3: 3x3, stride 3 on the 3x3 map -> 1x1 (+ bias, ReLU) -- 9 tap GEMMs over
    #      contiguous row groups of act2.
    acc = jnp.dot(act2_ref[pl.ds(0, bn), :], w3_ref[0], preferred_element_type=f32)
    for p in range(1, 9):
        acc = acc + jnp.dot(act2_ref[pl.ds(p * bn, bn), :], w3_ref[p],
                            preferred_element_type=f32)
    o_ref[...] = jnp.maximum(acc + b3_ref[...], 0.0)              # [bn, 64]


# ----------------------------- host-side glue -----------------------------

def _pick_block(n, max_bn=128):
    """Pick (bn, g, n_pad): batch block, grid steps, padded batch.

    Prefers the largest multiple-of-8 block <= 128 while keeping >= 2 grid steps whenever
    the batch allows (so the window DMA pipelines against compute).  Batches > 128 with no
    suitable divisor are zero-padded to a multiple of 128.
    """
    if n <= max_bn:
        for bn in range(min(max_bn, n // 2), 7, -1):
            if n % bn == 0 and bn % 8 == 0:
                return bn, n // bn, n
        return n, 1, n                       # single block; block dims == full dims
    for bn in range(max_bn, 7, -1):
        if n % bn == 0 and bn % 8 == 0:
            return bn, n // bn, n
    n_pad = -(-n // max_bn) * max_bn
    return max_bn, n_pad // max_bn, n_pad


def _build_conv1_windows(x_nchw, bn):
    """Nine 7x7 windows of the padded input, rows (block, p=oh*3+ow, n), lanes (u, v, c).

    Only ~2x the raw input bytes (windows overlap by 2 rows/cols), vs the 9x full im2col.
    """
    n = x_nchw.shape[0]
    g = n // bn
    x = jnp.transpose(x_nchw, (0, 2, 3, 1)).astype(jnp.float32)        # NHWC [N,15,15,3]
    x = jnp.pad(x, ((0, 0), (1, 1), (1, 1), (0, 0)))                   # [N,17,17,3]
    rows = []
    for oh in range(3):
        cols = [x[:, 5 * oh:5 * oh + 7, 5 * ow:5 * ow + 7, :] for ow in range(3)]
        rows.append(jnp.stack(cols, axis=1))                           # [N,3,7,7,3]
    win = jnp.stack(rows, axis=1)                                      # [N,3(oh),3(ow),7,7,3]
    win = win.reshape(g, bn, 9, 147).transpose(0, 2, 1, 3)             # (g, p, n_local, uvc)
    return win.reshape(g * 9 * bn, 147)


def init_params(key):
    """PyTorch-layout (OIHW) parameters."""
    k1, k2, k3, k4, k5, k6 = jax.random.split(key, 6)
    scale = 0.05
    return {
        "w1": scale * jax.random.normal(k1, (32, 3, 3, 3), jnp.float32),
        "b1": scale * jax.random.normal(k2, (32,), jnp.float32),
        "w2": scale * jax.random.normal(k3, (128, 32, 5, 5), jnp.float32),
        "b2": scale * jax.random.normal(k4, (128,), jnp.float32),
        "w3": scale * jax.random.normal(k5, (64, 128, 3, 3), jnp.float32),
        "b3": scale * jax.random.normal(k6, (64,), jnp.float32),
    }


def prepare_params(params):
    """One-time layout conversion (hoisted out of the forward pass)."""
    w1 = params["w1"].astype(jnp.float32)                # [32, 3, 3, 3]  OIHW
    w2 = params["w2"].astype(jnp.float32)                # [128, 32, 5, 5]
    w3 = params["w3"].astype(jnp.float32)                # [64, 128, 3, 3]

    # Tap-expanded conv1 weight: W1E[21*u+3*v+c, 32*(5*i+j)+cout] = w1[cout, c, u-i, v-j]
    # when 0 <= u-i < 3 and 0 <= v-j < 3, else 0.  Folds the per-tap patch selection into
    # the GEMM so the kernel never assembles patches.
    w1_t = jnp.transpose(w1, (2, 3, 1, 0))               # (dy, dx, cin, cout)
    w1e = jnp.zeros((7, 7, 3, 25, 32), jnp.float32)      # (u, v, cin, tap, cout)
    for i in range(5):
        for j in range(5):
            w1e = w1e.at[i:i + 3, j:j + 3, :, 5 * i + j, :].set(w1_t)
    w1e = w1e.reshape(147, 800)
    b1e = jnp.tile(params["b1"].astype(jnp.float32).reshape(1, 32), (1, 25))   # [1, 800]

    w2m = jnp.transpose(w2, (2, 3, 1, 0)).reshape(800, 128)   # rows (i, j, cin)
    w3t = jnp.transpose(w3, (2, 3, 1, 0)).reshape(9, 128, 64) # [tap p, cin, cout]
    return {
        "w1e": w1e, "b1e": b1e,
        "w2": w2m, "b2": params["b2"].reshape(1, 128).astype(jnp.float32),
        "w3": w3t, "b3": params["b3"].reshape(1, 64).astype(jnp.float32),
    }


@jax.jit
def cnn_preprocess_forward(prepared, x_nchw):
    """x_nchw: [N, 3, 15, 15] -> flattened [N*64] (matches torch.flatten of [N,64,1,1])."""
    n = x_nchw.shape[0]
    bn, g, n_pad = _pick_block(n)
    x = x_nchw.astype(jnp.float32)
    if n_pad != n:
        x = jnp.pad(x, ((0, n_pad - n), (0, 0), (0, 0), (0, 0)))
    xw = _build_conv1_windows(x, bn)                     # [g*9*bn, 147]

    out = pl.pallas_call(
        _fused_cnn_kernel,
        out_shape=jax.ShapeDtypeStruct((n_pad, 64), jnp.float32),
        grid_spec=pltpu.PrefetchScalarGridSpec(
            num_scalar_prefetch=0,
            grid=(g,),
            in_specs=[
                pl.BlockSpec((9 * bn, 147), lambda b: (b, 0)),    # input windows (per block)
                pl.BlockSpec((147, 800), lambda b: (0, 0)),       # conv1 expanded weight
                pl.BlockSpec((1, 800), lambda b: (0, 0)),
                pl.BlockSpec((800, 128), lambda b: (0, 0)),       # conv2 weight
                pl.BlockSpec((1, 128), lambda b: (0, 0)),
                pl.BlockSpec((9, 128, 64), lambda b: (0, 0, 0)),  # conv3 weight (per tap)
                pl.BlockSpec((1, 64), lambda b: (0, 0)),
            ],
            out_specs=pl.BlockSpec((bn, 64), lambda b: (b, 0)),
            scratch_shapes=[
                pltpu.VMEM((9 * bn, 128), jnp.float32),           # conv2 activations (on-chip)
            ],
        ),
        compiler_params=pltpu.CompilerParams(
            dimension_semantics=("parallel",),          # batch blocks split over TCs (v7x)
            vmem_limit_bytes=48 * 1024 * 1024,          # fits v7x 64 MiB, ample on v5e/v6e
        ),
    )(xw, prepared["w1e"], prepared["b1e"], prepared["w2"], prepared["b2"],
      prepared["w3"], prepared["b3"])
    return out[:n].reshape(-1)


# ----------------------------- plain-JAX reference for sanity -----------------------------

def _ref_forward(params, x_nchw):
    def conv(x, w, b, stride, pad):
        y = jax.lax.conv_general_dilated(
            x, w, window_strides=(stride, stride),
            padding=((pad, pad), (pad, pad)),
            dimension_numbers=("NCHW", "OIHW", "NCHW"))
        return jax.nn.relu(y + b.reshape(1, -1, 1, 1))
    x = conv(x_nchw, params["w1"], params["b1"], 1, 1)
    x = conv(x, params["w2"], params["b2"], 5, 0)
    x = conv(x, params["w3"], params["b3"], 3, 0)
    return x.reshape(-1)


if __name__ == "__main__":
    key = jax.random.PRNGKey(0)
    kp, kx = jax.random.split(key)
    params = init_params(kp)
    prepared = prepare_params(params)
    # Input: width=height=15, channel=3 so that get_state_dim()==64 (final spatial 1x1).
    # Batch 32 -> bn=16, 2 grid steps (exercises the pipelined multi-block path).
    x = jax.random.normal(kx, (32, 3, 15, 15), jnp.float32)

    out = jax.block_until_ready(cnn_preprocess_forward(prepared, x))
    ref = _ref_forward(params, x)

    assert out.shape == (32 * 64,), out.shape
    err = float(jnp.max(jnp.abs(out - ref)))
    assert jnp.allclose(out, ref, atol=5e-4, rtol=5e-4), err

    print("KERNEL_OK")
</pallas_src>

<mosaic_0001>
module attributes {stable_mosaic.version = 11 : i64} {
  func.func @_fused_cnn_kernel(%arg0: i32, %arg1: memref<144x147xf32, #tpu.memory_space<vmem>>, %arg2: memref<147x800xf32, #tpu.memory_space<vmem>>, %arg3: memref<1x800xf32, #tpu.memory_space<vmem>>, %arg4: memref<800x128xf32, #tpu.memory_space<vmem>>, %arg5: memref<1x128xf32, #tpu.memory_space<vmem>>, %arg6: memref<9x128x64xf32, #tpu.memory_space<vmem>>, %arg7: memref<1x64xf32, #tpu.memory_space<vmem>>, %arg8: memref<16x64xf32, #tpu.memory_space<vmem>>, %arg9: memref<144x128xf32, #tpu.memory_space<vmem>>) attributes {dimension_semantics = [#tpu.dimension_semantics<parallel>], iteration_bounds = array<i64: 2>, scalar_prefetch = 0 : i64, scratch_operands = 1 : i64, tpu.core_type = #tpu.core_type<tc>, window_params = [{transform_indices = @transform_0, window_bounds = array<i64: 144, 147>}, {pipeline_mode = #tpu.pipeline_mode<synchronous>, transform_indices = @transform_1, window_bounds = array<i64: 147, 800>}, {pipeline_mode = #tpu.pipeline_mode<synchronous>, transform_indices = @transform_2, window_bounds = array<i64: 1, 800>}, {pipeline_mode = #tpu.pipeline_mode<synchronous>, transform_indices = @transform_3, window_bounds = array<i64: 800, 128>}, {pipeline_mode = #tpu.pipeline_mode<synchronous>, transform_indices = @transform_4, window_bounds = array<i64: 1, 128>}, {pipeline_mode = #tpu.pipeline_mode<synchronous>, transform_indices = @transform_5, window_bounds = array<i64: 9, 128, 64>}, {pipeline_mode = #tpu.pipeline_mode<synchronous>, transform_indices = @transform_6, window_bounds = array<i64: 1, 64>}, {transform_indices = @transform_7, window_bounds = array<i64: 16, 64>}]} {
    %c0 = arith.constant 0 : index
    %c0_0 = arith.constant 0 : index
    %0 = vector.load %arg1[%c0, %c0_0] : memref<144x147xf32, #tpu.memory_space<vmem>>, vector<144x147xf32>
    %c0_1 = arith.constant 0 : index
    %c0_2 = arith.constant 0 : index
    %1 = vector.load %arg2[%c0_1, %c0_2] : memref<147x800xf32, #tpu.memory_space<vmem>>, vector<147x800xf32>
    %cst = arith.constant dense<0.000000e+00> : vector<144x800xf32>
    %2 = tpu.matmul %0, %1, %cst {dimension_numbers = #tpu.dot_dimension_numbers<[1], [0], [0], [1], [0, 0, 1, 1], [], []>} : vector<144x147xf32>, vector<147x800xf32>, vector<144x800xf32> -> vector<144x800xf32>
    %c0_3 = arith.constant 0 : index
    %c0_4 = arith.constant 0 : index
    %3 = vector.load %arg3[%c0_3, %c0_4] : memref<1x800xf32, #tpu.memory_space<vmem>>, vector<1x800xf32>
    %4 = vector.broadcast %3 : vector<1x800xf32> to vector<144x800xf32>
    %5 = arith.addf %2, %4 : vector<144x800xf32>
    %cst_5 = arith.constant 0.000000e+00 : f32
    %6 = vector.broadcast %cst_5 : f32 to vector<144x800xf32>
    %7 = arith.maximumf %5, %6 : vector<144x800xf32>
    %c0_6 = arith.constant 0 : index
    %c0_7 = arith.constant 0 : index
    %8 = vector.load %arg4[%c0_6, %c0_7] : memref<800x128xf32, #tpu.memory_space<vmem>>, vector<800x128xf32>
    %cst_8 = arith.constant dense<0.000000e+00> : vector<144x128xf32>
    %9 = tpu.matmul %7, %8, %cst_8 {dimension_numbers = #tpu.dot_dimension_numbers<[1], [0], [0], [1], [0, 0, 1, 1], [], []>} : vector<144x800xf32>, vector<800x128xf32>, vector<144x128xf32> -> vector<144x128xf32>
    %c0_9 = arith.constant 0 : index
    %c0_10 = arith.constant 0 : index
    %10 = vector.load %arg5[%c0_9, %c0_10] : memref<1x128xf32, #tpu.memory_space<vmem>>, vector<1x128xf32>
    %11 = vector.broadcast %10 : vector<1x128xf32> to vector<144x128xf32>
    %12 = arith.addf %9, %11 : vector<144x128xf32>
    %cst_11 = arith.constant 0.000000e+00 : f32
    %13 = vector.broadcast %cst_11 : f32 to vector<144x128xf32>
    %14 = arith.maximumf %12, %13 : vector<144x128xf32>
    %c0_12 = arith.constant 0 : index
    %c0_13 = arith.constant 0 : index
    %15 = vector.load %arg9[%c0_12, %c0_13] : memref<144x128xf32, #tpu.memory_space<vmem>>, vector<144x128xf32>
    tpu.vector_store %arg9[%c0_12, %c0_13], %14 {strides = array<i32>} : memref<144x128xf32, #tpu.memory_space<vmem>>, vector<144x128xf32>,
    %c0_14 = arith.constant 0 : index
    %c0_15 = arith.constant 0 : index
    %16 = vector.load %arg9[%c0_14, %c0_15] : memref<144x128xf32, #tpu.memory_space<vmem>>, vector<16x128xf32>
    %c0_16 = arith.constant 0 : index
    %c0_17 = arith.constant 0 : index
    %c0_18 = arith.constant 0 : index
    %17 = vector.load %arg6[%c0_16, %c0_17, %c0_18] : memref<9x128x64xf32, #tpu.memory_space<vmem>>, vector<1x128x64xf32>
    %18 = vector.shape_cast %17 : vector<1x128x64xf32> to vector<128x64xf32>
    %cst_19 = arith.constant dense<0.000000e+00> : vector<16x64xf32>
    %19 = tpu.matmul %16, %18, %cst_19 {dimension_numbers = #tpu.dot_dimension_numbers<[1], [0], [0], [1], [0, 0, 1, 1], [], []>} : vector<16x128xf32>, vector<128x64xf32>, vector<16x64xf32> -> vector<16x64xf32>
    %c16 = arith.constant 16 : index
    %c0_20 = arith.constant 0 : index
    %20 = vector.load %arg9[%c16, %c0_20] : memref<144x128xf32, #tpu.memory_space<vmem>>, vector<16x128xf32>
    %c1 = arith.constant 1 : index
    %c0_21 = arith.constant 0 : index
    %c0_22 = arith.constant 0 : index
    %21 = vector.load %arg6[%c1, %c0_21, %c0_22] : memref<9x128x64xf32, #tpu.memory_space<vmem>>, vector<1x128x64xf32>
    %22 = vector.shape_cast %21 : vector<1x128x64xf32> to vector<128x64xf32>
    %cst_23 = arith.constant dense<0.000000e+00> : vector<16x64xf32>
    %23 = tpu.matmul %20, %22, %cst_23 {dimension_numbers = #tpu.dot_dimension_numbers<[1], [0], [0], [1], [0, 0, 1, 1], [], []>} : vector<16x128xf32>, vector<128x64xf32>, vector<16x64xf32> -> vector<16x64xf32>
    %24 = arith.addf %19, %23 : vector<16x64xf32>
    %c32 = arith.constant 32 : index
    %c0_24 = arith.constant 0 : index
    %25 = vector.load %arg9[%c32, %c0_24] : memref<144x128xf32, #tpu.memory_space<vmem>>, vector<16x128xf32>
    %c2 = arith.constant 2 : index
    %c0_25 = arith.constant 0 : index
    %c0_26 = arith.constant 0 : index
    %26 = vector.load %arg6[%c2, %c0_25, %c0_26] : memref<9x128x64xf32, #tpu.memory_space<vmem>>, vector<1x128x64xf32>
    %27 = vector.shape_cast %26 : vector<1x128x64xf32> to vector<128x64xf32>
    %cst_27 = arith.constant dense<0.000000e+00> : vector<16x64xf32>
    %28 = tpu.matmul %25, %27, %cst_27 {dimension_numbers = #tpu.dot_dimension_numbers<[1], [0], [0], [1], [0, 0, 1, 1], [], []>} : vector<16x128xf32>, vector<128x64xf32>, vector<16x64xf32> -> vector<16x64xf32>
    %29 = arith.addf %24, %28 : vector<16x64xf32>
    %c48 = arith.constant 48 : index
    %c0_28 = arith.constant 0 : index
    %30 = vector.load %arg9[%c48, %c0_28] : memref<144x128xf32, #tpu.memory_space<vmem>>, vector<16x128xf32>
    %c3 = arith.constant 3 : index
    %c0_29 = arith.constant 0 : index
    %c0_30 = arith.constant 0 : index
    %31 = vector.load %arg6[%c3, %c0_29, %c0_30] : memref<9x128x64xf32, #tpu.memory_space<vmem>>, vector<1x128x64xf32>
    %32 = vector.shape_cast %31 : vector<1x128x64xf32> to vector<128x64xf32>
    %cst_31 = arith.constant dense<0.000000e+00> : vector<16x64xf32>
    %33 = tpu.matmul %30, %32, %cst_31 {dimension_numbers = #tpu.dot_dimension_numbers<[1], [0], [0], [1], [0, 0, 1, 1], [], []>} : vector<16x128xf32>, vector<128x64xf32>, vector<16x64xf32> -> vector<16x64xf32>
    %34 = arith.addf %29, %33 : vector<16x64xf32>
    %c64 = arith.constant 64 : index
    %c0_32 = arith.constant 0 : index
    %35 = vector.load %arg9[%c64, %c0_32] : memref<144x128xf32, #tpu.memory_space<vmem>>, vector<16x128xf32>
    %c4 = arith.constant 4 : index
    %c0_33 = arith.constant 0 : index
    %c0_34 = arith.constant 0 : index
    %36 = vector.load %arg6[%c4, %c0_33, %c0_34] : memref<9x128x64xf32, #tpu.memory_space<vmem>>, vector<1x128x64xf32>
    %37 = vector.shape_cast %36 : vector<1x128x64xf32> to vector<128x64xf32>
    %cst_35 = arith.constant dense<0.000000e+00> : vector<16x64xf32>
    %38 = tpu.matmul %35, %37, %cst_35 {dimension_numbers = #tpu.dot_dimension_numbers<[1], [0], [0], [1], [0, 0, 1, 1], [], []>} : vector<16x128xf32>, vector<128x64xf32>, vector<16x64xf32> -> vector<16x64xf32>
    %39 = arith.addf %34, %38 : vector<16x64xf32>
    %c80 = arith.constant 80 : index
    %c0_36 = arith.constant 0 : index
    %40 = vector.load %arg9[%c80, %c0_36] : memref<144x128xf32, #tpu.memory_space<vmem>>, vector<16x128xf32>
    %c5 = arith.constant 5 : index
    %c0_37 = arith.constant 0 : index
    %c0_38 = arith.constant 0 : index
    %41 = vector.load %arg6[%c5, %c0_37, %c0_38] : memref<9x128x64xf32, #tpu.memory_space<vmem>>, vector<1x128x64xf32>
    %42 = vector.shape_cast %41 : vector<1x128x64xf32> to vector<128x64xf32>
    %cst_39 = arith.constant dense<0.000000e+00> : vector<16x64xf32>
    %43 = tpu.matmul %40, %42, %cst_39 {dimension_numbers = #tpu.dot_dimension_numbers<[1], [0], [0], [1], [0, 0, 1, 1], [], []>} : vector<16x128xf32>, vector<128x64xf32>, vector<16x64xf32> -> vector<16x64xf32>
    %44 = arith.addf %39, %43 : vector<16x64xf32>
    %c96 = arith.constant 96 : index
    %c0_40 = arith.constant 0 : index
    %45 = vector.load %arg9[%c96, %c0_40] : memref<144x128xf32, #tpu.memory_space<vmem>>, vector<16x128xf32>
    %c6 = arith.constant 6 : index
    %c0_41 = arith.constant 0 : index
    %c0_42 = arith.constant 0 : index
    %46 = vector.load %arg6[%c6, %c0_41, %c0_42] : memref<9x128x64xf32, #tpu.memory_space<vmem>>, vector<1x128x64xf32>
    %47 = vector.shape_cast %46 : vector<1x128x64xf32> to vector<128x64xf32>
    %cst_43 = arith.constant dense<0.000000e+00> : vector<16x64xf32>
    %48 = tpu.matmul %45, %47, %cst_43 {dimension_numbers = #tpu.dot_dimension_numbers<[1], [0], [0], [1], [0, 0, 1, 1], [], []>} : vector<16x128xf32>, vector<128x64xf32>, vector<16x64xf32> -> vector<16x64xf32>
    %49 = arith.addf %44, %48 : vector<16x64xf32>
    %c112 = arith.constant 112 : index
    %c0_44 = arith.constant 0 : index
    %50 = vector.load %arg9[%c112, %c0_44] : memref<144x128xf32, #tpu.memory_space<vmem>>, vector<16x128xf32>
    %c7 = arith.constant 7 : index
    %c0_45 = arith.constant 0 : index
    %c0_46 = arith.constant 0 : index
    %51 = vector.load %arg6[%c7, %c0_45, %c0_46] : memref<9x128x64xf32, #tpu.memory_space<vmem>>, vector<1x128x64xf32>
    %52 = vector.shape_cast %51 : vector<1x128x64xf32> to vector<128x64xf32>
    %cst_47 = arith.constant dense<0.000000e+00> : vector<16x64xf32>
    %53 = tpu.matmul %50, %52, %cst_47 {dimension_numbers = #tpu.dot_dimension_numbers<[1], [0], [0], [1], [0, 0, 1, 1], [], []>} : vector<16x128xf32>, vector<128x64xf32>, vector<16x64xf32> -> vector<16x64xf32>
    %54 = arith.addf %49, %53 : vector<16x64xf32>
    %c128 = arith.constant 128 : index
    %c0_48 = arith.constant 0 : index
    %55 = vector.load %arg9[%c128, %c0_48] : memref<144x128xf32, #tpu.memory_space<vmem>>, vector<16x128xf32>
    %c8 = arith.constant 8 : index
    %c0_49 = arith.constant 0 : index
    %c0_50 = arith.constant 0 : index
    %56 = vector.load %arg6[%c8, %c0_49, %c0_50] : memref<9x128x64xf32, #tpu.memory_space<vmem>>, vector<1x128x64xf32>
    %57 = vector.shape_cast %56 : vector<1x128x64xf32> to vector<128x64xf32>
    %cst_51 = arith.constant dense<0.000000e+00> : vector<16x64xf32>
    %58 = tpu.matmul %55, %57, %cst_51 {dimension_numbers = #tpu.dot_dimension_numbers<[1], [0], [0], [1], [0, 0, 1, 1], [], []>} : vector<16x128xf32>, vector<128x64xf32>, vector<16x64xf32> -> vector<16x64xf32>
    %59 = arith.addf %54, %58 : vector<16x64xf32>
    %c0_52 = arith.constant 0 : index
    %c0_53 = arith.constant 0 : index
    %60 = vector.load %arg7[%c0_52, %c0_53] : memref<1x64xf32, #tpu.memory_space<vmem>>, vector<1x64xf32>
    %61 = vector.broadcast %60 : vector<1x64xf32> to vector<16x64xf32>
    %62 = arith.addf %59, %61 : vector<16x64xf32>
    %cst_54 = arith.constant 0.000000e+00 : f32
    %63 = vector.broadcast %cst_54 : f32 to vector<16x64xf32>
    %64 = arith.maximumf %62, %63 : vector<16x64xf32>
    %c0_55 = arith.constant 0 : index
    %c0_56 = arith.constant 0 : index
    %65 = vector.load %arg8[%c0_55, %c0_56] : memref<16x64xf32, #tpu.memory_space<vmem>>, vector<16x64xf32>
    tpu.vector_store %arg8[%c0_55, %c0_56], %64 {strides = array<i32>} : memref<16x64xf32, #tpu.memory_space<vmem>>, vector<16x64xf32>,
    return
  }
  func.func @transform_0(%arg0: i32) -> (i32, i32) {
    %c0_i32 = arith.constant 0 : i32
    %c0_i32_0 = arith.constant 0 : i32
    return %arg0, %c0_i32 : i32, i32
  }
  func.func @transform_1(%arg0: i32) -> (i32, i32) {
    %c0_i32 = arith.constant 0 : i32
    %c0_i32_0 = arith.constant 0 : i32
    %c0_i32_1 = arith.constant 0 : i32
    return %c0_i32, %c0_i32_0 : i32, i32
  }
  func.func @transform_2(%arg0: i32) -> (i32, i32) {
    %c0_i32 = arith.constant 0 : i32
    %c0_i32_0 = arith.constant 0 : i32
    %c0_i32_1 = arith.constant 0 : i32
    return %c0_i32, %c0_i32_0 : i32, i32
  }
  func.func @transform_3(%arg0: i32) -> (i32, i32) {
    %c0_i32 = arith.constant 0 : i32
    %c0_i32_0 = arith.constant 0 : i32
    %c0_i32_1 = arith.constant 0 : i32
    return %c0_i32, %c0_i32_0 : i32, i32
  }
  func.func @transform_4(%arg0: i32) -> (i32, i32) {
    %c0_i32 = arith.constant 0 : i32
    %c0_i32_0 = arith.constant 0 : i32
    %c0_i32_1 = arith.constant 0 : i32
    return %c0_i32, %c0_i32_0 : i32, i32
  }
  func.func @transform_5(%arg0: i32) -> (i32, i32, i32) {
    %c0_i32 = arith.constant 0 : i32
    %c0_i32_0 = arith.constant 0 : i32
    %c0_i32_1 = arith.constant 0 : i32
    %c0_i32_2 = arith.constant 0 : i32
    return %c0_i32, %c0_i32_0, %c0_i32_1 : i32, i32, i32
  }
  func.func @transform_6(%arg0: i32) -> (i32, i32) {
    %c0_i32 = arith.constant 0 : i32
    %c0_i32_0 = arith.constant 0 : i32
    %c0_i32_1 = arith.constant 0 : i32
    return %c0_i32, %c0_i32_0 : i32, i32
  }
  func.func @transform_7(%arg0: i32) -> (i32, i32) {
    %c0_i32 = arith.constant 0 : i32
    %c0_i32_0 = arith.constant 0 : i32
    return %arg0, %c0_i32 : i32, i32
  }
}

</mosaic_0001>

<llo_original>
// kernel: cnn_preprocess_forward.1
$region0: #{cnn_preprocess_forward.1}
  #allocation0 [shape = 'u32[]', space=smem, size = 0x4, offset = 0x4, fixed_abs, tag = 'smem constant byte address 0x4 - core index']
  #allocation1 [shape = 'u32[144,128]{1,0:T(1,128)}', space=vmem, size = 0x12000, scoped, tag = 'internal scratch']
  #allocation2 [shape = 'f32[144,128]{1,0:T(8,128)}', space=vmem, size = 0x12000, scoped, tag = 'scratch operand']
  %s0 = inlined_call_operand.vmem [shape: f32[288,147], index: 0, kind: input, shape index: {}]
  %s1 = inlined_call_operand.vmem [shape: f32[147,800], index: 1, kind: input, shape index: {}]
  %s2 = inlined_call_operand.vmem [shape: f32[1,800], index: 2, kind: input, shape index: {}]
  %s3 = inlined_call_operand.vmem [shape: f32[800,128], index: 3, kind: input, shape index: {}]
  %s4 = inlined_call_operand.vmem [shape: f32[1,128], index: 4, kind: input, shape index: {}]
  %s5 = inlined_call_operand.vmem [shape: f32[9,128,64], index: 5, kind: input, shape index: {}]
  %s6 = inlined_call_operand.vmem [shape: f32[1,64], index: 6, kind: input, shape index: {}]
  %s7 = inlined_call_operand.vmem [shape: f32[32,64], index: 7, kind: output, shape index: {}]
  %s8 = sld [smem:[#allocation0]]
  $region61: #{cnn_preprocess_forward.1} parent=0
    _
  %s10 = ssub.s32 1, %s8
  %s11 = scalar_select 0, %s10, %s8
  loop: start=0, step=1, limit=4
  $region2: #{cnn_preprocess_forward.1} parent=0 // loop_pre_header
    _
  $region3: #{cnn_preprocess_forward.1} parent=0 // loop_header
    %s13 = sphi 0, %s17
    %p14 = scmp.ge.s32.totalorder %s13, 4
    %s23 = sphi 0, %s25
    %s26 = sphi 0, %s23
    %s27 = sphi 0, %s26
    %s43 = sphi 0, %s27
    %s47 = sphi 0, %s47
    %s49 = sphi 0, %s47
    %s50 = sphi 0, %s49
    %s64 = sphi 0, %s50
    %s68 = sphi 0, %s68
    %s70 = sphi 0, %s68
    %s71 = sphi 0, %s70
    %s85 = sphi 0, %s71
    %s89 = sphi 0, %s89
    %s91 = sphi 0, %s89
    %s92 = sphi 0, %s91
    %s106 = sphi 0, %s92
    %s110 = sphi 0, %s110
    %s112 = sphi 0, %s110
    %s113 = sphi 0, %s112
    %s127 = sphi 0, %s113
    %s131 = sphi 0, %s131
    %s133 = sphi 0, %s131
    %s134 = sphi 0, %s133
    %s148 = sphi 0, %s134
    %s152 = sphi 0, %s152
    %s154 = sphi 0, %s152
    %s155 = sphi 0, %s154
    %s169 = sphi 0, %s155
    %s175 = sphi 0, %s177
    %s178 = sphi 0, %s175
    %s179 = sphi 0, %s178
    %s195 = sphi 0, %s179
  $region4: #{cnn_preprocess_forward.1} parent=0 // loop_header_branch
    %16 = sbr.rel (%p14) target = $region8
  $region5: #{cnn_preprocess_forward.1} parent=0 // loop_body
    %s18 = ssub.s32 %s13, 1
    %s19 = ssub.s32 %s13, 2
    %s20 = sadd.s32 %s13, 1
    %s21 = ssub.s32 %s13, %s20
    %p22 = scmp.eq.s32.totalorder %s21, 0
    %s24 = sadd.s32 %s23, 1
    %s25 = scalar_select %p22, %s23, %s24
    %p28 = pneg %p22
    %p29 = scmp.eq.s32.totalorder %s13, 1
    %p30 = por %p28, %p29
    %p31 = scmp.ne.s32.totalorder %s23, %s26
    %p32 = scmp.eq.s32.totalorder %s13, 0
    %p33 = por %p31, %p32
    %p34 = scmp.ne.s32.totalorder %s23, %s26
    %p35 = scmp.eq.s32.totalorder %s18, 1
    %p36 = por %p34, %p35
    %p37 = scmp.ne.s32.totalorder %s26, %s27
    %p38 = scmp.eq.s32.totalorder %s18, 0
    %p39 = por %p37, %p38
    %p40 = scmp.ne.s32.totalorder %s26, %s27
    %p41 = scmp.eq.s32.totalorder %s19, 1
    %p42 = por %p40, %p41
    %p44 = scmp.ne.s32.totalorder %s27, %s43
    %p45 = scmp.eq.s32.totalorder %s19, 0
    %p46 = por %p44, %p45
    %s48 = sadd.s32 %s47, 1
    %p51 = scmp.eq.s32.totalorder %s13, 1
    %p52 = scmp.ne.s32.totalorder %s47, %s49
    %p53 = scmp.eq.s32.totalorder %s13, 0
    %p54 = por %p52, %p53
    %p55 = scmp.ne.s32.totalorder %s47, %s49
    %p56 = scmp.eq.s32.totalorder %s18, 1
    %p57 = por %p55, %p56
    %p58 = scmp.ne.s32.totalorder %s49, %s50
    %p59 = scmp.eq.s32.totalorder %s18, 0
    %p60 = por %p58, %p59
    %p61 = scmp.ne.s32.totalorder %s49, %s50
    %p62 = scmp.eq.s32.totalorder %s19, 1
    %p63 = por %p61, %p62
    %p65 = scmp.ne.s32.totalorder %s50, %s64
    %p66 = scmp.eq.s32.totalorder %s19, 0
    %p67 = por %p65, %p66
    %s69 = sadd.s32 %s68, 1
    %p72 = scmp.eq.s32.totalorder %s13, 1
    %p73 = scmp.ne.s32.totalorder %s68, %s70
    %p74 = scmp.eq.s32.totalorder %s13, 0
    %p75 = por %p73, %p74
    %p76 = scmp.ne.s32.totalorder %s68, %s70
    %p77 = scmp.eq.s32.totalorder %s18, 1
    %p78 = por %p76, %p77
    %p79 = scmp.ne.s32.totalorder %s70, %s71
    %p80 = scmp.eq.s32.totalorder %s18, 0
    %p81 = por %p79, %p80
    %p82 = scmp.ne.s32.totalorder %s70, %s71
    %p83 = scmp.eq.s32.totalorder %s19, 1
    %p84 = por %p82, %p83
    %p86 = scmp.ne.s32.totalorder %s71, %s85
    %p87 = scmp.eq.s32.totalorder %s19, 0
    %p88 = por %p86, %p87
    %s90 = sadd.s32 %s89, 1
    %p93 = scmp.eq.s32.totalorder %s13, 1
    %p94 = scmp.ne.s32.totalorder %s89, %s91
    %p95 = scmp.eq.s32.totalorder %s13, 0
    %p96 = por %p94, %p95
    %p97 = scmp.ne.s32.totalorder %s89, %s91
    %p98 = scmp.eq.s32.totalorder %s18, 1
    %p99 = por %p97, %p98
    %p100 = scmp.ne.s32.totalorder %s91, %s92
    %p101 = scmp.eq.s32.totalorder %s18, 0
    %p102 = por %p100, %p101
    %p103 = scmp.ne.s32.totalorder %s91, %s92
    %p104 = scmp.eq.s32.totalorder %s19, 1
    %p105 = por %p103, %p104
    %p107 = scmp.ne.s32.totalorder %s92, %s106
    %p108 = scmp.eq.s32.totalorder %s19, 0
    %p109 = por %p107, %p108
    %s111 = sadd.s32 %s110, 1
    %p114 = scmp.eq.s32.totalorder %s13, 1
    %p115 = scmp.ne.s32.totalorder %s110, %s112
    %p116 = scmp.eq.s32.totalorder %s13, 0
    %p117 = por %p115, %p116
    %p118 = scmp.ne.s32.totalorder %s110, %s112
    %p119 = scmp.eq.s32.totalorder %s18, 1
    %p120 = por %p118, %p119
    %p121 = scmp.ne.s32.totalorder %s112, %s113
    %p122 = scmp.eq.s32.totalorder %s18, 0
    %p123 = por %p121, %p122
    %p124 = scmp.ne.s32.totalorder %s112, %s113
    %p125 = scmp.eq.s32.totalorder %s19, 1
    %p126 = por %p124, %p125
    %p128 = scmp.ne.s32.totalorder %s113, %s127
    %p129 = scmp.eq.s32.totalorder %s19, 0
    %p130 = por %p128, %p129
    %s132 = sadd.s32 %s131, 1
    %p135 = scmp.eq.s32.totalorder %s13, 1
    %p136 = scmp.ne.s32.totalorder %s131, %s133
    %p137 = scmp.eq.s32.totalorder %s13, 0
    %p138 = por %p136, %p137
    %p139 = scmp.ne.s32.totalorder %s131, %s133
    %p140 = scmp.eq.s32.totalorder %s18, 1
    %p141 = por %p139, %p140
    %p142 = scmp.ne.s32.totalorder %s133, %s134
    %p143 = scmp.eq.s32.totalorder %s18, 0
    %p144 = por %p142, %p143
    %p145 = scmp.ne.s32.totalorder %s133, %s134
    %p146 = scmp.eq.s32.totalorder %s19, 1
    %p147 = por %p145, %p146
    %p149 = scmp.ne.s32.totalorder %s134, %s148
    %p150 = scmp.eq.s32.totalorder %s19, 0
    %p151 = por %p149, %p150
    %s153 = sadd.s32 %s152, 1
    %p156 = scmp.eq.s32.totalorder %s13, 1
    %p157 = scmp.ne.s32.totalorder %s152, %s154
    %p158 = scmp.eq.s32.totalorder %s13, 0
    %p159 = por %p157, %p158
    %p160 = scmp.ne.s32.totalorder %s152, %s154
    %p161 = scmp.eq.s32.totalorder %s18, 1
    %p162 = por %p160, %p161
    %p163 = scmp.ne.s32.totalorder %s154, %s155
    %p164 = scmp.eq.s32.totalorder %s18, 0
    %p165 = por %p163, %p164
    %p166 = scmp.ne.s32.totalorder %s154, %s155
    %p167 = scmp.eq.s32.totalorder %s19, 1
    %p168 = por %p166, %p167
    %p170 = scmp.ne.s32.totalorder %s155, %s169
    %p171 = scmp.eq.s32.totalorder %s19, 0
    %p172 = por %p170, %p171
    %s173 = ssub.s32 %s13, %s20
    %p174 = scmp.eq.s32.totalorder %s173, 0
    %s176 = sadd.s32 %s175, 1
    %s177 = scalar_select %p174, %s175, %s176
    %p180 = pneg %p174
    %p181 = scmp.eq.s32.totalorder %s13, 1
    %p182 = por %p180, %p181
    %p183 = scmp.ne.s32.totalorder %s175, %s178
    %p184 = scmp.eq.s32.totalorder %s13, 0
    %p185 = por %p183, %p184
    %p186 = scmp.ne.s32.totalorder %s175, %s178
    %p187 = scmp.eq.s32.totalorder %s18, 1
    %p188 = por %p186, %p187
    %p189 = scmp.ne.s32.totalorder %s178, %s179
    %p190 = scmp.eq.s32.totalorder %s18, 0
    %p191 = por %p189, %p190
    %p192 = scmp.ne.s32.totalorder %s178, %s179
    %p193 = scmp.eq.s32.totalorder %s19, 1
    %p194 = por %p192, %p193
    %p196 = scmp.ne.s32.totalorder %s179, %s195
    %p197 = scmp.eq.s32.totalorder %s19, 0
    %p198 = por %p196, %p197
    %p199 = scmp.le.s32.totalorder 1, %s13
    %p200 = scmp.lt.s32.totalorder %s13, 3
    %p201 = pnand %p199, %p200
    %p202 = pneg %p201
    // Predicated region
    $region9: #{cnn_preprocess_forward.1} parent=5 // pred_check
      _
    $region10: #{cnn_preprocess_forward.1} parent=5 // pred_check_branch
      %204 = sbr.rel (%p201) target = $region12
    $region11: #{cnn_preprocess_forward.1} parent=5 // pred_region
      %s205 = ssub.s32 %s13, 1
      // Predicated region
      $region13: #{cnn_preprocess_forward.1} parent=11 // pred_check
        %p206 = pneg %p60
      $region14: #{cnn_preprocess_forward.1} parent=11 // pred_check_branch
        %208 = sbr.rel (%p206) target = $region16
      $region15: #{cnn_preprocess_forward.1} parent=11 // pred_region
        _
      $region16: #{cnn_preprocess_forward.1} parent=11 // pred_fallthru
        _
      // Predicated region
      $region17: #{cnn_preprocess_forward.1} parent=11 // pred_check
        %p209 = pneg %p81
      $region18: #{cnn_preprocess_forward.1} parent=11 // pred_check_branch
        %211 = sbr.rel (%p209) target = $region20
      $region19: #{cnn_preprocess_forward.1} parent=11 // pred_region
        _
      $region20: #{cnn_preprocess_forward.1} parent=11 // pred_fallthru
        _
      // Predicated region
      $region21: #{cnn_preprocess_forward.1} parent=11 // pred_check
        %p212 = pneg %p102
      $region22: #{cnn_preprocess_forward.1} parent=11 // pred_check_branch
        %214 = sbr.rel (%p212) target = $region24
      $region23: #{cnn_preprocess_forward.1} parent=11 // pred_region
        _
      $region24: #{cnn_preprocess_forward.1} parent=11 // pred_fallthru
        _
      // Predicated region
      $region25: #{cnn_preprocess_forward.1} parent=11 // pred_check
        %p215 = pneg %p123
      $region26: #{cnn_preprocess_forward.1} parent=11 // pred_check_branch
        %217 = sbr.rel (%p215) target = $region28
      $region27: #{cnn_preprocess_forward.1} parent=11 // pred_region
        _
      $region28: #{cnn_preprocess_forward.1} parent=11 // pred_fallthru
        _
      // Predicated region
      $region29: #{cnn_preprocess_forward.1} parent=11 // pred_check
        %p218 = pneg %p144
      $region30: #{cnn_preprocess_forward.1} parent=11 // pred_check_branch
        %220 = sbr.rel (%p218) target = $region32
      $region31: #{cnn_preprocess_forward.1} parent=11 // pred_region
        _
      $region32: #{cnn_preprocess_forward.1} parent=11 // pred_fallthru
        _
      // Predicated region
      $region33: #{cnn_preprocess_forward.1} parent=11 // pred_check
        %p221 = pneg %p165
      $region34: #{cnn_preprocess_forward.1} parent=11 // pred_check_branch
        %223 = sbr.rel (%p221) target = $region36
      $region35: #{cnn_preprocess_forward.1} parent=11 // pred_region
        _
      $region36: #{cnn_preprocess_forward.1} parent=11 // pred_fallthru
        _
    $region12: #{cnn_preprocess_forward.1} parent=5 // pred_fallthru
      _
    %p224 = scmp.lt.s32.totalorder %s13, 2
    // Predicated region
    $region37: #{cnn_preprocess_forward.1} parent=5 // pred_check
      %p225 = pneg %p224
    $region38: #{cnn_preprocess_forward.1} parent=5 // pred_check_branch
      %227 = sbr.rel (%p225) target = $region40
    $region39: #{cnn_preprocess_forward.1} parent=5 // pred_region
      // Predicated region
      $region41: #{cnn_preprocess_forward.1} parent=39 // pred_check
        %p228 = pneg %p33
      $region42: #{cnn_preprocess_forward.1} parent=39 // pred_check_branch
        %230 = sbr.rel (%p228) target = $region44
      $region43: #{cnn_preprocess_forward.1} parent=39 // pred_region
        %s231 = smul.u32 18, %s13
        %p232 = scmp.lt.s32.totalorder %s231, 35
        %s233 = scalar_select %p232, %s231, 35
        %s234 = smul.addr %s233, 2
        %s235 = smul.addr %s234, 8
        %s236 = scalar_lea.vmem %s0, %s235
        %s237 = smul.u32 18, %s13
      $region44: #{cnn_preprocess_forward.1} parent=39 // pred_fallthru
        _
    $region40: #{cnn_preprocess_forward.1} parent=5 // pred_fallthru
      _
    %p238 = scmp.le.s32.totalorder 1, %s13
    %p239 = scmp.lt.s32.totalorder %s13, 3
    %p240 = pnand %p238, %p239
    %p241 = pneg %p240
    // Predicated region
    $region45: #{cnn_preprocess_forward.1} parent=5 // pred_check
      _
    $region46: #{cnn_preprocess_forward.1} parent=5 // pred_check_branch
      %243 = sbr.rel (%p240) target = $region48
    $region47: #{cnn_preprocess_forward.1} parent=5 // pred_region
      %s244 = ssub.s32 %s13, 1
      %s245 = smul.u32 18, %s18
      %p246 = scmp.lt.s32.totalorder %s245, 35
      %s247 = scalar_select %p246, %s245, 35
      %s248 = smul.addr %s247, 2
      %s249 = smul.addr %s248, 8
      %s250 = scalar_lea.vmem %s0, %s249
      %p251 = pneg %p39
      %p252 = pneg %p36
      %p253 = pneg %p60
      %p254 = pneg %p57
      %p255 = pneg %p81
      %p256 = pneg %p78
      %p257 = pneg %p102
      %p258 = pneg %p99
      %p259 = pneg %p123
      %p260 = pneg %p120
      %p261 = pneg %p144
      %p262 = pneg %p141
      %p263 = pneg %p165
      %p264 = pneg %p162
      %p265 = pneg %p191
      %p266 = pneg %p188
      %s267 = smul.u32 2, %s18
      %p268 = scmp.lt.s32.totalorder %s267, 3
      %s269 = scalar_select %p268, %s267, 3
      %s270 = smul.addr %s269, 8
      %s271 = scalar_lea.vmem %s7, %s270
      %s272 = smul.u32 18, %s18
      %p273 = scmp.lt.s32.totalorder %s272, 35
      %s274 = scalar_select %p273, %s272, 35
      %s275 = smul.addr %s274, 2
      %s276 = smul.addr %s275, 8
      %s277 = scalar_lea.vmem %s0, %s276
      %s278 = smul.u32 18, %s18
      %s279 = smul.u32 2, %s18
      %p280 = scmp.lt.s32.totalorder %s279, 3
      %s281 = scalar_select %p280, %s279, 3
      %s282 = smul.addr %s281, 8
      %s283 = scalar_lea.vmem %s7, %s282
      %s284 = smul.u32 2, %s18
      %v285 = vld [vmem:[%s277] sm:$0xff]
      %v286 = vld [vmem:[%s277 + $0x8] sm:$0xff]
      %v287 = vld [vmem:[%s277 + $0x10] sm:$0xff]
      %v288 = vld [vmem:[%s277 + $0x18] sm:$0xff]
      %v289 = vld [vmem:[%s277 + $0x20] sm:$0xff]
      %v290 = vld [vmem:[%s277 + $0x28] sm:$0xff]
      %v291 = vld [vmem:[%s277 + $0x30] sm:$0xff]
      %v292 = vld [vmem:[%s277 + $0x38] sm:$0xff]
      %v293 = vld [vmem:[%s277 + $0x40] sm:$0xff]
      %v294 = vld [vmem:[%s277 + $0x48] sm:$0xff]
      %v295 = vld [vmem:[%s277 + $0x50] sm:$0xff]
      %v296 = vld [vmem:[%s277 + $0x58] sm:$0xff]
      %v297 = vld [vmem:[%s277 + $0x60] sm:$0xff]
      %v298 = vld [vmem:[%s277 + $0x68] sm:$0xff]
      %v299 = vld [vmem:[%s277 + $0x70] sm:$0xff]
      %v300 = vld [vmem:[%s277 + $0x78] sm:$0xff]
      %v301 = vld [vmem:[%s277 + $0x80] sm:$0xff]
      %v302 = vld [vmem:[%s277 + $0x88] sm:$0xff]
      %v303 = vld [vmem:[%s277 + $0x90] sm:$0xff]
      %v304 = vld [vmem:[%s277 + $0x98] sm:$0xff]
      %v305 = vld [vmem:[%s277 + $0xa0] sm:$0xff]
      %v306 = vld [vmem:[%s277 + $0xa8] sm:$0xff]
      %v307 = vld [vmem:[%s277 + $0xb0] sm:$0xff]
      %v308 = vld [vmem:[%s277 + $0xb8] sm:$0xff]
      %v309 = vld [vmem:[%s277 + $0xc0] sm:$0xff]
      %v310 = vld [vmem:[%s277 + $0xc8] sm:$0xff]
      %v311 = vld [vmem:[%s277 + $0xd0] sm:$0xff]
      %v312 = vld [vmem:[%s277 + $0xd8] sm:$0xff]
      %v313 = vld [vmem:[%s277 + $0xe0] sm:$0xff]
      %v314 = vld [vmem:[%s277 + $0xe8] sm:$0xff]
      %v315 = vld [vmem:[%s277 + $0xf0] sm:$0xff]
      %v316 = vld [vmem:[%s277 + $0xf8] sm:$0xff]
      %v317 = vld [vmem:[%s277 + $0x100] sm:$0xff]
      %v318 = vld [vmem:[%s277 + $0x108] sm:$0xff]
      %v319 = vld [vmem:[%s277 + $0x110] sm:$0xff]
      %v320 = vld [vmem:[%s277 + $0x118] sm:$0xff]
      %v321 = vld [vmem:[%s1] sm:$0xff]
      %v322 = vld [vmem:[%s1 + $0x8] sm:$0xff]
      %v323 = vld [vmem:[%s1 + $0x10] sm:$0xff]
      %v324 = vld [vmem:[%s1 + $0x18] sm:$0xff]
      %v325 = vld [vmem:[%s1 + $0x20] sm:$0xff]
      %v326 = vld [vmem:[%s1 + $0x28] sm:$0xff]
      %v327 = vld [vmem:[%s1 + $0x30] sm:$0xff]
      %v328 = vld [vmem:[%s1 + $0x38] sm:$0xff]
      %v329 = vld [vmem:[%s1 + $0x40] sm:$0xff]
      %v330 = vld [vmem:[%s1 + $0x48] sm:$0xff]
      %v331 = vld [vmem:[%s1 + $0x50] sm:$0xff]
      %v332 = vld [vmem:[%s1 + $0x58] sm:$0xff]
      %v333 = vld [vmem:[%s1 + $0x60] sm:$0xff]
      %v334 = vld [vmem:[%s1 + $0x68] sm:$0xff]
      %v335 = vld [vmem:[%s1 + $0x70] sm:$0xff]
      %v336 = vld [vmem:[%s1 + $0x78] sm:$0xff]
      %v337 = vld [vmem:[%s1 + $0x80] sm:$0xff]
      %v338 = vld [vmem:[%s1 + $0x88] sm:$0xff]
      %v339 = vld [vmem:[%s1 + $0x90] sm:$0xff]
      %v340 = vld [vmem:[%s1 + $0x98] sm:$0xff]
      %v341 = vld [vmem:[%s1 + $0xa0] sm:$0xff]
      %v342 = vld [vmem:[%s1 + $0xa8] sm:$0xff]
      %v343 = vld [vmem:[%s1 + $0xb0] sm:$0xff]
      %v344 = vld [vmem:[%s1 + $0xb8] sm:$0xff]
      %v345 = vld [vmem:[%s1 + $0xc0] sm:$0xff]
      %v346 = vld [vmem:[%s1 + $0xc8] sm:$0xff]
      %v347 = vld [vmem:[%s1 + $0xd0] sm:$0xff]
      %v348 = vld [vmem:[%s1 + $0xd8] sm:$0xff]
      %v349 = vld [vmem:[%s1 + $0xe0] sm:$0xff]
      %v350 = vld [vmem:[%s1 + $0xe8] sm:$0xff]
      %v351 = vld [vmem:[%s1 + $0xf0] sm:$0xff]
      %v352 = vld [vmem:[%s1 + $0xf8] sm:$0xff]
      %v353 = vld [vmem:[%s1 + $0x100] sm:$0xff]
      %v354 = vld [vmem:[%s1 + $0x108] sm:$0xff]
      %v355 = vld [vmem:[%s1 + $0x110] sm:$0xff]
      %v356 = vld [vmem:[%s1 + $0x118] sm:$0xff]
      %v357 = vld [vmem:[%s1 + $0x120] sm:$0xff]
      %v358 = vld [vmem:[%s1 + $0x128] sm:$0xff]
      %v359 = vld [vmem:[%s1 + $0x130] sm:$0xff]
      %v360 = vld [vmem:[%s1 + $0x138] sm:$0xff]
      %v361 = vld [vmem:[%s1 + $0x140] sm:$0xff]
      %v362 = vld [vmem:[%s1 + $0x148] sm:$0xff]
      %v363 = vld [vmem:[%s1 + $0x150] sm:$0xff]
      %v364 = vld [vmem:[%s1 + $0x158] sm:$0xff]
      %v365 = vld [vmem:[%s1 + $0x160] sm:$0xff]
      %v366 = vld [vmem:[%s1 + $0x168] sm:$0xff]
      %v367 = vld [vmem:[%s1 + $0x170] sm:$0xff]
      %v368 = vld [vmem:[%s1 + $0x178] sm:$0xff]
      %v369 = vld [vmem:[%s1 + $0x180] sm:$0xff]
      %v370 = vld [vmem:[%s1 + $0x188] sm:$0xff]
      %v371 = vld [vmem:[%s1 + $0x190] sm:$0xff]
      %v372 = vld [vmem:[%s1 + $0x198] sm:$0xff]
      %v373 = vld [vmem:[%s1 + $0x1a0] sm:$0xff]
      %v374 = vld [vmem:[%s1 + $0x1a8] sm:$0xff]
      %v375 = vld [vmem:[%s1 + $0x1b0] sm:$0xff]
      %v376 = vld [vmem:[%s1 + $0x1b8] sm:$0xff]
      %v377 = vld [vmem:[%s1 + $0x1c0] sm:$0xff]
      %v378 = vld [vmem:[%s1 + $0x1c8] sm:$0xff]
      %v379 = vld [vmem:[%s1 + $0x1d0] sm:$0xff]
      %v380 = vld [vmem:[%s1 + $0x1d8] sm:$0xff]
      %v381 = vld [vmem:[%s1 + $0x1e0] sm:$0xff]
      %v382 = vld [vmem:[%s1 + $0x1e8] sm:$0xff]
      %v383 = vld [vmem:[%s1 + $0x1f0] sm:$0xff]
      %v384 = vld [vmem:[%s1 + $0x1f8] sm:$0xff]
      %v385 = vld [vmem:[%s1 + $0x200] sm:$0xff]
      %v386 = vld [vmem:[%s1 + $0x208] sm:$0xff]
      %v387 = vld [vmem:[%s1 + $0x210] sm:$0xff]
      %v388 = vld [vmem:[%s1 + $0x218] sm:$0xff]
      %v389 = vld [vmem:[%s1 + $0x220] sm:$0xff]
      %v390 = vld [vmem:[%s1 + $0x228] sm:$0xff]
      %v391 = vld [vmem:[%s1 + $0x230] sm:$0xff]
      %v392 = vld [vmem:[%s1 + $0x238] sm:$0xff]
      %v393 = vld [vmem:[%s1 + $0x240] sm:$0xff]
      %v394 = vld [vmem:[%s1 + $0x248] sm:$0xff]
      %v395 = vld [vmem:[%s1 + $0x250] sm:$0xff]
      %v396 = vld [vmem:[%s1 + $0x258] sm:$0xff]
      %v397 = vld [vmem:[%s1 + $0x260] sm:$0xff]
      %v398 = vld [vmem:[%s1 + $0x268] sm:$0xff]
      %v399 = vld [vmem:[%s1 + $0x270] sm:$0xff]
      %v400 = vld [vmem:[%s1 + $0x278] sm:$0xff]
      %v401 = vld [vmem:[%s1 + $0x280] sm:$0xff]
      %v402 = vld [vmem:[%s1 + $0x288] sm:$0xff]
      %v403 = vld [vmem:[%s1 + $0x290] sm:$0xff]
      %v404 = vld [vmem:[%s1 + $0x298] sm:$0xff]
      %v405 = vld [vmem:[%s1 + $0x2a0] sm:$0xff]
      %v406 = vld [vmem:[%s1 + $0x2a8] sm:$0xff]
      %v407 = vld [vmem:[%s1 + $0x2b0] sm:$0xff]
      %v408 = vld [vmem:[%s1 + $0x2b8] sm:$0xff]
      %v409 = vld [vmem:[%s1 + $0x2c0] sm:$0xff]
      %v410 = vld [vmem:[%s1 + $0x2c8] sm:$0xff]
      %v411 = vld [vmem:[%s1 + $0x2d0] sm:$0xff]
      %v412 = vld [vmem:[%s1 + $0x2d8] sm:$0xff]
      %v413 = vld [vmem:[%s1 + $0x2e0] sm:$0xff]
      %v414 = vld [vmem:[%s1 + $0x2e8] sm:$0xff]
      %v415 = vld [vmem:[%s1 + $0x2f0] sm:$0xff]
      %v416 = vld [vmem:[%s1 + $0x2f8] sm:$0xff]
      %v417 = vld [vmem:[%s1 + $0x300] sm:$0xff]
      %v418 = vld [vmem:[%s1 + $0x308] sm:$0xff]
      %v419 = vld [vmem:[%s1 + $0x310] sm:$0xff]
      %v420 = vld [vmem:[%s1 + $0x318] sm:$0xff]
      %v421 = vld [vmem:[%s1 + $0x320] sm:$0xff]
      %v422 = vld [vmem:[%s1 + $0x328] sm:$0xff]
      %v423 = vld [vmem:[%s1 + $0x330] sm:$0xff]
      %v424 = vld [vmem:[%s1 + $0x338] sm:$0xff]
      %v425 = vld [vmem:[%s1 + $0x340] sm:$0xff]
      %v426 = vld [vmem:[%s1 + $0x348] sm:$0xff]
      %v427 = vld [vmem:[%s1 + $0x350] sm:$0xff]
      %v428 = vld [vmem:[%s1 + $0x358] sm:$0xff]
      %v429 = vld [vmem:[%s1 + $0x360] sm:$0xff]
      %v430 = vld [vmem:[%s1 + $0x368] sm:$0xff]
      %v431 = vld [vmem:[%s1 + $0x370] sm:$0xff]
      %v432 = vld [vmem:[%s1 + $0x378] sm:$0xff]
      %v433 = vld [vmem:[%s1 + $0x380] sm:$0xff]
      %v434 = vld [vmem:[%s1 + $0x388] sm:$0xff]
      %v435 = vld [vmem:[%s1 + $0x390] sm:$0xff]
      %v436 = vld [vmem:[%s1 + $0x398] sm:$0xff]
      %v437 = vld [vmem:[%s1 + $0x3a0] sm:$0xff]
      %v438 = vld [vmem:[%s1 + $0x3a8] sm:$0xff]
      %v439 = vld [vmem:[%s1 + $0x3b0] sm:$0xff]
      %v440 = vld [vmem:[%s1 + $0x3b8] sm:$0xff]
      %v441 = vld [vmem:[%s1 + $0x3c0] sm:$0xff]
      %v442 = vld [vmem:[%s1 + $0x3c8] sm:$0xff]
      %v443 = vld [vmem:[%s1 + $0x3d0] sm:$0xff]
      %v444 = vld [vmem:[%s1 + $0x3d8] sm:$0xff]
      %v445 = vld [vmem:[%s1 + $0x3e0] sm:$0xff]
      %v446 = vld [vmem:[%s1 + $0x3e8] sm:$0xff]
      %v447 = vld [vmem:[%s1 + $0x3f0] sm:$0x7]
      %v448 = vld [vmem:[%s1 + $0x3f8] sm:$0x7]
      %v449 = vld [vmem:[%s1 + $0x400] sm:$0x7]
      %v450 = vld [vmem:[%s1 + $0x408] sm:$0x7]
      %v451 = vld [vmem:[%s1 + $0x410] sm:$0x7]
      %v452 = vld [vmem:[%s1 + $0x418] sm:$0x7]
      %v453 = vld [vmem:[%s1 + $0x420] sm:$0x7]
      %v454 = vld [vmem:[%s2] sm:$0x7f]
      %v456 = vlaneseq
      %v457 = vshrl.u32 %v456, 7
      %v458 = vsub.s32 0, %v457
      %v459 = vrot.slane %v454, %v458
      %v460 = vlaneseq
      %v461 = vshrl.u32 %v460, 7
      %v462 = vsub.s32 1, %v461
      %v463 = vrot.slane %v454, %v462
      %v464 = vlaneseq
      %v465 = vshrl.u32 %v464, 7
      %v466 = vsub.s32 2, %v465
      %v467 = vrot.slane %v454, %v466
      %v468 = vlaneseq
      %v469 = vshrl.u32 %v468, 7
      %v470 = vsub.s32 3, %v469
      %v471 = vrot.slane %v454, %v470
      %v472 = vlaneseq
      %v473 = vshrl.u32 %v472, 7
      %v474 = vsub.s32 4, %v473
      %v475 = vrot.slane %v454, %v474
      %v476 = vlaneseq
      %v477 = vshrl.u32 %v476, 7
      %v478 = vsub.s32 5, %v477
      %v479 = vrot.slane %v454, %v478
      %v480 = vlaneseq
      %v481 = vshrl.u32 %v480, 7
      %v482 = vsub.s32 6, %v481
      %v483 = vrot.slane %v454, %v482
      %vm491 = vcmask 154624
      %v493 = vsel %vm491, %v286, 0
      %v496 = vsel %vm491, %v288, 0
      %v499 = vsel %vm491, %v290, 0
      %v502 = vsel %vm491, %v292, 0
      %v505 = vsel %vm491, %v294, 0
      %v508 = vsel %vm491, %v296, 0
      %v511 = vsel %vm491, %v298, 0
      %v514 = vsel %vm491, %v300, 0
      %v517 = vsel %vm491, %v302, 0
      %v520 = vsel %vm491, %v304, 0
      %v523 = vsel %vm491, %v306, 0
      %v526 = vsel %vm491, %v308, 0
      %v529 = vsel %vm491, %v310, 0
      %v532 = vsel %vm491, %v312, 0
      %v535 = vsel %vm491, %v314, 0
      %v538 = vsel %vm491, %v316, 0
      %v541 = vsel %vm491, %v318, 0
      %v544 = vsel %vm491, %v320, 0
      %vm546 = vcmask 1042432
      %v548 = vsel %vm546, %v447, 0
      %v551 = vsel %vm546, %v448, 0
      %v554 = vsel %vm546, %v449, 0
      %v557 = vsel %vm546, %v450, 0
      %v560 = vsel %vm546, %v451, 0
      %v563 = vsel %vm546, %v452, 0
      %v566 = vsel %vm546, %v453, 0
      %568 = vmatprep.subr.mxu0 %v427
      %569 = vmatpush1.msra.mxu0 %v426
      %570 = vmatprep.subr.mxu0 %v420
      %571 = vmatpush1.msra.mxu0 %v419
      %572 = vmatprep.subr.mxu0 %v413
      %573 = vmatpush1.msra.mxu0 %v412
      %574 = vmatprep.subr.mxu0 %v406
      %575 = vmatpush1.msra.mxu0 %v405
      %576 = vmatprep.subr.mxu0 %v399
      %577 = vmatpush1.msra.mxu0 %v398
      %578 = vmatprep.subr.mxu0 %v392
      %579 = vmatpush1.msra.mxu0 %v391
      %580 = vmatprep.subr.mxu0 %v385
      %581 = vmatpush1.msra.mxu0 %v384
      %582 = vmatprep.subr.mxu0 %v378
      %583 = vmatpush1.msra.mxu0 %v377
      %584 = vmatprep.subr.mxu0 %v371
      %585 = vmatpush1.msra.mxu0 %v370
      %586 = vmatprep.subr.mxu0 %v364
      %587 = vmatpush1.msra.mxu0 %v363
      %588 = vmatprep.subr.mxu0 %v357
      %589 = vmatpush1.msra.mxu0 %v356
      %590 = vmatprep.subr.mxu0 %v350
      %591 = vmatpush1.msra.mxu0 %v349
      %592 = vmatprep.subr.mxu0 %v343
      %593 = vmatpush1.msra.mxu0 %v342
      %594 = vmatprep.subr.mxu0 %v336
      %595 = vmatpush1.msra.mxu0 %v335
      %596 = vmatprep.subr.mxu0 %v329
      %597 = vmatpush1.msra.mxu0 %v328
      %598 = vmatprep.subr.mxu0 %v322
      %599 = vmatpush1.msra.mxu0 %v321
      %600 = vmatprep.subr.mxu0 0.0
      %601 = vmatpush2.msra.mxu0 0.0
      %602 = vmatprep.subr.mxu0 0.0
      %603 = vmatpush2.msra.mxu0 0.0
      %604 = vmatprep.subr.mxu0 0.0
      %605 = vmatpush2.msra.mxu0 0.0
      %606 = vmatprep.subr.mxu0 0.0
      %607 = vmatpush2.msra.mxu0 0.0
      %608 = vmatprep.subr.mxu0 0.0
      %609 = vmatpush2.msra.mxu0 0.0
      %610 = vmatprep.subr.mxu0 0.0
      %611 = vmatpush2.msra.mxu0 0.0
      %612 = vmatprep.subr.mxu0 0.0
      %613 = vmatpush2.msra.mxu0 0.0
      %614 = vmatprep.subr.mxu0 0.0
      %615 = vmatpush2.msra.mxu0 0.0
      %616 = vmatprep.subr.mxu0 0.0
      %617 = vmatpush2.msra.mxu0 0.0
      %618 = vmatprep.subr.mxu0 0.0
      %619 = vmatpush2.msra.mxu0 0.0
      %620 = vmatprep.subr.mxu0 0.0
      %621 = vmatpush2.msra.mxu0 0.0
      %622 = vmatprep.subr.mxu0 0.0
      %623 = vmatpush2.msra.mxu0 0.0
      %624 = vmatprep.subr.mxu0 0.0
      %625 = vmatpush2.msra.mxu0 0.0
      %626 = vmatprep.subr.mxu0 %v551
      %627 = vmatpush2.msra.mxu0 %v548
      %628 = vmatprep.subr.mxu0 %v441
      %629 = vmatpush2.msra.mxu0 %v440
      %630 = vmatprep.subr.mxu0 %v434
      %631 = vmatpush2.msra.mxu0 %v433
      %632 = vmatprep.mubr.f32.mxu0 %v493
      %633 = vmatmul.mubr.f32.gmra.mxu0 %v285
      %v634 = vpop.f32.mrf.mxu0
      %v635 = vadd.f32 %v459, %v634
      %v636 = vpop.f32.mrf.mxu0
      %v637 = vadd.f32 %v463, %v636
      %638 = vmatprep.mubr.f32.mxu0 %v496
      %639 = vmatmul.mubr.f32.gmra.mxu0 %v287
      %v640 = vpop.f32.mrf.mxu0
      %v641 = vadd.f32 %v459, %v640
      %v642 = vpop.f32.mrf.mxu0
      %v643 = vadd.f32 %v463, %v642
      %644 = vmatprep.mubr.f32.mxu0 %v499
      %645 = vmatmul.mubr.f32.gmra.mxu0 %v289
      %v646 = vpop.f32.mrf.mxu0
      %v647 = vadd.f32 %v459, %v646
      %v648 = vpop.f32.mrf.mxu0
      %v649 = vadd.f32 %v463, %v648
      %650 = vmatprep.mubr.f32.mxu0 %v502
      %651 = vmatmul.mubr.f32.gmra.mxu0 %v291
      %v652 = vpop.f32.mrf.mxu0
      %v653 = vadd.f32 %v459, %v652
      %v654 = vpop.f32.mrf.mxu0
      %v655 = vadd.f32 %v463, %v654
      %656 = vmatprep.mubr.f32.mxu0 %v505
      %657 = vmatmul.mubr.f32.gmra.mxu0 %v293
      %v658 = vpop.f32.mrf.mxu0
      %v659 = vadd.f32 %v459, %v658
      %v660 = vpop.f32.mrf.mxu0
      %v661 = vadd.f32 %v463, %v660
      %662 = vmatprep.mubr.f32.mxu0 %v508
      %663 = vmatmul.mubr.f32.gmra.mxu0 %v295
      %v664 = vpop.f32.mrf.mxu0
      %v665 = vadd.f32 %v459, %v664
      %v666 = vpop.f32.mrf.mxu0
      %v667 = vadd.f32 %v463, %v666
      %668 = vmatprep.mubr.f32.mxu0 %v511
      %669 = vmatmul.mubr.f32.gmra.mxu0 %v297
      %v670 = vpop.f32.mrf.mxu0
      %v671 = vadd.f32 %v459, %v670
      %v672 = vpop.f32.mrf.mxu0
      %v673 = vadd.f32 %v463, %v672
      %674 = vmatprep.mubr.f32.mxu0 %v514
      %675 = vmatmul.mubr.f32.gmra.mxu0 %v299
      %v676 = vpop.f32.mrf.mxu0
      %v677 = vadd.f32 %v459, %v676
      %v678 = vpop.f32.mrf.mxu0
      %v679 = vadd.f32 %v463, %v678
      %680 = vmatprep.mubr.f32.mxu0 %v517
      %681 = vmatmul.mubr.f32.gmra.mxu0 %v301
      %v682 = vpop.f32.mrf.mxu0
      %v683 = vadd.f32 %v459, %v682
      %v684 = vpop.f32.mrf.mxu0
      %v685 = vadd.f32 %v463, %v684
      %686 = vmatprep.mubr.f32.mxu0 %v520
      %687 = vmatmul.mubr.f32.gmra.mxu0 %v303
      %v688 = vpop.f32.mrf.mxu0
      %v689 = vadd.f32 %v459, %v688
      %v690 = vpop.f32.mrf.mxu0
      %v691 = vadd.f32 %v463, %v690
      %692 = vmatprep.mubr.f32.mxu0 %v523
      %693 = vmatmul.mubr.f32.gmra.mxu0 %v305
      %v694 = vpop.f32.mrf.mxu0
      %v695 = vadd.f32 %v459, %v694
      %v696 = vpop.f32.mrf.mxu0
      %v697 = vadd.f32 %v463, %v696
      %698 = vmatprep.mubr.f32.mxu0 %v526
      %699 = vmatmul.mubr.f32.gmra.mxu0 %v307
      %v700 = vpop.f32.mrf.mxu0
      %v701 = vadd.f32 %v459, %v700
      %v702 = vpop.f32.mrf.mxu0
      %v703 = vadd.f32 %v463, %v702
      %704 = vmatprep.mubr.f32.mxu0 %v529
      %705 = vmatmul.mubr.f32.gmra.mxu0 %v309
      %v706 = vpop.f32.mrf.mxu0
      %v707 = vadd.f32 %v459, %v706
      %v708 = vpop.f32.mrf.mxu0
      %v709 = vadd.f32 %v463, %v708
      %710 = vmatprep.mubr.f32.mxu0 %v532
      %711 = vmatmul.mubr.f32.gmra.mxu0 %v311
      %v712 = vpop.f32.mrf.mxu0
      %v713 = vadd.f32 %v459, %v712
      %v714 = vpop.f32.mrf.mxu0
      %v715 = vadd.f32 %v463, %v714
      %716 = vmatprep.mubr.f32.mxu0 %v535
      %717 = vmatmul.mubr.f32.gmra.mxu0 %v313
      %v718 = vpop.f32.mrf.mxu0
      %v719 = vadd.f32 %v459, %v718
      %v720 = vpop.f32.mrf.mxu0
      %v721 = vadd.f32 %v463, %v720
      %722 = vmatprep.mubr.f32.mxu0 %v538
      %723 = vmatmul.mubr.f32.gmra.mxu0 %v315
      %v724 = vpop.f32.mrf.mxu0
      %v725 = vadd.f32 %v459, %v724
      %v726 = vpop.f32.mrf.mxu0
      %v727 = vadd.f32 %v463, %v726
      %728 = vmatprep.mubr.f32.mxu0 %v541
      %729 = vmatmul.mubr.f32.gmra.mxu0 %v317
      %v730 = vpop.f32.mrf.mxu0
      %v731 = vadd.f32 %v459, %v730
      %v732 = vpop.f32.mrf.mxu0
      %v733 = vadd.f32 %v463, %v732
      %734 = vmatprep.mubr.f32.mxu0 %v544
      %735 = vmatmul.mubr.f32.gmra.mxu0 %v319
      %v736 = vpop.f32.mrf.mxu0
      %v737 = vadd.f32 %v459, %v736
      %v738 = vpop.f32.mrf.mxu0
      %v739 = vadd.f32 %v463, %v738
      %740 = vdwg.mxu0
      %741 = vmatprep.subr.mxu0 %v429
      %742 = vmatpush1.msra.mxu0 %v428
      %743 = vmatprep.subr.mxu0 %v422
      %744 = vmatpush1.msra.mxu0 %v421
      %745 = vmatprep.subr.mxu0 %v415
      %746 = vmatpush1.msra.mxu0 %v414
      %747 = vmatprep.subr.mxu0 %v408
      %748 = vmatpush1.msra.mxu0 %v407
      %749 = vmatprep.subr.mxu0 %v401
      %750 = vmatpush1.msra.mxu0 %v400
      %751 = vmatprep.subr.mxu0 %v394
      %752 = vmatpush1.msra.mxu0 %v393
      %753 = vmatprep.subr.mxu0 %v387
      %754 = vmatpush1.msra.mxu0 %v386
      %755 = vmatprep.subr.mxu0 %v380
      %756 = vmatpush1.msra.mxu0 %v379
      %757 = vmatprep.subr.mxu0 %v373
      %758 = vmatpush1.msra.mxu0 %v372
      %759 = vmatprep.subr.mxu0 %v366
      %760 = vmatpush1.msra.mxu0 %v365
      %761 = vmatprep.subr.mxu0 %v359
      %762 = vmatpush1.msra.mxu0 %v358
      %763 = vmatprep.subr.mxu0 %v352
      %764 = vmatpush1.msra.mxu0 %v351
      %765 = vmatprep.subr.mxu0 %v345
      %766 = vmatpush1.msra.mxu0 %v344
      %767 = vmatprep.subr.mxu0 %v338
      %768 = vmatpush1.msra.mxu0 %v337
      %769 = vmatprep.subr.mxu0 %v331
      %770 = vmatpush1.msra.mxu0 %v330
      %771 = vmatprep.subr.mxu0 %v324
      %772 = vmatpush1.msra.mxu0 %v323
      %773 = vmatprep.subr.mxu0 0.0
      %774 = vmatpush2.msra.mxu0 0.0
      %775 = vmatprep.subr.mxu0 0.0
      %776 = vmatpush2.msra.mxu0 0.0
      %777 = vmatprep.subr.mxu0 0.0
      %778 = vmatpush2.msra.mxu0 0.0
      %779 = vmatprep.subr.mxu0 0.0
      %780 = vmatpush2.msra.mxu0 0.0
      %781 = vmatprep.subr.mxu0 0.0
      %782 = vmatpush2.msra.mxu0 0.0
      %783 = vmatprep.subr.mxu0 0.0
      %784 = vmatpush2.msra.mxu0 0.0
      %785 = vmatprep.subr.mxu0 0.0
      %786 = vmatpush2.msra.mxu0 0.0
      %787 = vmatprep.subr.mxu0 0.0
      %788 = vmatpush2.msra.mxu0 0.0
      %789 = vmatprep.subr.mxu0 0.0
      %790 = vmatpush2.msra.mxu0 0.0
      %791 = vmatprep.subr.mxu0 0.0
      %792 = vmatpush2.msra.mxu0 0.0
      %793 = vmatprep.subr.mxu0 0.0
      %794 = vmatpush2.msra.mxu0 0.0
      %795 = vmatprep.subr.mxu0 0.0
      %796 = vmatpush2.msra.mxu0 0.0
      %797 = vmatprep.subr.mxu0 0.0
      %798 = vmatpush2.msra.mxu0 0.0
      %799 = vmatprep.subr.mxu0 %v557
      %800 = vmatpush2.msra.mxu0 %v554
      %801 = vmatprep.subr.mxu0 %v443
      %802 = vmatpush2.msra.mxu0 %v442
      %803 = vmatprep.subr.mxu0 %v436
      %804 = vmatpush2.msra.mxu0 %v435
      %805 = vmatprep.mubr.f32.mxu0 %v493
      %806 = vmatmul.mubr.f32.gmra.mxu0 %v285
      %v807 = vpop.f32.mrf.mxu0
      %v808 = vadd.f32 %v467, %v807
      %v809 = vpop.f32.mrf.mxu0
      %v810 = vadd.f32 %v471, %v809
      %811 = vmatprep.mubr.f32.mxu0 %v496
      %812 = vmatmul.mubr.f32.gmra.mxu0 %v287
      %v813 = vpop.f32.mrf.mxu0
      %v814 = vadd.f32 %v467, %v813
      %v815 = vpop.f32.mrf.mxu0
      %v816 = vadd.f32 %v471, %v815
      %817 = vmatprep.mubr.f32.mxu0 %v499
      %818 = vmatmul.mubr.f32.gmra.mxu0 %v289
      %v819 = vpop.f32.mrf.mxu0
      %v820 = vadd.f32 %v467, %v819
      %v821 = vpop.f32.mrf.mxu0
      %v822 = vadd.f32 %v471, %v821
      %823 = vmatprep.mubr.f32.mxu0 %v502
      %824 = vmatmul.mubr.f32.gmra.mxu0 %v291
      %v825 = vpop.f32.mrf.mxu0
      %v826 = vadd.f32 %v467, %v825
      %v827 = vpop.f32.mrf.mxu0
      %v828 = vadd.f32 %v471, %v827
      %829 = vmatprep.mubr.f32.mxu0 %v505
      %830 = vmatmul.mubr.f32.gmra.mxu0 %v293
      %v831 = vpop.f32.mrf.mxu0
      %v832 = vadd.f32 %v467, %v831
      %v833 = vpop.f32.mrf.mxu0
      %v834 = vadd.f32 %v471, %v833
      %835 = vmatprep.mubr.f32.mxu0 %v508
      %836 = vmatmul.mubr.f32.gmra.mxu0 %v295
      %v837 = vpop.f32.mrf.mxu0
      %v838 = vadd.f32 %v467, %v837
      %v839 = vpop.f32.mrf.mxu0
      %v840 = vadd.f32 %v471, %v839
      %841 = vmatprep.mubr.f32.mxu0 %v511
      %842 = vmatmul.mubr.f32.gmra.mxu0 %v297
      %v843 = vpop.f32.mrf.mxu0
      %v844 = vadd.f32 %v467, %v843
      %v845 = vpop.f32.mrf.mxu0
      %v846 = vadd.f32 %v471, %v845
      %847 = vmatprep.mubr.f32.mxu0 %v514
      %848 = vmatmul.mubr.f32.gmra.mxu0 %v299
      %v849 = vpop.f32.mrf.mxu0
      %v850 = vadd.f32 %v467, %v849
      %v851 = vpop.f32.mrf.mxu0
      %v852 = vadd.f32 %v471, %v851
      %853 = vmatprep.mubr.f32.mxu0 %v517
      %854 = vmatmul.mubr.f32.gmra.mxu0 %v301
      %v855 = vpop.f32.mrf.mxu0
      %v856 = vadd.f32 %v467, %v855
      %v857 = vpop.f32.mrf.mxu0
      %v858 = vadd.f32 %v471, %v857
      %859 = vmatprep.mubr.f32.mxu0 %v520
      %860 = vmatmul.mubr.f32.gmra.mxu0 %v303
      %v861 = vpop.f32.mrf.mxu0
      %v862 = vadd.f32 %v467, %v861
      %v863 = vpop.f32.mrf.mxu0
      %v864 = vadd.f32 %v471, %v863
      %865 = vmatprep.mubr.f32.mxu0 %v523
      %866 = vmatmul.mubr.f32.gmra.mxu0 %v305
      %v867 = vpop.f32.mrf.mxu0
      %v868 = vadd.f32 %v467, %v867
      %v869 = vpop.f32.mrf.mxu0
      %v870 = vadd.f32 %v471, %v869
      %871 = vmatprep.mubr.f32.mxu0 %v526
      %872 = vmatmul.mubr.f32.gmra.mxu0 %v307
      %v873 = vpop.f32.mrf.mxu0
      %v874 = vadd.f32 %v467, %v873
      %v875 = vpop.f32.mrf.mxu0
      %v876 = vadd.f32 %v471, %v875
      %877 = vmatprep.mubr.f32.mxu0 %v529
      %878 = vmatmul.mubr.f32.gmra.mxu0 %v309
      %v879 = vpop.f32.mrf.mxu0
      %v880 = vadd.f32 %v467, %v879
      %v881 = vpop.f32.mrf.mxu0
      %v882 = vadd.f32 %v471, %v881
      %883 = vmatprep.mubr.f32.mxu0 %v532
      %884 = vmatmul.mubr.f32.gmra.mxu0 %v311
      %v885 = vpop.f32.mrf.mxu0
      %v886 = vadd.f32 %v467, %v885
      %v887 = vpop.f32.mrf.mxu0
      %v888 = vadd.f32 %v471, %v887
      %889 = vmatprep.mubr.f32.mxu0 %v535
      %890 = vmatmul.mubr.f32.gmra.mxu0 %v313
      %v891 = vpop.f32.mrf.mxu0
      %v892 = vadd.f32 %v467, %v891
      %v893 = vpop.f32.mrf.mxu0
      %v894 = vadd.f32 %v471, %v893
      %895 = vmatprep.mubr.f32.mxu0 %v538
      %896 = vmatmul.mubr.f32.gmra.mxu0 %v315
      %v897 = vpop.f32.mrf.mxu0
      %v898 = vadd.f32 %v467, %v897
      %v899 = vpop.f32.mrf.mxu0
      %v900 = vadd.f32 %v471, %v899
      %901 = vmatprep.mubr.f32.mxu0 %v541
      %902 = vmatmul.mubr.f32.gmra.mxu0 %v317
      %v903 = vpop.f32.mrf.mxu0
      %v904 = vadd.f32 %v467, %v903
      %v905 = vpop.f32.mrf.mxu0
      %v906 = vadd.f32 %v471, %v905
      %907 = vmatprep.mubr.f32.mxu0 %v544
      %908 = vmatmul.mubr.f32.gmra.mxu0 %v319
      %v909 = vpop.f32.mrf.mxu0
      %v910 = vadd.f32 %v467, %v909
      %v911 = vpop.f32.mrf.mxu0
      %v912 = vadd.f32 %v471, %v911
      %913 = vdwg.mxu0
      %914 = vmatprep.subr.mxu0 %v431
      %915 = vmatpush1.msra.mxu0 %v430
      %916 = vmatprep.subr.mxu0 %v424
      %917 = vmatpush1.msra.mxu0 %v423
      %918 = vmatprep.subr.mxu0 %v417
      %919 = vmatpush1.msra.mxu0 %v416
      %920 = vmatprep.subr.mxu0 %v410
      %921 = vmatpush1.msra.mxu0 %v409
      %922 = vmatprep.subr.mxu0 %v403
      %923 = vmatpush1.msra.mxu0 %v402
      %924 = vmatprep.subr.mxu0 %v396
      %925 = vmatpush1.msra.mxu0 %v395
      %926 = vmatprep.subr.mxu0 %v389
      %927 = vmatpush1.msra.mxu0 %v388
      %928 = vmatprep.subr.mxu0 %v382
      %929 = vmatpush1.msra.mxu0 %v381
      %930 = vmatprep.subr.mxu0 %v375
      %931 = vmatpush1.msra.mxu0 %v374
      %932 = vmatprep.subr.mxu0 %v368
      %933 = vmatpush1.msra.mxu0 %v367
      %934 = vmatprep.subr.mxu0 %v361
      %935 = vmatpush1.msra.mxu0 %v360
      %936 = vmatprep.subr.mxu0 %v354
      %937 = vmatpush1.msra.mxu0 %v353
      %938 = vmatprep.subr.mxu0 %v347
      %939 = vmatpush1.msra.mxu0 %v346
      %940 = vmatprep.subr.mxu0 %v340
      %941 = vmatpush1.msra.mxu0 %v339
      %942 = vmatprep.subr.mxu0 %v333
      %943 = vmatpush1.msra.mxu0 %v332
      %944 = vmatprep.subr.mxu0 %v326
      %945 = vmatpush1.msra.mxu0 %v325
      %946 = vmatprep.subr.mxu0 0.0
      %947 = vmatpush2.msra.mxu0 0.0
      %948 = vmatprep.subr.mxu0 0.0
      %949 = vmatpush2.msra.mxu0 0.0
      %950 = vmatprep.subr.mxu0 0.0
      %951 = vmatpush2.msra.mxu0 0.0
      %952 = vmatprep.subr.mxu0 0.0
      %953 = vmatpush2.msra.mxu0 0.0
      %954 = vmatprep.subr.mxu0 0.0
      %955 = vmatpush2.msra.mxu0 0.0
      %956 = vmatprep.subr.mxu0 0.0
      %957 = vmatpush2.msra.mxu0 0.0
      %958 = vmatprep.subr.mxu0 0.0
      %959 = vmatpush2.msra.mxu0 0.0
      %960 = vmatprep.subr.mxu0 0.0
      %961 = vmatpush2.msra.mxu0 0.0
      %962 = vmatprep.subr.mxu0 0.0
      %963 = vmatpush2.msra.mxu0 0.0
      %964 = vmatprep.subr.mxu0 0.0
      %965 = vmatpush2.msra.mxu0 0.0
      %966 = vmatprep.subr.mxu0 0.0
      %967 = vmatpush2.msra.mxu0 0.0
      %968 = vmatprep.subr.mxu0 0.0
      %969 = vmatpush2.msra.mxu0 0.0
      %970 = vmatprep.subr.mxu0 0.0
      %971 = vmatpush2.msra.mxu0 0.0
      %972 = vmatprep.subr.mxu0 %v563
      %973 = vmatpush2.msra.mxu0 %v560
      %974 = vmatprep.subr.mxu0 %v445
      %975 = vmatpush2.msra.mxu0 %v444
      %976 = vmatprep.subr.mxu0 %v438
      %977 = vmatpush2.msra.mxu0 %v437
      %978 = vmatprep.mubr.f32.mxu0 %v493
      %979 = vmatmul.mubr.f32.gmra.mxu0 %v285
      %v980 = vpop.f32.mrf.mxu0
      %v981 = vadd.f32 %v475, %v980
      %v982 = vpop.f32.mrf.mxu0
      %v983 = vadd.f32 %v479, %v982
      %984 = vmatprep.mubr.f32.mxu0 %v496
      %985 = vmatmul.mubr.f32.gmra.mxu0 %v287
      %v986 = vpop.f32.mrf.mxu0
      %v987 = vadd.f32 %v475, %v986
      %v988 = vpop.f32.mrf.mxu0
      %v989 = vadd.f32 %v479, %v988
      %990 = vmatprep.mubr.f32.mxu0 %v499
      %991 = vmatmul.mubr.f32.gmra.mxu0 %v289
      %v992 = vpop.f32.mrf.mxu0
      %v993 = vadd.f32 %v475, %v992
      %v994 = vpop.f32.mrf.mxu0
      %v995 = vadd.f32 %v479, %v994
      %996 = vmatprep.mubr.f32.mxu0 %v502
      %997 = vmatmul.mubr.f32.gmra.mxu0 %v291
      %v998 = vpop.f32.mrf.mxu0
      %v999 = vadd.f32 %v475, %v998
      %v1000 = vpop.f32.mrf.mxu0
      %v1001 = vadd.f32 %v479, %v1000
      %1002 = vmatprep.mubr.f32.mxu0 %v505
      %1003 = vmatmul.mubr.f32.gmra.mxu0 %v293
      %v1004 = vpop.f32.mrf.mxu0
      %v1005 = vadd.f32 %v475, %v1004
      %v1006 = vpop.f32.mrf.mxu0
      %v1007 = vadd.f32 %v479, %v1006
      %1008 = vmatprep.mubr.f32.mxu0 %v508
      %1009 = vmatmul.mubr.f32.gmra.mxu0 %v295
      %v1010 = vpop.f32.mrf.mxu0
      %v1011 = vadd.f32 %v475, %v1010
      %v1012 = vpop.f32.mrf.mxu0
      %v1013 = vadd.f32 %v479, %v1012
      %1014 = vmatprep.mubr.f32.mxu0 %v511
      %1015 = vmatmul.mubr.f32.gmra.mxu0 %v297
      %v1016 = vpop.f32.mrf.mxu0
      %v1017 = vadd.f32 %v475, %v1016
      %v1018 = vpop.f32.mrf.mxu0
      %v1019 = vadd.f32 %v479, %v1018
      %1020 = vmatprep.mubr.f32.mxu0 %v514
      %1021 = vmatmul.mubr.f32.gmra.mxu0 %v299
      %v1022 = vpop.f32.mrf.mxu0
      %v1023 = vadd.f32 %v475, %v1022
      %v1024 = vpop.f32.mrf.mxu0
      %v1025 = vadd.f32 %v479, %v1024
      %1026 = vmatprep.mubr.f32.mxu0 %v517
      %1027 = vmatmul.mubr.f32.gmra.mxu0 %v301
      %v1028 = vpop.f32.mrf.mxu0
      %v1029 = vadd.f32 %v475, %v1028
      %v1030 = vpop.f32.mrf.mxu0
      %v1031 = vadd.f32 %v479, %v1030
      %1032 = vmatprep.mubr.f32.mxu0 %v520
      %1033 = vmatmul.mubr.f32.gmra.mxu0 %v303
      %v1034 = vpop.f32.mrf.mxu0
      %v1035 = vadd.f32 %v475, %v1034
      %v1036 = vpop.f32.mrf.mxu0
      %v1037 = vadd.f32 %v479, %v1036
      %1038 = vmatprep.mubr.f32.mxu0 %v523
      %1039 = vmatmul.mubr.f32.gmra.mxu0 %v305
      %v1040 = vpop.f32.mrf.mxu0
      %v1041 = vadd.f32 %v475, %v1040
      %v1042 = vpop.f32.mrf.mxu0
      %v1043 = vadd.f32 %v479, %v1042
      %1044 = vmatprep.mubr.f32.mxu0 %v526
      %1045 = vmatmul.mubr.f32.gmra.mxu0 %v307
      %v1046 = vpop.f32.mrf.mxu0
      %v1047 = vadd.f32 %v475, %v1046
      %v1048 = vpop.f32.mrf.mxu0
      %v1049 = vadd.f32 %v479, %v1048
      %1050 = vmatprep.mubr.f32.mxu0 %v529
      %1051 = vmatmul.mubr.f32.gmra.mxu0 %v309
      %v1052 = vpop.f32.mrf.mxu0
      %v1053 = vadd.f32 %v475, %v1052
      %v1054 = vpop.f32.mrf.mxu0
      %v1055 = vadd.f32 %v479, %v1054
      %1056 = vmatprep.mubr.f32.mxu0 %v532
      %1057 = vmatmul.mubr.f32.gmra.mxu0 %v311
      %v1058 = vpop.f32.mrf.mxu0
      %v1059 = vadd.f32 %v475, %v1058
      %v1060 = vpop.f32.mrf.mxu0
      %v1061 = vadd.f32 %v479, %v1060
      %1062 = vmatprep.mubr.f32.mxu0 %v535
      %1063 = vmatmul.mubr.f32.gmra.mxu0 %v313
      %v1064 = vpop.f32.mrf.mxu0
      %v1065 = vadd.f32 %v475, %v1064
      %v1066 = vpop.f32.mrf.mxu0
      %v1067 = vadd.f32 %v479, %v1066
      %1068 = vmatprep.mubr.f32.mxu0 %v538
      %1069 = vmatmul.mubr.f32.gmra.mxu0 %v315
      %v1070 = vpop.f32.mrf.mxu0
      %v1071 = vadd.f32 %v475, %v1070
      %v1072 = vpop.f32.mrf.mxu0
      %v1073 = vadd.f32 %v479, %v1072
      %1074 = vmatprep.mubr.f32.mxu0 %v541
      %1075 = vmatmul.mubr.f32.gmra.mxu0 %v317
      %v1076 = vpop.f32.mrf.mxu0
      %v1077 = vadd.f32 %v475, %v1076
      %v1078 = vpop.f32.mrf.mxu0
      %v1079 = vadd.f32 %v479, %v1078
      %1080 = vmatprep.mubr.f32.mxu0 %v544
      %1081 = vmatmul.mubr.f32.gmra.mxu0 %v319
      %v1082 = vpop.f32.mrf.mxu0
      %v1083 = vadd.f32 %v475, %v1082
      %v1084 = vpop.f32.mrf.mxu0
      %v1085 = vadd.f32 %v479, %v1084
      %1086 = vdwg.mxu0
      %1087 = vmatprep.subr.mxu0 0.0
      %1088 = vmatpush1.msra.mxu0 %v432
      %1089 = vmatprep.subr.mxu0 0.0
      %1090 = vmatpush1.msra.mxu0 %v425
      %1091 = vmatprep.subr.mxu0 0.0
      %1092 = vmatpush1.msra.mxu0 %v418
      %1093 = vmatprep.subr.mxu0 0.0
      %1094 = vmatpush1.msra.mxu0 %v411
      %1095 = vmatprep.subr.mxu0 0.0
      %1096 = vmatpush1.msra.mxu0 %v404
      %1097 = vmatprep.subr.mxu0 0.0
      %1098 = vmatpush1.msra.mxu0 %v397
      %1099 = vmatprep.subr.mxu0 0.0
      %1100 = vmatpush1.msra.mxu0 %v390
      %1101 = vmatprep.subr.mxu0 0.0
      %1102 = vmatpush1.msra.mxu0 %v383
      %1103 = vmatprep.subr.mxu0 0.0
      %1104 = vmatpush1.msra.mxu0 %v376
      %1105 = vmatprep.subr.mxu0 0.0
      %1106 = vmatpush1.msra.mxu0 %v369
      %1107 = vmatprep.subr.mxu0 0.0
      %1108 = vmatpush1.msra.mxu0 %v362
      %1109 = vmatprep.subr.mxu0 0.0
      %1110 = vmatpush1.msra.mxu0 %v355
      %1111 = vmatprep.subr.mxu0 0.0
      %1112 = vmatpush1.msra.mxu0 %v348
      %1113 = vmatprep.subr.mxu0 0.0
      %1114 = vmatpush1.msra.mxu0 %v341
      %1115 = vmatprep.subr.mxu0 0.0
      %1116 = vmatpush1.msra.mxu0 %v334
      %1117 = vmatprep.subr.mxu0 0.0
      %1118 = vmatpush1.msra.mxu0 %v327
      %1119 = vmatprep.subr.mxu0 0.0
      %1120 = vmatpush2.msra.mxu0 0.0
      %1121 = vmatprep.subr.mxu0 0.0
      %1122 = vmatpush2.msra.mxu0 0.0
      %1123 = vmatprep.subr.mxu0 0.0
      %1124 = vmatpush2.msra.mxu0 0.0
      %1125 = vmatprep.subr.mxu0 0.0
      %1126 = vmatpush2.msra.mxu0 0.0
      %1127 = vmatprep.subr.mxu0 0.0
      %1128 = vmatpush2.msra.mxu0 0.0
      %1129 = vmatprep.subr.mxu0 0.0
      %1130 = vmatpush2.msra.mxu0 0.0
      %1131 = vmatprep.subr.mxu0 0.0
      %1132 = vmatpush2.msra.mxu0 0.0
      %1133 = vmatprep.subr.mxu0 0.0
      %1134 = vmatpush2.msra.mxu0 0.0
      %1135 = vmatprep.subr.mxu0 0.0
      %1136 = vmatpush2.msra.mxu0 0.0
      %1137 = vmatprep.subr.mxu0 0.0
      %1138 = vmatpush2.msra.mxu0 0.0
      %1139 = vmatprep.subr.mxu0 0.0
      %1140 = vmatpush2.msra.mxu0 0.0
      %1141 = vmatprep.subr.mxu0 0.0
      %1142 = vmatpush2.msra.mxu0 0.0
      %1143 = vmatprep.subr.mxu0 0.0
      %1144 = vmatpush2.msra.mxu0 0.0
      %1145 = vmatprep.subr.mxu0 0.0
      %1146 = vmatpush2.msra.mxu0 %v566
      %1147 = vmatprep.subr.mxu0 0.0
      %1148 = vmatpush2.msra.mxu0 %v446
      %1149 = vmatprep.subr.mxu0 0.0
      %1150 = vmatpush2.msra.mxu0 %v439
      %1151 = vmatprep.mubr.f32.mxu0 %v493
      %1152 = vmatmul.mubr.f32.gmra.mxu0 %v285
      %v1153 = vpop.f32.mrf.mxu0
      %v1154 = vadd.f32 %v483, %v1153
      %v1155 = vpop.f32.mrf.mxu0
      %1156 = vmatprep.mubr.f32.mxu0 %v496
      %1157 = vmatmul.mubr.f32.gmra.mxu0 %v287
      %v1158 = vpop.f32.mrf.mxu0
      %v1159 = vadd.f32 %v483, %v1158
      %v1160 = vpop.f32.mrf.mxu0
      %1161 = vmatprep.mubr.f32.mxu0 %v499
      %1162 = vmatmul.mubr.f32.gmra.mxu0 %v289
      %v1163 = vpop.f32.mrf.mxu0
      %v1164 = vadd.f32 %v483, %v1163
      %v1165 = vpop.f32.mrf.mxu0
      %1166 = vmatprep.mubr.f32.mxu0 %v502
      %1167 = vmatmul.mubr.f32.gmra.mxu0 %v291
      %v1168 = vpop.f32.mrf.mxu0
      %v1169 = vadd.f32 %v483, %v1168
      %v1170 = vpop.f32.mrf.mxu0
      %1171 = vmatprep.mubr.f32.mxu0 %v505
      %1172 = vmatmul.mubr.f32.gmra.mxu0 %v293
      %v1173 = vpop.f32.mrf.mxu0
      %v1174 = vadd.f32 %v483, %v1173
      %v1175 = vpop.f32.mrf.mxu0
      %1176 = vmatprep.mubr.f32.mxu0 %v508
      %1177 = vmatmul.mubr.f32.gmra.mxu0 %v295
      %v1178 = vpop.f32.mrf.mxu0
      %v1179 = vadd.f32 %v483, %v1178
      %v1180 = vpop.f32.mrf.mxu0
      %1181 = vmatprep.mubr.f32.mxu0 %v511
      %1182 = vmatmul.mubr.f32.gmra.mxu0 %v297
      %v1183 = vpop.f32.mrf.mxu0
      %v1184 = vadd.f32 %v483, %v1183
      %v1185 = vpop.f32.mrf.mxu0
      %1186 = vmatprep.mubr.f32.mxu0 %v514
      %1187 = vmatmul.mubr.f32.gmra.mxu0 %v299
      %v1188 = vpop.f32.mrf.mxu0
      %v1189 = vadd.f32 %v483, %v1188
      %v1190 = vpop.f32.mrf.mxu0
      %1191 = vmatprep.mubr.f32.mxu0 %v517
      %1192 = vmatmul.mubr.f32.gmra.mxu0 %v301
      %v1193 = vpop.f32.mrf.mxu0
      %v1194 = vadd.f32 %v483, %v1193
      %v1195 = vpop.f32.mrf.mxu0
      %1196 = vmatprep.mubr.f32.mxu0 %v520
      %1197 = vmatmul.mubr.f32.gmra.mxu0 %v303
      %v1198 = vpop.f32.mrf.mxu0
      %v1199 = vadd.f32 %v483, %v1198
      %v1200 = vpop.f32.mrf.mxu0
      %1201 = vmatprep.mubr.f32.mxu0 %v523
      %1202 = vmatmul.mubr.f32.gmra.mxu0 %v305
      %v1203 = vpop.f32.mrf.mxu0
      %v1204 = vadd.f32 %v483, %v1203
      %v1205 = vpop.f32.mrf.mxu0
      %1206 = vmatprep.mubr.f32.mxu0 %v526
      %1207 = vmatmul.mubr.f32.gmra.mxu0 %v307
      %v1208 = vpop.f32.mrf.mxu0
      %v1209 = vadd.f32 %v483, %v1208
      %v1210 = vpop.f32.mrf.mxu0
      %1211 = vmatprep.mubr.f32.mxu0 %v529
      %1212 = vmatmul.mubr.f32.gmra.mxu0 %v309
      %v1213 = vpop.f32.mrf.mxu0
      %v1214 = vadd.f32 %v483, %v1213
      %v1215 = vpop.f32.mrf.mxu0
      %1216 = vmatprep.mubr.f32.mxu0 %v532
      %1217 = vmatmul.mubr.f32.gmra.mxu0 %v311
      %v1218 = vpop.f32.mrf.mxu0
      %v1219 = vadd.f32 %v483, %v1218
      %v1220 = vpop.f32.mrf.mxu0
      %1221 = vmatprep.mubr.f32.mxu0 %v535
      %1222 = vmatmul.mubr.f32.gmra.mxu0 %v313
      %v1223 = vpop.f32.mrf.mxu0
      %v1224 = vadd.f32 %v483, %v1223
      %v1225 = vpop.f32.mrf.mxu0
      %1226 = vmatprep.mubr.f32.mxu0 %v538
      %1227 = vmatmul.mubr.f32.gmra.mxu0 %v315
      %v1228 = vpop.f32.mrf.mxu0
      %v1229 = vadd.f32 %v483, %v1228
      %v1230 = vpop.f32.mrf.mxu0
      %1231 = vmatprep.mubr.f32.mxu0 %v541
      %1232 = vmatmul.mubr.f32.gmra.mxu0 %v317
      %v1233 = vpop.f32.mrf.mxu0
      %v1234 = vadd.f32 %v483, %v1233
      %v1235 = vpop.f32.mrf.mxu0
      %1236 = vmatprep.mubr.f32.mxu0 %v544
      %1237 = vmatmul.mubr.f32.gmra.mxu0 %v319
      %v1238 = vpop.f32.mrf.mxu0
      %v1239 = vadd.f32 %v483, %v1238
      %v1240 = vpop.f32.mrf.mxu0
      %1241 = vdwg.mxu0
      %v1242 = vmax.f32 %v635, 0.0
      %v1243 = vmax.f32 %v637, 0.0
      %v1244 = vmax.f32 %v808, 0.0
      %v1245 = vmax.f32 %v810, 0.0
      %v1246 = vmax.f32 %v981, 0.0
      %v1247 = vmax.f32 %v983, 0.0
      %v1248 = vmax.f32 %v1154, 0.0
      %v1249 = vmax.f32 %v641, 0.0
      %v1250 = vmax.f32 %v643, 0.0
      %v1251 = vmax.f32 %v814, 0.0
      %v1252 = vmax.f32 %v816, 0.0
      %v1253 = vmax.f32 %v987, 0.0
      %v1254 = vmax.f32 %v989, 0.0
      %v1255 = vmax.f32 %v1159, 0.0
      %v1256 = vmax.f32 %v647, 0.0
      %v1257 = vmax.f32 %v649, 0.0
      %v1258 = vmax.f32 %v820, 0.0
      %v1259 = vmax.f32 %v822, 0.0
      %v1260 = vmax.f32 %v993, 0.0
      %v1261 = vmax.f32 %v995, 0.0
      %v1262 = vmax.f32 %v1164, 0.0
      %v1263 = vmax.f32 %v653, 0.0
      %v1264 = vmax.f32 %v655, 0.0
      %v1265 = vmax.f32 %v826, 0.0
      %v1266 = vmax.f32 %v828, 0.0
      %v1267 = vmax.f32 %v999, 0.0
      %v1268 = vmax.f32 %v1001, 0.0
      %v1269 = vmax.f32 %v1169, 0.0
      %v1270 = vmax.f32 %v659, 0.0
      %v1271 = vmax.f32 %v661, 0.0
      %v1272 = vmax.f32 %v832, 0.0
      %v1273 = vmax.f32 %v834, 0.0
      %v1274 = vmax.f32 %v1005, 0.0
      %v1275 = vmax.f32 %v1007, 0.0
      %v1276 = vmax.f32 %v1174, 0.0
      %v1277 = vmax.f32 %v665, 0.0
      %v1278 = vmax.f32 %v667, 0.0
      %v1279 = vmax.f32 %v838, 0.0
      %v1280 = vmax.f32 %v840, 0.0
      %v1281 = vmax.f32 %v1011, 0.0
      %v1282 = vmax.f32 %v1013, 0.0
      %v1283 = vmax.f32 %v1179, 0.0
      %v1284 = vmax.f32 %v671, 0.0
      %v1285 = vmax.f32 %v673, 0.0
      %v1286 = vmax.f32 %v844, 0.0
      %v1287 = vmax.f32 %v846, 0.0
      %v1288 = vmax.f32 %v1017, 0.0
      %v1289 = vmax.f32 %v1019, 0.0
      %v1290 = vmax.f32 %v1184, 0.0
      %v1291 = vmax.f32 %v677, 0.0
      %v1292 = vmax.f32 %v679, 0.0
      %v1293 = vmax.f32 %v850, 0.0
      %v1294 = vmax.f32 %v852, 0.0
      %v1295 = vmax.f32 %v1023, 0.0
      %v1296 = vmax.f32 %v1025, 0.0
      %v1297 = vmax.f32 %v1189, 0.0
      %v1298 = vmax.f32 %v683, 0.0
      %v1299 = vmax.f32 %v685, 0.0
      %v1300 = vmax.f32 %v856, 0.0
      %v1301 = vmax.f32 %v858, 0.0
      %v1302 = vmax.f32 %v1029, 0.0
      %v1303 = vmax.f32 %v1031, 0.0
      %v1304 = vmax.f32 %v1194, 0.0
      %v1305 = vmax.f32 %v689, 0.0
      %v1306 = vmax.f32 %v691, 0.0
      %v1307 = vmax.f32 %v862, 0.0
      %v1308 = vmax.f32 %v864, 0.0
      %v1309 = vmax.f32 %v1035, 0.0
      %v1310 = vmax.f32 %v1037, 0.0
      %v1311 = vmax.f32 %v1199, 0.0
      %v1312 = vmax.f32 %v695, 0.0
      %v1313 = vmax.f32 %v697, 0.0
      %v1314 = vmax.f32 %v868, 0.0
      %v1315 = vmax.f32 %v870, 0.0
      %v1316 = vmax.f32 %v1041, 0.0
      %v1317 = vmax.f32 %v1043, 0.0
      %v1318 = vmax.f32 %v1204, 0.0
      %v1319 = vmax.f32 %v701, 0.0
      %v1320 = vmax.f32 %v703, 0.0
      %v1321 = vmax.f32 %v874, 0.0
      %v1322 = vmax.f32 %v876, 0.0
      %v1323 = vmax.f32 %v1047, 0.0
      %v1324 = vmax.f32 %v1049, 0.0
      %v1325 = vmax.f32 %v1209, 0.0
      %v1326 = vmax.f32 %v707, 0.0
      %v1327 = vmax.f32 %v709, 0.0
      %v1328 = vmax.f32 %v880, 0.0
      %v1329 = vmax.f32 %v882, 0.0
      %v1330 = vmax.f32 %v1053, 0.0
      %v1331 = vmax.f32 %v1055, 0.0
      %v1332 = vmax.f32 %v1214, 0.0
      %v1333 = vmax.f32 %v713, 0.0
      %v1334 = vmax.f32 %v715, 0.0
      %v1335 = vmax.f32 %v886, 0.0
      %v1336 = vmax.f32 %v888, 0.0
      %v1337 = vmax.f32 %v1059, 0.0
      %v1338 = vmax.f32 %v1061, 0.0
      %v1339 = vmax.f32 %v1219, 0.0
      %v1340 = vmax.f32 %v719, 0.0
      %v1341 = vmax.f32 %v721, 0.0
      %v1342 = vmax.f32 %v892, 0.0
      %v1343 = vmax.f32 %v894, 0.0
      %v1344 = vmax.f32 %v1065, 0.0
      %v1345 = vmax.f32 %v1067, 0.0
      %v1346 = vmax.f32 %v1224, 0.0
      %v1347 = vmax.f32 %v725, 0.0
      %v1348 = vmax.f32 %v727, 0.0
      %v1349 = vmax.f32 %v898, 0.0
      %v1350 = vmax.f32 %v900, 0.0
      %v1351 = vmax.f32 %v1071, 0.0
      %v1352 = vmax.f32 %v1073, 0.0
      %v1353 = vmax.f32 %v1229, 0.0
      %v1354 = vmax.f32 %v731, 0.0
      %v1355 = vmax.f32 %v733, 0.0
      %v1356 = vmax.f32 %v904, 0.0
      %v1357 = vmax.f32 %v906, 0.0
      %v1358 = vmax.f32 %v1077, 0.0
      %v1359 = vmax.f32 %v1079, 0.0
      %v1360 = vmax.f32 %v1234, 0.0
      %v1361 = vmax.f32 %v737, 0.0
      %v1362 = vmax.f32 %v739, 0.0
      %v1363 = vmax.f32 %v910, 0.0
      %v1364 = vmax.f32 %v912, 0.0
      %v1365 = vmax.f32 %v1083, 0.0
      %v1366 = vmax.f32 %v1085, 0.0
      %v1367 = vmax.f32 %v1239, 0.0
      %v1368 = vld [vmem:[%s3] sm:$0xff]
      %v1369 = vld [vmem:[%s3 + $0x8] sm:$0xff]
      %v1370 = vld [vmem:[%s3 + $0x10] sm:$0xff]
      %v1371 = vld [vmem:[%s3 + $0x18] sm:$0xff]
      %v1372 = vld [vmem:[%s3 + $0x20] sm:$0xff]
      %v1373 = vld [vmem:[%s3 + $0x28] sm:$0xff]
      %v1374 = vld [vmem:[%s3 + $0x30] sm:$0xff]
      %v1375 = vld [vmem:[%s3 + $0x38] sm:$0xff]
      %v1376 = vld [vmem:[%s3 + $0x40] sm:$0xff]
      %v1377 = vld [vmem:[%s3 + $0x48] sm:$0xff]
      %v1378 = vld [vmem:[%s3 + $0x50] sm:$0xff]
      %v1379 = vld [vmem:[%s3 + $0x58] sm:$0xff]
      %v1380 = vld [vmem:[%s3 + $0x60] sm:$0xff]
      %v1381 = vld [vmem:[%s3 + $0x68] sm:$0xff]
      %v1382 = vld [vmem:[%s3 + $0x70] sm:$0xff]
      %v1383 = vld [vmem:[%s3 + $0x78] sm:$0xff]
      %v1384 = vld [vmem:[%s3 + $0x80] sm:$0xff]
      %v1385 = vld [vmem:[%s3 + $0x88] sm:$0xff]
      %v1386 = vld [vmem:[%s3 + $0x90] sm:$0xff]
      %v1387 = vld [vmem:[%s3 + $0x98] sm:$0xff]
      %v1388 = vld [vmem:[%s3 + $0xa0] sm:$0xff]
      %v1389 = vld [vmem:[%s3 + $0xa8] sm:$0xff]
      %v1390 = vld [vmem:[%s3 + $0xb0] sm:$0xff]
      %v1391 = vld [vmem:[%s3 + $0xb8] sm:$0xff]
      %v1392 = vld [vmem:[%s3 + $0xc0] sm:$0xff]
      %v1393 = vld [vmem:[%s3 + $0xc8] sm:$0xff]
      %v1394 = vld [vmem:[%s3 + $0xd0] sm:$0xff]
      %v1395 = vld [vmem:[%s3 + $0xd8] sm:$0xff]
      %v1396 = vld [vmem:[%s3 + $0xe0] sm:$0xff]
      %v1397 = vld [vmem:[%s3 + $0xe8] sm:$0xff]
      %v1398 = vld [vmem:[%s3 + $0xf0] sm:$0xff]
      %v1399 = vld [vmem:[%s3 + $0xf8] sm:$0xff]
      %v1400 = vld [vmem:[%s3 + $0x100] sm:$0xff]
      %v1401 = vld [vmem:[%s3 + $0x108] sm:$0xff]
      %v1402 = vld [vmem:[%s3 + $0x110] sm:$0xff]
      %v1403 = vld [vmem:[%s3 + $0x118] sm:$0xff]
      %v1404 = vld [vmem:[%s3 + $0x120] sm:$0xff]
      %v1405 = vld [vmem:[%s3 + $0x128] sm:$0xff]
      %v1406 = vld [vmem:[%s3 + $0x130] sm:$0xff]
      %v1407 = vld [vmem:[%s3 + $0x138] sm:$0xff]
      %v1408 = vld [vmem:[%s3 + $0x140] sm:$0xff]
      %v1409 = vld [vmem:[%s3 + $0x148] sm:$0xff]
      %v1410 = vld [vmem:[%s3 + $0x150] sm:$0xff]
      %v1411 = vld [vmem:[%s3 + $0x158] sm:$0xff]
      %v1412 = vld [vmem:[%s3 + $0x160] sm:$0xff]
      %v1413 = vld [vmem:[%s3 + $0x168] sm:$0xff]
      %v1414 = vld [vmem:[%s3 + $0x170] sm:$0xff]
      %v1415 = vld [vmem:[%s3 + $0x178] sm:$0xff]
      %v1416 = vld [vmem:[%s3 + $0x180] sm:$0xff]
      %v1417 = vld [vmem:[%s3 + $0x188] sm:$0xff]
      %v1418 = vld [vmem:[%s3 + $0x190] sm:$0xff]
      %v1419 = vld [vmem:[%s3 + $0x198] sm:$0xff]
      %v1420 = vld [vmem:[%s3 + $0x1a0] sm:$0xff]
      %v1421 = vld [vmem:[%s3 + $0x1a8] sm:$0xff]
      %v1422 = vld [vmem:[%s3 + $0x1b0] sm:$0xff]
      %v1423 = vld [vmem:[%s3 + $0x1b8] sm:$0xff]
      %v1424 = vld [vmem:[%s3 + $0x1c0] sm:$0xff]
      %v1425 = vld [vmem:[%s3 + $0x1c8] sm:$0xff]
      %v1426 = vld [vmem:[%s3 + $0x1d0] sm:$0xff]
      %v1427 = vld [vmem:[%s3 + $0x1d8] sm:$0xff]
      %v1428 = vld [vmem:[%s3 + $0x1e0] sm:$0xff]
      %v1429 = vld [vmem:[%s3 + $0x1e8] sm:$0xff]
      %v1430 = vld [vmem:[%s3 + $0x1f0] sm:$0xff]
      %v1431 = vld [vmem:[%s3 + $0x1f8] sm:$0xff]
      %v1432 = vld [vmem:[%s3 + $0x200] sm:$0xff]
      %v1433 = vld [vmem:[%s3 + $0x208] sm:$0xff]
      %v1434 = vld [vmem:[%s3 + $0x210] sm:$0xff]
      %v1435 = vld [vmem:[%s3 + $0x218] sm:$0xff]
      %v1436 = vld [vmem:[%s3 + $0x220] sm:$0xff]
      %v1437 = vld [vmem:[%s3 + $0x228] sm:$0xff]
      %v1438 = vld [vmem:[%s3 + $0x230] sm:$0xff]
      %v1439 = vld [vmem:[%s3 + $0x238] sm:$0xff]
      %v1440 = vld [vmem:[%s3 + $0x240] sm:$0xff]
      %v1441 = vld [vmem:[%s3 + $0x248] sm:$0xff]
      %v1442 = vld [vmem:[%s3 + $0x250] sm:$0xff]
      %v1443 = vld [vmem:[%s3 + $0x258] sm:$0xff]
      %v1444 = vld [vmem:[%s3 + $0x260] sm:$0xff]
      %v1445 = vld [vmem:[%s3 + $0x268] sm:$0xff]
      %v1446 = vld [vmem:[%s3 + $0x270] sm:$0xff]
      %v1447 = vld [vmem:[%s3 + $0x278] sm:$0xff]
      %v1448 = vld [vmem:[%s3 + $0x280] sm:$0xff]
      %v1449 = vld [vmem:[%s3 + $0x288] sm:$0xff]
      %v1450 = vld [vmem:[%s3 + $0x290] sm:$0xff]
      %v1451 = vld [vmem:[%s3 + $0x298] sm:$0xff]
      %v1452 = vld [vmem:[%s3 + $0x2a0] sm:$0xff]
      %v1453 = vld [vmem:[%s3 + $0x2a8] sm:$0xff]
      %v1454 = vld [vmem:[%s3 + $0x2b0] sm:$0xff]
      %v1455 = vld [vmem:[%s3 + $0x2b8] sm:$0xff]
      %v1456 = vld [vmem:[%s3 + $0x2c0] sm:$0xff]
      %v1457 = vld [vmem:[%s3 + $0x2c8] sm:$0xff]
      %v1458 = vld [vmem:[%s3 + $0x2d0] sm:$0xff]
      %v1459 = vld [vmem:[%s3 + $0x2d8] sm:$0xff]
      %v1460 = vld [vmem:[%s3 + $0x2e0] sm:$0xff]
      %v1461 = vld [vmem:[%s3 + $0x2e8] sm:$0xff]
      %v1462 = vld [vmem:[%s3 + $0x2f0] sm:$0xff]
      %v1463 = vld [vmem:[%s3 + $0x2f8] sm:$0xff]
      %v1464 = vld [vmem:[%s3 + $0x300] sm:$0xff]
      %v1465 = vld [vmem:[%s3 + $0x308] sm:$0xff]
      %v1466 = vld [vmem:[%s3 + $0x310] sm:$0xff]
      %v1467 = vld [vmem:[%s3 + $0x318] sm:$0xff]
      %v1468 = vld [vmem:[%s4] sm:$0x1]
      %v1470 = vlaneseq
      %v1471 = vshrl.u32 %v1470, 7
      %v1472 = vsub.s32 0, %v1471
      %v1473 = vrot.slane %v1468, %v1472
      %vm1475 = vcmask 261120
      %v1477 = vsel %vm1475, %v1248, 0
      %v1480 = vsel %vm1475, %v1255, 0
      %v1483 = vsel %vm1475, %v1262, 0
      %v1486 = vsel %vm1475, %v1269, 0
      %v1489 = vsel %vm1475, %v1276, 0
      %v1492 = vsel %vm1475, %v1283, 0
      %v1495 = vsel %vm1475, %v1290, 0
      %v1498 = vsel %vm1475, %v1297, 0
      %v1501 = vsel %vm1475, %v1304, 0
      %v1504 = vsel %vm1475, %v1311, 0
      %v1507 = vsel %vm1475, %v1318, 0
      %v1510 = vsel %vm1475, %v1325, 0
      %v1513 = vsel %vm1475, %v1332, 0
      %v1516 = vsel %vm1475, %v1339, 0
      %v1519 = vsel %vm1475, %v1346, 0
      %v1522 = vsel %vm1475, %v1353, 0
      %v1525 = vsel %vm1475, %v1360, 0
      %v1528 = vsel %vm1475, %v1367, 0
      %1530 = vmatprep.subr.mxu0 0.0
      %1531 = vmatpush1.msra.mxu0 %v1383
      %1532 = vmatprep.subr.mxu0 0.0
      %1533 = vmatpush1.msra.mxu0 %v1382
      %1534 = vmatprep.subr.mxu0 0.0
      %1535 = vmatpush1.msra.mxu0 %v1381
      %1536 = vmatprep.subr.mxu0 0.0
      %1537 = vmatpush1.msra.mxu0 %v1380
      %1538 = vmatprep.subr.mxu0 0.0
      %1539 = vmatpush1.msra.mxu0 %v1379
      %1540 = vmatprep.subr.mxu0 0.0
      %1541 = vmatpush1.msra.mxu0 %v1378
      %1542 = vmatprep.subr.mxu0 0.0
      %1543 = vmatpush1.msra.mxu0 %v1377
      %1544 = vmatprep.subr.mxu0 0.0
      %1545 = vmatpush1.msra.mxu0 %v1376
      %1546 = vmatprep.subr.mxu0 0.0
      %1547 = vmatpush1.msra.mxu0 %v1375
      %1548 = vmatprep.subr.mxu0 0.0
      %1549 = vmatpush1.msra.mxu0 %v1374
      %1550 = vmatprep.subr.mxu0 0.0
      %1551 = vmatpush1.msra.mxu0 %v1373
      %1552 = vmatprep.subr.mxu0 0.0
      %1553 = vmatpush1.msra.mxu0 %v1372
      %1554 = vmatprep.subr.mxu0 0.0
      %1555 = vmatpush1.msra.mxu0 %v1371
      %1556 = vmatprep.subr.mxu0 0.0
      %1557 = vmatpush1.msra.mxu0 %v1370
      %1558 = vmatprep.subr.mxu0 0.0
      %1559 = vmatpush1.msra.mxu0 %v1369
      %1560 = vmatprep.subr.mxu0 0.0
      %1561 = vmatpush1.msra.mxu0 %v1368
      %1562 = vmatprep.subr.mxu0 0.0
      %1563 = vmatpush2.msra.mxu0 %v1399
      %1564 = vmatprep.subr.mxu0 0.0
      %1565 = vmatpush2.msra.mxu0 %v1398
      %1566 = vmatprep.subr.mxu0 0.0
      %1567 = vmatpush2.msra.mxu0 %v1397
      %1568 = vmatprep.subr.mxu0 0.0
      %1569 = vmatpush2.msra.mxu0 %v1396
      %1570 = vmatprep.subr.mxu0 0.0
      %1571 = vmatpush2.msra.mxu0 %v1395
      %1572 = vmatprep.subr.mxu0 0.0
      %1573 = vmatpush2.msra.mxu0 %v1394
      %1574 = vmatprep.subr.mxu0 0.0
      %1575 = vmatpush2.msra.mxu0 %v1393
      %1576 = vmatprep.subr.mxu0 0.0
      %1577 = vmatpush2.msra.mxu0 %v1392
      %1578 = vmatprep.subr.mxu0 0.0
      %1579 = vmatpush2.msra.mxu0 %v1391
      %1580 = vmatprep.subr.mxu0 0.0
      %1581 = vmatpush2.msra.mxu0 %v1390
      %1582 = vmatprep.subr.mxu0 0.0
      %1583 = vmatpush2.msra.mxu0 %v1389
      %1584 = vmatprep.subr.mxu0 0.0
      %1585 = vmatpush2.msra.mxu0 %v1388
      %1586 = vmatprep.subr.mxu0 0.0
      %1587 = vmatpush2.msra.mxu0 %v1387
      %1588 = vmatprep.subr.mxu0 0.0
      %1589 = vmatpush2.msra.mxu0 %v1386
      %1590 = vmatprep.subr.mxu0 0.0
      %1591 = vmatpush2.msra.mxu0 %v1385
      %1592 = vmatprep.subr.mxu0 0.0
      %1593 = vmatpush2.msra.mxu0 %v1384
      %1594 = vmatprep.mubr.f32.mxu0 %v1243
      %1595 = vmatmul.mubr.f32.gmra.mxu0 %v1242
      %v1596 = vpop.f32.mrf.mxu0
      %v1597 = vadd.f32 %v1473, %v1596
      %v1598 = vpop.f32.mrf.mxu0
      %1599 = vmatprep.mubr.f32.mxu0 %v1250
      %1600 = vmatmul.mubr.f32.gmra.mxu0 %v1249
      %v1601 = vpop.f32.mrf.mxu0
      %v1602 = vadd.f32 %v1473, %v1601
      %v1603 = vpop.f32.mrf.mxu0
      %1604 = vmatprep.mubr.f32.mxu0 %v1257
      %1605 = vmatmul.mubr.f32.gmra.mxu0 %v1256
      %v1606 = vpop.f32.mrf.mxu0
      %v1607 = vadd.f32 %v1473, %v1606
      %v1608 = vpop.f32.mrf.mxu0
      %1609 = vmatprep.mubr.f32.mxu0 %v1264
      %1610 = vmatmul.mubr.f32.gmra.mxu0 %v1263
      %v1611 = vpop.f32.mrf.mxu0
      %v1612 = vadd.f32 %v1473, %v1611
      %v1613 = vpop.f32.mrf.mxu0
      %1614 = vmatprep.mubr.f32.mxu0 %v1271
      %1615 = vmatmul.mubr.f32.gmra.mxu0 %v1270
      %v1616 = vpop.f32.mrf.mxu0
      %v1617 = vadd.f32 %v1473, %v1616
      %v1618 = vpop.f32.mrf.mxu0
      %1619 = vmatprep.mubr.f32.mxu0 %v1278
      %1620 = vmatmul.mubr.f32.gmra.mxu0 %v1277
      %v1621 = vpop.f32.mrf.mxu0
      %v1622 = vadd.f32 %v1473, %v1621
      %v1623 = vpop.f32.mrf.mxu0
      %1624 = vmatprep.mubr.f32.mxu0 %v1285
      %1625 = vmatmul.mubr.f32.gmra.mxu0 %v1284
      %v1626 = vpop.f32.mrf.mxu0
      %v1627 = vadd.f32 %v1473, %v1626
      %v1628 = vpop.f32.mrf.mxu0
      %1629 = vmatprep.mubr.f32.mxu0 %v1292
      %1630 = vmatmul.mubr.f32.gmra.mxu0 %v1291
      %v1631 = vpop.f32.mrf.mxu0
      %v1632 = vadd.f32 %v1473, %v1631
      %v1633 = vpop.f32.mrf.mxu0
      %1634 = vmatprep.mubr.f32.mxu0 %v1299
      %1635 = vmatmul.mubr.f32.gmra.mxu0 %v1298
      %v1636 = vpop.f32.mrf.mxu0
      %v1637 = vadd.f32 %v1473, %v1636
      %v1638 = vpop.f32.mrf.mxu0
      %1639 = vmatprep.mubr.f32.mxu0 %v1306
      %1640 = vmatmul.mubr.f32.gmra.mxu0 %v1305
      %v1641 = vpop.f32.mrf.mxu0
      %v1642 = vadd.f32 %v1473, %v1641
      %v1643 = vpop.f32.mrf.mxu0
      %1644 = vmatprep.mubr.f32.mxu0 %v1313
      %1645 = vmatmul.mubr.f32.gmra.mxu0 %v1312
      %v1646 = vpop.f32.mrf.mxu0
      %v1647 = vadd.f32 %v1473, %v1646
      %v1648 = vpop.f32.mrf.mxu0
      %1649 = vmatprep.mubr.f32.mxu0 %v1320
      %1650 = vmatmul.mubr.f32.gmra.mxu0 %v1319
      %v1651 = vpop.f32.mrf.mxu0
      %v1652 = vadd.f32 %v1473, %v1651
      %v1653 = vpop.f32.mrf.mxu0
      %1654 = vmatprep.mubr.f32.mxu0 %v1327
      %1655 = vmatmul.mubr.f32.gmra.mxu0 %v1326
      %v1656 = vpop.f32.mrf.mxu0
      %v1657 = vadd.f32 %v1473, %v1656
      %v1658 = vpop.f32.mrf.mxu0
      %1659 = vmatprep.mubr.f32.mxu0 %v1334
      %1660 = vmatmul.mubr.f32.gmra.mxu0 %v1333
      %v1661 = vpop.f32.mrf.mxu0
      %v1662 = vadd.f32 %v1473, %v1661
      %v1663 = vpop.f32.mrf.mxu0
      %1664 = vmatprep.mubr.f32.mxu0 %v1341
      %1665 = vmatmul.mubr.f32.gmra.mxu0 %v1340
      %v1666 = vpop.f32.mrf.mxu0
      %v1667 = vadd.f32 %v1473, %v1666
      %v1668 = vpop.f32.mrf.mxu0
      %1669 = vmatprep.mubr.f32.mxu0 %v1348
      %1670 = vmatmul.mubr.f32.gmra.mxu0 %v1347
      %v1671 = vpop.f32.mrf.mxu0
      %v1672 = vadd.f32 %v1473, %v1671
      %v1673 = vpop.f32.mrf.mxu0
      %1674 = vmatprep.mubr.f32.mxu0 %v1355
      %1675 = vmatmul.mubr.f32.gmra.mxu0 %v1354
      %v1676 = vpop.f32.mrf.mxu0
      %v1677 = vadd.f32 %v1473, %v1676
      %v1678 = vpop.f32.mrf.mxu0
      %1679 = vmatprep.mubr.f32.mxu0 %v1362
      %1680 = vmatmul.mubr.f32.gmra.mxu0 %v1361
      %v1681 = vpop.f32.mrf.mxu0
      %v1682 = vadd.f32 %v1473, %v1681
      %v1683 = vpop.f32.mrf.mxu0
      %1684 = vdwg.mxu0
      %1685 = vmatprep.subr.mxu0 0.0
      %1686 = vmatpush1.msra.mxu0 %v1415
      %1687 = vmatprep.subr.mxu0 0.0
      %1688 = vmatpush1.msra.mxu0 %v1414
      %1689 = vmatprep.subr.mxu0 0.0
      %1690 = vmatpush1.msra.mxu0 %v1413
      %1691 = vmatprep.subr.mxu0 0.0
      %1692 = vmatpush1.msra.mxu0 %v1412
      %1693 = vmatprep.subr.mxu0 0.0
      %1694 = vmatpush1.msra.mxu0 %v1411
      %1695 = vmatprep.subr.mxu0 0.0
      %1696 = vmatpush1.msra.mxu0 %v1410
      %1697 = vmatprep.subr.mxu0 0.0
      %1698 = vmatpush1.msra.mxu0 %v1409
      %1699 = vmatprep.subr.mxu0 0.0
      %1700 = vmatpush1.msra.mxu0 %v1408
      %1701 = vmatprep.subr.mxu0 0.0
      %1702 = vmatpush1.msra.mxu0 %v1407
      %1703 = vmatprep.subr.mxu0 0.0
      %1704 = vmatpush1.msra.mxu0 %v1406
      %1705 = vmatprep.subr.mxu0 0.0
      %1706 = vmatpush1.msra.mxu0 %v1405
      %1707 = vmatprep.subr.mxu0 0.0
      %1708 = vmatpush1.msra.mxu0 %v1404
      %1709 = vmatprep.subr.mxu0 0.0
      %1710 = vmatpush1.msra.mxu0 %v1403
      %1711 = vmatprep.subr.mxu0 0.0
      %1712 = vmatpush1.msra.mxu0 %v1402
      %1713 = vmatprep.subr.mxu0 0.0
      %1714 = vmatpush1.msra.mxu0 %v1401
      %1715 = vmatprep.subr.mxu0 0.0
      %1716 = vmatpush1.msra.mxu0 %v1400
      %1717 = vmatprep.subr.mxu0 0.0
      %1718 = vmatpush2.msra.mxu0 %v1431
      %1719 = vmatprep.subr.mxu0 0.0
      %1720 = vmatpush2.msra.mxu0 %v1430
      %1721 = vmatprep.subr.mxu0 0.0
      %1722 = vmatpush2.msra.mxu0 %v1429
      %1723 = vmatprep.subr.mxu0 0.0
      %1724 = vmatpush2.msra.mxu0 %v1428
      %1725 = vmatprep.subr.mxu0 0.0
      %1726 = vmatpush2.msra.mxu0 %v1427
      %1727 = vmatprep.subr.mxu0 0.0
      %1728 = vmatpush2.msra.mxu0 %v1426
      %1729 = vmatprep.subr.mxu0 0.0
      %1730 = vmatpush2.msra.mxu0 %v1425
      %1731 = vmatprep.subr.mxu0 0.0
      %1732 = vmatpush2.msra.mxu0 %v1424
      %1733 = vmatprep.subr.mxu0 0.0
      %1734 = vmatpush2.msra.mxu0 %v1423
      %1735 = vmatprep.subr.mxu0 0.0
      %1736 = vmatpush2.msra.mxu0 %v1422
      %1737 = vmatprep.subr.mxu0 0.0
      %1738 = vmatpush2.msra.mxu0 %v1421
      %1739 = vmatprep.subr.mxu0 0.0
      %1740 = vmatpush2.msra.mxu0 %v1420
      %1741 = vmatprep.subr.mxu0 0.0
      %1742 = vmatpush2.msra.mxu0 %v1419
      %1743 = vmatprep.subr.mxu0 0.0
      %1744 = vmatpush2.msra.mxu0 %v1418
      %1745 = vmatprep.subr.mxu0 0.0
      %1746 = vmatpush2.msra.mxu0 %v1417
      %1747 = vmatprep.subr.mxu0 0.0
      %1748 = vmatpush2.msra.mxu0 %v1416
      %1749 = vmatprep.mubr.f32.mxu0 %v1245
      %1750 = vmatmul.mubr.f32.gmra.mxu0 %v1244
      %v1751 = vpop.f32.mrf.mxu0
      %v1752 = vadd.f32 %v1597, %v1751
      %v1753 = vpop.f32.mrf.mxu0
      %1754 = vmatprep.mubr.f32.mxu0 %v1252
      %1755 = vmatmul.mubr.f32.gmra.mxu0 %v1251
      %v1756 = vpop.f32.mrf.mxu0
      %v1757 = vadd.f32 %v1602, %v1756
      %v1758 = vpop.f32.mrf.mxu0
      %1759 = vmatprep.mubr.f32.mxu0 %v1259
      %1760 = vmatmul.mubr.f32.gmra.mxu0 %v1258
      %v1761 = vpop.f32.mrf.mxu0
      %v1762 = vadd.f32 %v1607, %v1761
      %v1763 = vpop.f32.mrf.mxu0
      %1764 = vmatprep.mubr.f32.mxu0 %v1266
      %1765 = vmatmul.mubr.f32.gmra.mxu0 %v1265
      %v1766 = vpop.f32.mrf.mxu0
      %v1767 = vadd.f32 %v1612, %v1766
      %v1768 = vpop.f32.mrf.mxu0
      %1769 = vmatprep.mubr.f32.mxu0 %v1273
      %1770 = vmatmul.mubr.f32.gmra.mxu0 %v1272
      %v1771 = vpop.f32.mrf.mxu0
      %v1772 = vadd.f32 %v1617, %v1771
      %v1773 = vpop.f32.mrf.mxu0
      %1774 = vmatprep.mubr.f32.mxu0 %v1280
      %1775 = vmatmul.mubr.f32.gmra.mxu0 %v1279
      %v1776 = vpop.f32.mrf.mxu0
      %v1777 = vadd.f32 %v1622, %v1776
      %v1778 = vpop.f32.mrf.mxu0
      %1779 = vmatprep.mubr.f32.mxu0 %v1287
      %1780 = vmatmul.mubr.f32.gmra.mxu0 %v1286
      %v1781 = vpop.f32.mrf.mxu0
      %v1782 = vadd.f32 %v1627, %v1781
      %v1783 = vpop.f32.mrf.mxu0
      %1784 = vmatprep.mubr.f32.mxu0 %v1294
      %1785 = vmatmul.mubr.f32.gmra.mxu0 %v1293
      %v1786 = vpop.f32.mrf.mxu0
      %v1787 = vadd.f32 %v1632, %v1786
      %v1788 = vpop.f32.mrf.mxu0
      %1789 = vmatprep.mubr.f32.mxu0 %v1301
      %1790 = vmatmul.mubr.f32.gmra.mxu0 %v1300
      %v1791 = vpop.f32.mrf.mxu0
      %v1792 = vadd.f32 %v1637, %v1791
      %v1793 = vpop.f32.mrf.mxu0
      %1794 = vmatprep.mubr.f32.mxu0 %v1308
      %1795 = vmatmul.mubr.f32.gmra.mxu0 %v1307
      %v1796 = vpop.f32.mrf.mxu0
      %v1797 = vadd.f32 %v1642, %v1796
      %v1798 = vpop.f32.mrf.mxu0
      %1799 = vmatprep.mubr.f32.mxu0 %v1315
      %1800 = vmatmul.mubr.f32.gmra.mxu0 %v1314
      %v1801 = vpop.f32.mrf.mxu0
      %v1802 = vadd.f32 %v1647, %v1801
      %v1803 = vpop.f32.mrf.mxu0
      %1804 = vmatprep.mubr.f32.mxu0 %v1322
      %1805 = vmatmul.mubr.f32.gmra.mxu0 %v1321
      %v1806 = vpop.f32.mrf.mxu0
      %v1807 = vadd.f32 %v1652, %v1806
      %v1808 = vpop.f32.mrf.mxu0
      %1809 = vmatprep.mubr.f32.mxu0 %v1329
      %1810 = vmatmul.mubr.f32.gmra.mxu0 %v1328
      %v1811 = vpop.f32.mrf.mxu0
      %v1812 = vadd.f32 %v1657, %v1811
      %v1813 = vpop.f32.mrf.mxu0
      %1814 = vmatprep.mubr.f32.mxu0 %v1336
      %1815 = vmatmul.mubr.f32.gmra.mxu0 %v1335
      %v1816 = vpop.f32.mrf.mxu0
      %v1817 = vadd.f32 %v1662, %v1816
      %v1818 = vpop.f32.mrf.mxu0
      %1819 = vmatprep.mubr.f32.mxu0 %v1343
      %1820 = vmatmul.mubr.f32.gmra.mxu0 %v1342
      %v1821 = vpop.f32.mrf.mxu0
      %v1822 = vadd.f32 %v1667, %v1821
      %v1823 = vpop.f32.mrf.mxu0
      %1824 = vmatprep.mubr.f32.mxu0 %v1350
      %1825 = vmatmul.mubr.f32.gmra.mxu0 %v1349
      %v1826 = vpop.f32.mrf.mxu0
      %v1827 = vadd.f32 %v1672, %v1826
      %v1828 = vpop.f32.mrf.mxu0
      %1829 = vmatprep.mubr.f32.mxu0 %v1357
      %1830 = vmatmul.mubr.f32.gmra.mxu0 %v1356
      %v1831 = vpop.f32.mrf.mxu0
      %v1832 = vadd.f32 %v1677, %v1831
      %v1833 = vpop.f32.mrf.mxu0
      %1834 = vmatprep.mubr.f32.mxu0 %v1364
      %1835 = vmatmul.mubr.f32.gmra.mxu0 %v1363
      %v1836 = vpop.f32.mrf.mxu0
      %v1837 = vadd.f32 %v1682, %v1836
      %v1838 = vpop.f32.mrf.mxu0
      %1839 = vdwg.mxu0
      %1840 = vmatprep.subr.mxu0 0.0
      %1841 = vmatpush1.msra.mxu0 %v1447
      %1842 = vmatprep.subr.mxu0 0.0
      %1843 = vmatpush1.msra.mxu0 %v1446
      %1844 = vmatprep.subr.mxu0 0.0
      %1845 = vmatpush1.msra.mxu0 %v1445
      %1846 = vmatprep.subr.mxu0 0.0
      %1847 = vmatpush1.msra.mxu0 %v1444
      %1848 = vmatprep.subr.mxu0 0.0
      %1849 = vmatpush1.msra.mxu0 %v1443
      %1850 = vmatprep.subr.mxu0 0.0
      %1851 = vmatpush1.msra.mxu0 %v1442
      %1852 = vmatprep.subr.mxu0 0.0
      %1853 = vmatpush1.msra.mxu0 %v1441
      %1854 = vmatprep.subr.mxu0 0.0
      %1855 = vmatpush1.msra.mxu0 %v1440
      %1856 = vmatprep.subr.mxu0 0.0
      %1857 = vmatpush1.msra.mxu0 %v1439
      %1858 = vmatprep.subr.mxu0 0.0
      %1859 = vmatpush1.msra.mxu0 %v1438
      %1860 = vmatprep.subr.mxu0 0.0
      %1861 = vmatpush1.msra.mxu0 %v1437
      %1862 = vmatprep.subr.mxu0 0.0
      %1863 = vmatpush1.msra.mxu0 %v1436
      %1864 = vmatprep.subr.mxu0 0.0
      %1865 = vmatpush1.msra.mxu0 %v1435
      %1866 = vmatprep.subr.mxu0 0.0
      %1867 = vmatpush1.msra.mxu0 %v1434
      %1868 = vmatprep.subr.mxu0 0.0
      %1869 = vmatpush1.msra.mxu0 %v1433
      %1870 = vmatprep.subr.mxu0 0.0
      %1871 = vmatpush1.msra.mxu0 %v1432
      %1872 = vmatprep.subr.mxu0 0.0
      %1873 = vmatpush2.msra.mxu0 %v1463
      %1874 = vmatprep.subr.mxu0 0.0
      %1875 = vmatpush2.msra.mxu0 %v1462
      %1876 = vmatprep.subr.mxu0 0.0
      %1877 = vmatpush2.msra.mxu0 %v1461
      %1878 = vmatprep.subr.mxu0 0.0
      %1879 = vmatpush2.msra.mxu0 %v1460
      %1880 = vmatprep.subr.mxu0 0.0
      %1881 = vmatpush2.msra.mxu0 %v1459
      %1882 = vmatprep.subr.mxu0 0.0
      %1883 = vmatpush2.msra.mxu0 %v1458
      %1884 = vmatprep.subr.mxu0 0.0
      %1885 = vmatpush2.msra.mxu0 %v1457
      %1886 = vmatprep.subr.mxu0 0.0
      %1887 = vmatpush2.msra.mxu0 %v1456
      %1888 = vmatprep.subr.mxu0 0.0
      %1889 = vmatpush2.msra.mxu0 %v1455
      %1890 = vmatprep.subr.mxu0 0.0
      %1891 = vmatpush2.msra.mxu0 %v1454
      %1892 = vmatprep.subr.mxu0 0.0
      %1893 = vmatpush2.msra.mxu0 %v1453
      %1894 = vmatprep.subr.mxu0 0.0
      %1895 = vmatpush2.msra.mxu0 %v1452
      %1896 = vmatprep.subr.mxu0 0.0
      %1897 = vmatpush2.msra.mxu0 %v1451
      %1898 = vmatprep.subr.mxu0 0.0
      %1899 = vmatpush2.msra.mxu0 %v1450
      %1900 = vmatprep.subr.mxu0 0.0
      %1901 = vmatpush2.msra.mxu0 %v1449
      %1902 = vmatprep.subr.mxu0 0.0
      %1903 = vmatpush2.msra.mxu0 %v1448
      %1904 = vmatprep.mubr.f32.mxu0 %v1247
      %1905 = vmatmul.mubr.f32.gmra.mxu0 %v1246
      %v1906 = vpop.f32.mrf.mxu0
      %v1907 = vadd.f32 %v1752, %v1906
      %v1908 = vpop.f32.mrf.mxu0
      %1909 = vmatprep.mubr.f32.mxu0 %v1254
      %1910 = vmatmul.mubr.f32.gmra.mxu0 %v1253
      %v1911 = vpop.f32.mrf.mxu0
      %v1912 = vadd.f32 %v1757, %v1911
      %v1913 = vpop.f32.mrf.mxu0
      %1914 = vmatprep.mubr.f32.mxu0 %v1261
      %1915 = vmatmul.mubr.f32.gmra.mxu0 %v1260
      %v1916 = vpop.f32.mrf.mxu0
      %v1917 = vadd.f32 %v1762, %v1916
      %v1918 = vpop.f32.mrf.mxu0
      %1919 = vmatprep.mubr.f32.mxu0 %v1268
      %1920 = vmatmul.mubr.f32.gmra.mxu0 %v1267
      %v1921 = vpop.f32.mrf.mxu0
      %v1922 = vadd.f32 %v1767, %v1921
      %v1923 = vpop.f32.mrf.mxu0
      %1924 = vmatprep.mubr.f32.mxu0 %v1275
      %1925 = vmatmul.mubr.f32.gmra.mxu0 %v1274
      %v1926 = vpop.f32.mrf.mxu0
      %v1927 = vadd.f32 %v1772, %v1926
      %v1928 = vpop.f32.mrf.mxu0
      %1929 = vmatprep.mubr.f32.mxu0 %v1282
      %1930 = vmatmul.mubr.f32.gmra.mxu0 %v1281
      %v1931 = vpop.f32.mrf.mxu0
      %v1932 = vadd.f32 %v1777, %v1931
      %v1933 = vpop.f32.mrf.mxu0
      %1934 = vmatprep.mubr.f32.mxu0 %v1289
      %1935 = vmatmul.mubr.f32.gmra.mxu0 %v1288
      %v1936 = vpop.f32.mrf.mxu0
      %v1937 = vadd.f32 %v1782, %v1936
      %v1938 = vpop.f32.mrf.mxu0
      %1939 = vmatprep.mubr.f32.mxu0 %v1296
      %1940 = vmatmul.mubr.f32.gmra.mxu0 %v1295
      %v1941 = vpop.f32.mrf.mxu0
      %v1942 = vadd.f32 %v1787, %v1941
      %v1943 = vpop.f32.mrf.mxu0
      %1944 = vmatprep.mubr.f32.mxu0 %v1303
      %1945 = vmatmul.mubr.f32.gmra.mxu0 %v1302
      %v1946 = vpop.f32.mrf.mxu0
      %v1947 = vadd.f32 %v1792, %v1946
      %v1948 = vpop.f32.mrf.mxu0
      %1949 = vmatprep.mubr.f32.mxu0 %v1310
      %1950 = vmatmul.mubr.f32.gmra.mxu0 %v1309
      %v1951 = vpop.f32.mrf.mxu0
      %v1952 = vadd.f32 %v1797, %v1951
      %v1953 = vpop.f32.mrf.mxu0
      %1954 = vmatprep.mubr.f32.mxu0 %v1317
      %1955 = vmatmul.mubr.f32.gmra.mxu0 %v1316
      %v1956 = vpop.f32.mrf.mxu0
      %v1957 = vadd.f32 %v1802, %v1956
      %v1958 = vpop.f32.mrf.mxu0
      %1959 = vmatprep.mubr.f32.mxu0 %v1324
      %1960 = vmatmul.mubr.f32.gmra.mxu0 %v1323
      %v1961 = vpop.f32.mrf.mxu0
      %v1962 = vadd.f32 %v1807, %v1961
      %v1963 = vpop.f32.mrf.mxu0
      %1964 = vmatprep.mubr.f32.mxu0 %v1331
      %1965 = vmatmul.mubr.f32.gmra.mxu0 %v1330
      %v1966 = vpop.f32.mrf.mxu0
      %v1967 = vadd.f32 %v1812, %v1966
      %v1968 = vpop.f32.mrf.mxu0
      %1969 = vmatprep.mubr.f32.mxu0 %v1338
      %1970 = vmatmul.mubr.f32.gmra.mxu0 %v1337
      %v1971 = vpop.f32.mrf.mxu0
      %v1972 = vadd.f32 %v1817, %v1971
      %v1973 = vpop.f32.mrf.mxu0
      %1974 = vmatprep.mubr.f32.mxu0 %v1345
      %1975 = vmatmul.mubr.f32.gmra.mxu0 %v1344
      %v1976 = vpop.f32.mrf.mxu0
      %v1977 = vadd.f32 %v1822, %v1976
      %v1978 = vpop.f32.mrf.mxu0
      %1979 = vmatprep.mubr.f32.mxu0 %v1352
      %1980 = vmatmul.mubr.f32.gmra.mxu0 %v1351
      %v1981 = vpop.f32.mrf.mxu0
      %v1982 = vadd.f32 %v1827, %v1981
      %v1983 = vpop.f32.mrf.mxu0
      %1984 = vmatprep.mubr.f32.mxu0 %v1359
      %1985 = vmatmul.mubr.f32.gmra.mxu0 %v1358
      %v1986 = vpop.f32.mrf.mxu0
      %v1987 = vadd.f32 %v1832, %v1986
      %v1988 = vpop.f32.mrf.mxu0
      %1989 = vmatprep.mubr.f32.mxu0 %v1366
      %1990 = vmatmul.mubr.f32.gmra.mxu0 %v1365
      %v1991 = vpop.f32.mrf.mxu0
      %v1992 = vadd.f32 %v1837, %v1991
      %v1993 = vpop.f32.mrf.mxu0
      %1994 = vdwg.mxu0
      %1995 = vmatprep.subr.mxu0 0.0
      %1996 = vmatpush1.msra.mxu0 0.0
      %1997 = vmatprep.subr.mxu0 0.0
      %1998 = vmatpush1.msra.mxu0 0.0
      %1999 = vmatprep.subr.mxu0 0.0
      %2000 = vmatpush1.msra.mxu0 0.0
      %2001 = vmatprep.subr.mxu0 0.0
      %2002 = vmatpush1.msra.mxu0 0.0
      %2003 = vmatprep.subr.mxu0 0.0
      %2004 = vmatpush1.msra.mxu0 0.0
      %2005 = vmatprep.subr.mxu0 0.0
      %2006 = vmatpush1.msra.mxu0 0.0
      %2007 = vmatprep.subr.mxu0 0.0
      %2008 = vmatpush1.msra.mxu0 0.0
      %2009 = vmatprep.subr.mxu0 0.0
      %2010 = vmatpush1.msra.mxu0 0.0
      %2011 = vmatprep.subr.mxu0 0.0
      %2012 = vmatpush1.msra.mxu0 0.0
      %2013 = vmatprep.subr.mxu0 0.0
      %2014 = vmatpush1.msra.mxu0 0.0
      %2015 = vmatprep.subr.mxu0 0.0
      %2016 = vmatpush1.msra.mxu0 0.0
      %2017 = vmatprep.subr.mxu0 0.0
      %2018 = vmatpush1.msra.mxu0 0.0
      %2019 = vmatprep.subr.mxu0 0.0
      %2020 = vmatpush1.msra.mxu0 %v1467
      %2021 = vmatprep.subr.mxu0 0.0
      %2022 = vmatpush1.msra.mxu0 %v1466
      %2023 = vmatprep.subr.mxu0 0.0
      %2024 = vmatpush1.msra.mxu0 %v1465
      %2025 = vmatprep.subr.mxu0 0.0
      %2026 = vmatpush1.msra.mxu0 %v1464
      %2027 = vmatprep.subr.mxu0 0.0
      %2028 = vmatpush2.msra.mxu0 0.0
      %2029 = vmatprep.subr.mxu0 0.0
      %2030 = vmatpush2.msra.mxu0 0.0
      %2031 = vmatprep.subr.mxu0 0.0
      %2032 = vmatpush2.msra.mxu0 0.0
      %2033 = vmatprep.subr.mxu0 0.0
      %2034 = vmatpush2.msra.mxu0 0.0
      %2035 = vmatprep.subr.mxu0 0.0
      %2036 = vmatpush2.msra.mxu0 0.0
      %2037 = vmatprep.subr.mxu0 0.0
      %2038 = vmatpush2.msra.mxu0 0.0
      %2039 = vmatprep.subr.mxu0 0.0
      %2040 = vmatpush2.msra.mxu0 0.0
      %2041 = vmatprep.subr.mxu0 0.0
      %2042 = vmatpush2.msra.mxu0 0.0
      %2043 = vmatprep.subr.mxu0 0.0
      %2044 = vmatpush2.msra.mxu0 0.0
      %2045 = vmatprep.subr.mxu0 0.0
      %2046 = vmatpush2.msra.mxu0 0.0
      %2047 = vmatprep.subr.mxu0 0.0
      %2048 = vmatpush2.msra.mxu0 0.0
      %2049 = vmatprep.subr.mxu0 0.0
      %2050 = vmatpush2.msra.mxu0 0.0
      %2051 = vmatprep.subr.mxu0 0.0
      %2052 = vmatpush2.msra.mxu0 0.0
      %2053 = vmatprep.subr.mxu0 0.0
      %2054 = vmatpush2.msra.mxu0 0.0
      %2055 = vmatprep.subr.mxu0 0.0
      %2056 = vmatpush2.msra.mxu0 0.0
      %2057 = vmatprep.subr.mxu0 0.0
      %2058 = vmatpush2.msra.mxu0 0.0
      %2059 = vmatprep.mubr.f32.mxu0 0.0
      %2060 = vmatmul.mubr.f32.gmra.mxu0 %v1477
      %v2061 = vpop.f32.mrf.mxu0
      %v2062 = vadd.f32 %v1907, %v2061
      %v2063 = vpop.f32.mrf.mxu0
      %2064 = vmatprep.mubr.f32.mxu0 0.0
      %2065 = vmatmul.mubr.f32.gmra.mxu0 %v1480
      %v2066 = vpop.f32.mrf.mxu0
      %v2067 = vadd.f32 %v1912, %v2066
      %v2068 = vpop.f32.mrf.mxu0
      %2069 = vmatprep.mubr.f32.mxu0 0.0
      %2070 = vmatmul.mubr.f32.gmra.mxu0 %v1483
      %v2071 = vpop.f32.mrf.mxu0
      %v2072 = vadd.f32 %v1917, %v2071
      %v2073 = vpop.f32.mrf.mxu0
      %2074 = vmatprep.mubr.f32.mxu0 0.0
      %2075 = vmatmul.mubr.f32.gmra.mxu0 %v1486
      %v2076 = vpop.f32.mrf.mxu0
      %v2077 = vadd.f32 %v1922, %v2076
      %v2078 = vpop.f32.mrf.mxu0
      %2079 = vmatprep.mubr.f32.mxu0 0.0
      %2080 = vmatmul.mubr.f32.gmra.mxu0 %v1489
      %v2081 = vpop.f32.mrf.mxu0
      %v2082 = vadd.f32 %v1927, %v2081
      %v2083 = vpop.f32.mrf.mxu0
      %2084 = vmatprep.mubr.f32.mxu0 0.0
      %2085 = vmatmul.mubr.f32.gmra.mxu0 %v1492
      %v2086 = vpop.f32.mrf.mxu0
      %v2087 = vadd.f32 %v1932, %v2086
      %v2088 = vpop.f32.mrf.mxu0
      %2089 = vmatprep.mubr.f32.mxu0 0.0
      %2090 = vmatmul.mubr.f32.gmra.mxu0 %v1495
      %v2091 = vpop.f32.mrf.mxu0
      %v2092 = vadd.f32 %v1937, %v2091
      %v2093 = vpop.f32.mrf.mxu0
      %2094 = vmatprep.mubr.f32.mxu0 0.0
      %2095 = vmatmul.mubr.f32.gmra.mxu0 %v1498
      %v2096 = vpop.f32.mrf.mxu0
      %v2097 = vadd.f32 %v1942, %v2096
      %v2098 = vpop.f32.mrf.mxu0
      %2099 = vmatprep.mubr.f32.mxu0 0.0
      %2100 = vmatmul.mubr.f32.gmra.mxu0 %v1501
      %v2101 = vpop.f32.mrf.mxu0
      %v2102 = vadd.f32 %v1947, %v2101
      %v2103 = vpop.f32.mrf.mxu0
      %2104 = vmatprep.mubr.f32.mxu0 0.0
      %2105 = vmatmul.mubr.f32.gmra.mxu0 %v1504
      %v2106 = vpop.f32.mrf.mxu0
      %v2107 = vadd.f32 %v1952, %v2106
      %v2108 = vpop.f32.mrf.mxu0
      %2109 = vmatprep.mubr.f32.mxu0 0.0
      %2110 = vmatmul.mubr.f32.gmra.mxu0 %v1507
      %v2111 = vpop.f32.mrf.mxu0
      %v2112 = vadd.f32 %v1957, %v2111
      %v2113 = vpop.f32.mrf.mxu0
      %2114 = vmatprep.mubr.f32.mxu0 0.0
      %2115 = vmatmul.mubr.f32.gmra.mxu0 %v1510
      %v2116 = vpop.f32.mrf.mxu0
      %v2117 = vadd.f32 %v1962, %v2116
      %v2118 = vpop.f32.mrf.mxu0
      %2119 = vmatprep.mubr.f32.mxu0 0.0
      %2120 = vmatmul.mubr.f32.gmra.mxu0 %v1513
      %v2121 = vpop.f32.mrf.mxu0
      %v2122 = vadd.f32 %v1967, %v2121
      %v2123 = vpop.f32.mrf.mxu0
      %2124 = vmatprep.mubr.f32.mxu0 0.0
      %2125 = vmatmul.mubr.f32.gmra.mxu0 %v1516
      %v2126 = vpop.f32.mrf.mxu0
      %v2127 = vadd.f32 %v1972, %v2126
      %v2128 = vpop.f32.mrf.mxu0
      %2129 = vmatprep.mubr.f32.mxu0 0.0
      %2130 = vmatmul.mubr.f32.gmra.mxu0 %v1519
      %v2131 = vpop.f32.mrf.mxu0
      %v2132 = vadd.f32 %v1977, %v2131
      %v2133 = vpop.f32.mrf.mxu0
      %2134 = vmatprep.mubr.f32.mxu0 0.0
      %2135 = vmatmul.mubr.f32.gmra.mxu0 %v1522
      %v2136 = vpop.f32.mrf.mxu0
      %v2137 = vadd.f32 %v1982, %v2136
      %v2138 = vpop.f32.mrf.mxu0
      %2139 = vmatprep.mubr.f32.mxu0 0.0
      %2140 = vmatmul.mubr.f32.gmra.mxu0 %v1525
      %v2141 = vpop.f32.mrf.mxu0
      %v2142 = vadd.f32 %v1987, %v2141
      %v2143 = vpop.f32.mrf.mxu0
      %2144 = vmatprep.mubr.f32.mxu0 0.0
      %2145 = vmatmul.mubr.f32.gmra.mxu0 %v1528
      %v2146 = vpop.f32.mrf.mxu0
      %v2147 = vadd.f32 %v1992, %v2146
      %v2148 = vpop.f32.mrf.mxu0
      %2149 = vdwg.mxu0
      %v2150 = vmax.f32 %v2062, 0.0
      %v2151 = vmax.f32 %v2067, 0.0
      %v2152 = vmax.f32 %v2072, 0.0
      %v2153 = vmax.f32 %v2077, 0.0
      %v2154 = vmax.f32 %v2082, 0.0
      %v2155 = vmax.f32 %v2087, 0.0
      %v2156 = vmax.f32 %v2092, 0.0
      %v2157 = vmax.f32 %v2097, 0.0
      %v2158 = vmax.f32 %v2102, 0.0
      %v2159 = vmax.f32 %v2107, 0.0
      %v2160 = vmax.f32 %v2112, 0.0
      %v2161 = vmax.f32 %v2117, 0.0
      %v2162 = vmax.f32 %v2122, 0.0
      %v2163 = vmax.f32 %v2127, 0.0
      %v2164 = vmax.f32 %v2132, 0.0
      %v2165 = vmax.f32 %v2137, 0.0
      %v2166 = vmax.f32 %v2142, 0.0
      %v2167 = vmax.f32 %v2147, 0.0
      %2168 = vst [vmem:[#allocation2] sm:$0xff] %v2150
      %2169 = vst [vmem:[#allocation2 + $0x8] sm:$0xff] %v2151
      %2170 = vst [vmem:[#allocation2 + $0x10] sm:$0xff] %v2152
      %2171 = vst [vmem:[#allocation2 + $0x18] sm:$0xff] %v2153
      %2172 = vst [vmem:[#allocation2 + $0x20] sm:$0xff] %v2154
      %2173 = vst [vmem:[#allocation2 + $0x28] sm:$0xff] %v2155
      %2174 = vst [vmem:[#allocation2 + $0x30] sm:$0xff] %v2156
      %2175 = vst [vmem:[#allocation2 + $0x38] sm:$0xff] %v2157
      %2176 = vst [vmem:[#allocation2 + $0x40] sm:$0xff] %v2158
      %2177 = vst [vmem:[#allocation2 + $0x48] sm:$0xff] %v2159
      %2178 = vst [vmem:[#allocation2 + $0x50] sm:$0xff] %v2160
      %2179 = vst [vmem:[#allocation2 + $0x58] sm:$0xff] %v2161
      %2180 = vst [vmem:[#allocation2 + $0x60] sm:$0xff] %v2162
      %2181 = vst [vmem:[#allocation2 + $0x68] sm:$0xff] %v2163
      %2182 = vst [vmem:[#allocation2 + $0x70] sm:$0xff] %v2164
      %2183 = vst [vmem:[#allocation2 + $0x78] sm:$0xff] %v2165
      %2184 = vst [vmem:[#allocation2 + $0x80] sm:$0xff] %v2166
      %2185 = vst [vmem:[#allocation2 + $0x88] sm:$0xff] %v2167
      %v2186 = vld [vmem:[#allocation2] sm:$0xff]
      %v2187 = vld [vmem:[#allocation2 + $0x8] sm:$0xff]
      %v2188 = vld [vmem:[%s5] sm:$0xff]
      %v2189 = vld [vmem:[%s5 + $0x8] sm:$0xff]
      %v2190 = vld [vmem:[%s5 + $0x10] sm:$0xff]
      %v2191 = vld [vmem:[%s5 + $0x18] sm:$0xff]
      %v2192 = vld [vmem:[%s5 + $0x20] sm:$0xff]
      %v2193 = vld [vmem:[%s5 + $0x28] sm:$0xff]
      %v2194 = vld [vmem:[%s5 + $0x30] sm:$0xff]
      %v2195 = vld [vmem:[%s5 + $0x38] sm:$0xff]
      %v2196 = vld [vmem:[%s5 + $0x40] sm:$0xff]
      %v2197 = vld [vmem:[%s5 + $0x48] sm:$0xff]
      %v2198 = vld [vmem:[%s5 + $0x50] sm:$0xff]
      %v2199 = vld [vmem:[%s5 + $0x58] sm:$0xff]
      %v2200 = vld [vmem:[%s5 + $0x60] sm:$0xff]
      %v2201 = vld [vmem:[%s5 + $0x68] sm:$0xff]
      %v2202 = vld [vmem:[%s5 + $0x70] sm:$0xff]
      %v2203 = vld [vmem:[%s5 + $0x78] sm:$0xff]
      %v2204 = vld [vmem:[#allocation2 + $0x10] sm:$0xff]
      %v2205 = vld [vmem:[#allocation2 + $0x18] sm:$0xff]
      %s2206 = scalar_lea.vmem %s5, 128
      %v2207 = vld [vmem:[%s2206] sm:$0xff]
      %v2208 = vld [vmem:[%s2206 + $0x8] sm:$0xff]
      %v2209 = vld [vmem:[%s2206 + $0x10] sm:$0xff]
      %v2210 = vld [vmem:[%s2206 + $0x18] sm:$0xff]
      %v2211 = vld [vmem:[%s2206 + $0x20] sm:$0xff]
      %v2212 = vld [vmem:[%s2206 + $0x28] sm:$0xff]
      %v2213 = vld [vmem:[%s2206 + $0x30] sm:$0xff]
      %v2214 = vld [vmem:[%s2206 + $0x38] sm:$0xff]
      %v2215 = vld [vmem:[%s2206 + $0x40] sm:$0xff]
      %v2216 = vld [vmem:[%s2206 + $0x48] sm:$0xff]
      %v2217 = vld [vmem:[%s2206 + $0x50] sm:$0xff]
      %v2218 = vld [vmem:[%s2206 + $0x58] sm:$0xff]
      %v2219 = vld [vmem:[%s2206 + $0x60] sm:$0xff]
      %v2220 = vld [vmem:[%s2206 + $0x68] sm:$0xff]
      %v2221 = vld [vmem:[%s2206 + $0x70] sm:$0xff]
      %v2222 = vld [vmem:[%s2206 + $0x78] sm:$0xff]
      %2223 = vmatprep.subr.mxu0 0.0
      %2224 = vmatpush1.msra.mxu0 %v2222
      %2225 = vmatprep.subr.mxu0 0.0
      %2226 = vmatpush1.msra.mxu0 %v2221
      %2227 = vmatprep.subr.mxu0 0.0
      %2228 = vmatpush1.msra.mxu0 %v2220
      %2229 = vmatprep.subr.mxu0 0.0
      %2230 = vmatpush1.msra.mxu0 %v2219
      %2231 = vmatprep.subr.mxu0 0.0
      %2232 = vmatpush1.msra.mxu0 %v2218
      %2233 = vmatprep.subr.mxu0 0.0
      %2234 = vmatpush1.msra.mxu0 %v2217
      %2235 = vmatprep.subr.mxu0 0.0
      %2236 = vmatpush1.msra.mxu0 %v2216
      %2237 = vmatprep.subr.mxu0 0.0
      %2238 = vmatpush1.msra.mxu0 %v2215
      %2239 = vmatprep.subr.mxu0 0.0
      %2240 = vmatpush1.msra.mxu0 %v2214
      %2241 = vmatprep.subr.mxu0 0.0
      %2242 = vmatpush1.msra.mxu0 %v2213
      %2243 = vmatprep.subr.mxu0 0.0
      %2244 = vmatpush1.msra.mxu0 %v2212
      %2245 = vmatprep.subr.mxu0 0.0
      %2246 = vmatpush1.msra.mxu0 %v2211
      %2247 = vmatprep.subr.mxu0 0.0
      %2248 = vmatpush1.msra.mxu0 %v2210
      %2249 = vmatprep.subr.mxu0 0.0
      %2250 = vmatpush1.msra.mxu0 %v2209
      %2251 = vmatprep.subr.mxu0 0.0
      %2252 = vmatpush1.msra.mxu0 %v2208
      %2253 = vmatprep.subr.mxu0 0.0
      %2254 = vmatpush1.msra.mxu0 %v2207
      %2255 = vmatprep.subr.mxu0 0.0
      %2256 = vmatpush2.msra.mxu0 0.0
      %2257 = vmatprep.subr.mxu0 0.0
      %2258 = vmatpush2.msra.mxu0 0.0
      %2259 = vmatprep.subr.mxu0 0.0
      %2260 = vmatpush2.msra.mxu0 0.0
      %2261 = vmatprep.subr.mxu0 0.0
      %2262 = vmatpush2.msra.mxu0 0.0
      %2263 = vmatprep.subr.mxu0 0.0
      %2264 = vmatpush2.msra.mxu0 0.0
      %2265 = vmatprep.subr.mxu0 0.0
      %2266 = vmatpush2.msra.mxu0 0.0
      %2267 = vmatprep.subr.mxu0 0.0
      %2268 = vmatpush2.msra.mxu0 0.0
      %2269 = vmatprep.subr.mxu0 0.0
      %2270 = vmatpush2.msra.mxu0 0.0
      %2271 = vmatprep.subr.mxu0 0.0
      %2272 = vmatpush2.msra.mxu0 0.0
      %2273 = vmatprep.subr.mxu0 0.0
      %2274 = vmatpush2.msra.mxu0 0.0
      %2275 = vmatprep.subr.mxu0 0.0
      %2276 = vmatpush2.msra.mxu0 0.0
      %2277 = vmatprep.subr.mxu0 0.0
      %2278 = vmatpush2.msra.mxu0 0.0
      %2279 = vmatprep.subr.mxu0 0.0
      %2280 = vmatpush2.msra.mxu0 0.0
      %2281 = vmatprep.subr.mxu0 0.0
      %2282 = vmatpush2.msra.mxu0 0.0
      %2283 = vmatprep.subr.mxu0 0.0
      %2284 = vmatpush2.msra.mxu0 0.0
      %2285 = vmatprep.subr.mxu0 0.0
      %2286 = vmatpush2.msra.mxu0 0.0
      %2287 = vmatprep.mubr.f32.mxu0 0.0
      %2288 = vmatmul.mubr.f32.gmra.mxu0 %v2204
      %v2289 = vpop.f32.mrf.mxu0
      %v2290 = vadd.f32 0.0, %v2289
      %v2291 = vpop.f32.mrf.mxu0
      %2292 = vmatprep.mubr.f32.mxu0 0.0
      %2293 = vmatmul.mubr.f32.gmra.mxu0 %v2205
      %v2294 = vpop.f32.mrf.mxu0
      %v2295 = vadd.f32 0.0, %v2294
      %v2296 = vpop.f32.mrf.mxu0
      %2297 = vdwg.mxu0
      %2298 = vmatprep.subr.mxu0 0.0
      %2299 = vmatpush1.msra.mxu0 %v2203
      %2300 = vmatprep.subr.mxu0 0.0
      %2301 = vmatpush1.msra.mxu0 %v2202
      %2302 = vmatprep.subr.mxu0 0.0
      %2303 = vmatpush1.msra.mxu0 %v2201
      %2304 = vmatprep.subr.mxu0 0.0
      %2305 = vmatpush1.msra.mxu0 %v2200
      %2306 = vmatprep.subr.mxu0 0.0
      %2307 = vmatpush1.msra.mxu0 %v2199
      %2308 = vmatprep.subr.mxu0 0.0
      %2309 = vmatpush1.msra.mxu0 %v2198
      %2310 = vmatprep.subr.mxu0 0.0
      %2311 = vmatpush1.msra.mxu0 %v2197
      %2312 = vmatprep.subr.mxu0 0.0
      %2313 = vmatpush1.msra.mxu0 %v2196
      %2314 = vmatprep.subr.mxu0 0.0
      %2315 = vmatpush1.msra.mxu0 %v2195
      %2316 = vmatprep.subr.mxu0 0.0
      %2317 = vmatpush1.msra.mxu0 %v2194
      %2318 = vmatprep.subr.mxu0 0.0
      %2319 = vmatpush1.msra.mxu0 %v2193
      %2320 = vmatprep.subr.mxu0 0.0
      %2321 = vmatpush1.msra.mxu0 %v2192
      %2322 = vmatprep.subr.mxu0 0.0
      %2323 = vmatpush1.msra.mxu0 %v2191
      %2324 = vmatprep.subr.mxu0 0.0
      %2325 = vmatpush1.msra.mxu0 %v2190
      %2326 = vmatprep.subr.mxu0 0.0
      %2327 = vmatpush1.msra.mxu0 %v2189
      %2328 = vmatprep.subr.mxu0 0.0
      %2329 = vmatpush1.msra.mxu0 %v2188
      %2330 = vmatprep.subr.mxu0 0.0
      %2331 = vmatpush2.msra.mxu0 0.0
      %2332 = vmatprep.subr.mxu0 0.0
      %2333 = vmatpush2.msra.mxu0 0.0
      %2334 = vmatprep.subr.mxu0 0.0
      %2335 = vmatpush2.msra.mxu0 0.0
      %2336 = vmatprep.subr.mxu0 0.0
      %2337 = vmatpush2.msra.mxu0 0.0
      %2338 = vmatprep.subr.mxu0 0.0
      %2339 = vmatpush2.msra.mxu0 0.0
      %2340 = vmatprep.subr.mxu0 0.0
      %2341 = vmatpush2.msra.mxu0 0.0
      %2342 = vmatprep.subr.mxu0 0.0
      %2343 = vmatpush2.msra.mxu0 0.0
      %2344 = vmatprep.subr.mxu0 0.0
      %2345 = vmatpush2.msra.mxu0 0.0
      %2346 = vmatprep.subr.mxu0 0.0
      %2347 = vmatpush2.msra.mxu0 0.0
      %2348 = vmatprep.subr.mxu0 0.0
      %2349 = vmatpush2.msra.mxu0 0.0
      %2350 = vmatprep.subr.mxu0 0.0
      %2351 = vmatpush2.msra.mxu0 0.0
      %2352 = vmatprep.subr.mxu0 0.0
      %2353 = vmatpush2.msra.mxu0 0.0
      %2354 = vmatprep.subr.mxu0 0.0
      %2355 = vmatpush2.msra.mxu0 0.0
      %2356 = vmatprep.subr.mxu0 0.0
      %2357 = vmatpush2.msra.mxu0 0.0
      %2358 = vmatprep.subr.mxu0 0.0
      %2359 = vmatpush2.msra.mxu0 0.0
      %2360 = vmatprep.subr.mxu0 0.0
      %2361 = vmatpush2.msra.mxu0 0.0
      %2362 = vmatprep.mubr.f32.mxu0 0.0
      %2363 = vmatmul.mubr.f32.gmra.mxu0 %v2186
      %v2364 = vpop.f32.mrf.mxu0
      %v2365 = vadd.f32 %v2290, %v2364
      %v2366 = vpop.f32.mrf.mxu0
      %2367 = vmatprep.mubr.f32.mxu0 0.0
      %2368 = vmatmul.mubr.f32.gmra.mxu0 %v2187
      %v2369 = vpop.f32.mrf.mxu0
      %v2370 = vadd.f32 %v2295, %v2369
      %v2371 = vpop.f32.mrf.mxu0
      %2372 = vdwg.mxu0
      %v2373 = vld [vmem:[#allocation2 + $0x20] sm:$0xff]
      %v2374 = vld [vmem:[#allocation2 + $0x28] sm:$0xff]
      %s2375 = scalar_lea.vmem %s5, 256
      %v2376 = vld [vmem:[%s2375] sm:$0xff]
      %v2377 = vld [vmem:[%s2375 + $0x8] sm:$0xff]
      %v2378 = vld [vmem:[%s2375 + $0x10] sm:$0xff]
      %v2379 = vld [vmem:[%s2375 + $0x18] sm:$0xff]
      %v2380 = vld [vmem:[%s2375 + $0x20] sm:$0xff]
      %v2381 = vld [vmem:[%s2375 + $0x28] sm:$0xff]
      %v2382 = vld [vmem:[%s2375 + $0x30] sm:$0xff]
      %v2383 = vld [vmem:[%s2375 + $0x38] sm:$0xff]
      %v2384 = vld [vmem:[%s2375 + $0x40] sm:$0xff]
      %v2385 = vld [vmem:[%s2375 + $0x48] sm:$0xff]
      %v2386 = vld [vmem:[%s2375 + $0x50] sm:$0xff]
      %v2387 = vld [vmem:[%s2375 + $0x58] sm:$0xff]
      %v2388 = vld [vmem:[%s2375 + $0x60] sm:$0xff]
      %v2389 = vld [vmem:[%s2375 + $0x68] sm:$0xff]
      %v2390 = vld [vmem:[%s2375 + $0x70] sm:$0xff]
      %v2391 = vld [vmem:[%s2375 + $0x78] sm:$0xff]
      %2392 = vmatprep.subr.mxu0 0.0
      %2393 = vmatpush1.msra.mxu0 %v2391
      %2394 = vmatprep.subr.mxu0 0.0
      %2395 = vmatpush1.msra.mxu0 %v2390
      %2396 = vmatprep.subr.mxu0 0.0
      %2397 = vmatpush1.msra.mxu0 %v2389
      %2398 = vmatprep.subr.mxu0 0.0
      %2399 = vmatpush1.msra.mxu0 %v2388
      %2400 = vmatprep.subr.mxu0 0.0
      %2401 = vmatpush1.msra.mxu0 %v2387
      %2402 = vmatprep.subr.mxu0 0.0
      %2403 = vmatpush1.msra.mxu0 %v2386
      %2404 = vmatprep.subr.mxu0 0.0
      %2405 = vmatpush1.msra.mxu0 %v2385
      %2406 = vmatprep.subr.mxu0 0.0
      %2407 = vmatpush1.msra.mxu0 %v2384
      %2408 = vmatprep.subr.mxu0 0.0
      %2409 = vmatpush1.msra.mxu0 %v2383
      %2410 = vmatprep.subr.mxu0 0.0
      %2411 = vmatpush1.msra.mxu0 %v2382
      %2412 = vmatprep.subr.mxu0 0.0
      %2413 = vmatpush1.msra.mxu0 %v2381
      %2414 = vmatprep.subr.mxu0 0.0
      %2415 = vmatpush1.msra.mxu0 %v2380
      %2416 = vmatprep.subr.mxu0 0.0
      %2417 = vmatpush1.msra.mxu0 %v2379
      %2418 = vmatprep.subr.mxu0 0.0
      %2419 = vmatpush1.msra.mxu0 %v2378
      %2420 = vmatprep.subr.mxu0 0.0
      %2421 = vmatpush1.msra.mxu0 %v2377
      %2422 = vmatprep.subr.mxu0 0.0
      %2423 = vmatpush1.msra.mxu0 %v2376
      %2424 = vmatprep.subr.mxu0 0.0
      %2425 = vmatpush2.msra.mxu0 0.0
      %2426 = vmatprep.subr.mxu0 0.0
      %2427 = vmatpush2.msra.mxu0 0.0
      %2428 = vmatprep.subr.mxu0 0.0
      %2429 = vmatpush2.msra.mxu0 0.0
      %2430 = vmatprep.subr.mxu0 0.0
      %2431 = vmatpush2.msra.mxu0 0.0
      %2432 = vmatprep.subr.mxu0 0.0
      %2433 = vmatpush2.msra.mxu0 0.0
      %2434 = vmatprep.subr.mxu0 0.0
      %2435 = vmatpush2.msra.mxu0 0.0
      %2436 = vmatprep.subr.mxu0 0.0
      %2437 = vmatpush2.msra.mxu0 0.0
      %2438 = vmatprep.subr.mxu0 0.0
      %2439 = vmatpush2.msra.mxu0 0.0
      %2440 = vmatprep.subr.mxu0 0.0
      %2441 = vmatpush2.msra.mxu0 0.0
      %2442 = vmatprep.subr.mxu0 0.0
      %2443 = vmatpush2.msra.mxu0 0.0
      %2444 = vmatprep.subr.mxu0 0.0
      %2445 = vmatpush2.msra.mxu0 0.0
      %2446 = vmatprep.subr.mxu0 0.0
      %2447 = vmatpush2.msra.mxu0 0.0
      %2448 = vmatprep.subr.mxu0 0.0
      %2449 = vmatpush2.msra.mxu0 0.0
      %2450 = vmatprep.subr.mxu0 0.0
      %2451 = vmatpush2.msra.mxu0 0.0
      %2452 = vmatprep.subr.mxu0 0.0
      %2453 = vmatpush2.msra.mxu0 0.0
      %2454 = vmatprep.subr.mxu0 0.0
      %2455 = vmatpush2.msra.mxu0 0.0
      %2456 = vmatprep.mubr.f32.mxu0 0.0
      %2457 = vmatmul.mubr.f32.gmra.mxu0 %v2373
      %v2458 = vpop.f32.mrf.mxu0
      %v2459 = vadd.f32 0.0, %v2458
      %v2460 = vpop.f32.mrf.mxu0
      %2461 = vmatprep.mubr.f32.mxu0 0.0
      %2462 = vmatmul.mubr.f32.gmra.mxu0 %v2374
      %v2463 = vpop.f32.mrf.mxu0
      %v2464 = vadd.f32 0.0, %v2463
      %v2465 = vpop.f32.mrf.mxu0
      %2466 = vdwg.mxu0
      %v2467 = vadd.f32 %v2365, %v2459
      %v2468 = vadd.f32 %v2370, %v2464
      %v2469 = vld [vmem:[#allocation2 + $0x30] sm:$0xff]
      %v2470 = vld [vmem:[#allocation2 + $0x38] sm:$0xff]
      %s2471 = scalar_lea.vmem %s5, 384
      %v2472 = vld [vmem:[%s2471] sm:$0xff]
      %v2473 = vld [vmem:[%s2471 + $0x8] sm:$0xff]
      %v2474 = vld [vmem:[%s2471 + $0x10] sm:$0xff]
      %v2475 = vld [vmem:[%s2471 + $0x18] sm:$0xff]
      %v2476 = vld [vmem:[%s2471 + $0x20] sm:$0xff]
      %v2477 = vld [vmem:[%s2471 + $0x28] sm:$0xff]
      %v2478 = vld [vmem:[%s2471 + $0x30] sm:$0xff]
      %v2479 = vld [vmem:[%s2471 + $0x38] sm:$0xff]
      %v2480 = vld [vmem:[%s2471 + $0x40] sm:$0xff]
      %v2481 = vld [vmem:[%s2471 + $0x48] sm:$0xff]
      %v2482 = vld [vmem:[%s2471 + $0x50] sm:$0xff]
      %v2483 = vld [vmem:[%s2471 + $0x58] sm:$0xff]
      %v2484 = vld [vmem:[%s2471 + $0x60] sm:$0xff]
      %v2485 = vld [vmem:[%s2471 + $0x68] sm:$0xff]
      %v2486 = vld [vmem:[%s2471 + $0x70] sm:$0xff]
      %v2487 = vld [vmem:[%s2471 + $0x78] sm:$0xff]
      %2488 = vmatprep.subr.mxu0 0.0
      %2489 = vmatpush1.msra.mxu0 %v2487
      %2490 = vmatprep.subr.mxu0 0.0
      %2491 = vmatpush1.msra.mxu0 %v2486
      %2492 = vmatprep.subr.mxu0 0.0
      %2493 = vmatpush1.msra.mxu0 %v2485
      %2494 = vmatprep.subr.mxu0 0.0
      %2495 = vmatpush1.msra.mxu0 %v2484
      %2496 = vmatprep.subr.mxu0 0.0
      %2497 = vmatpush1.msra.mxu0 %v2483
      %2498 = vmatprep.subr.mxu0 0.0
      %2499 = vmatpush1.msra.mxu0 %v2482
      %2500 = vmatprep.subr.mxu0 0.0
      %2501 = vmatpush1.msra.mxu0 %v2481
      %2502 = vmatprep.subr.mxu0 0.0
      %2503 = vmatpush1.msra.mxu0 %v2480
      %2504 = vmatprep.subr.mxu0 0.0
      %2505 = vmatpush1.msra.mxu0 %v2479
      %2506 = vmatprep.subr.mxu0 0.0
      %2507 = vmatpush1.msra.mxu0 %v2478
      %2508 = vmatprep.subr.mxu0 0.0
      %2509 = vmatpush1.msra.mxu0 %v2477
      %2510 = vmatprep.subr.mxu0 0.0
      %2511 = vmatpush1.msra.mxu0 %v2476
      %2512 = vmatprep.subr.mxu0 0.0
      %2513 = vmatpush1.msra.mxu0 %v2475
      %2514 = vmatprep.subr.mxu0 0.0
      %2515 = vmatpush1.msra.mxu0 %v2474
      %2516 = vmatprep.subr.mxu0 0.0
      %2517 = vmatpush1.msra.mxu0 %v2473
      %2518 = vmatprep.subr.mxu0 0.0
      %2519 = vmatpush1.msra.mxu0 %v2472
      %2520 = vmatprep.subr.mxu0 0.0
      %2521 = vmatpush2.msra.mxu0 0.0
      %2522 = vmatprep.subr.mxu0 0.0
      %2523 = vmatpush2.msra.mxu0 0.0
      %2524 = vmatprep.subr.mxu0 0.0
      %2525 = vmatpush2.msra.mxu0 0.0
      %2526 = vmatprep.subr.mxu0 0.0
      %2527 = vmatpush2.msra.mxu0 0.0
      %2528 = vmatprep.subr.mxu0 0.0
      %2529 = vmatpush2.msra.mxu0 0.0
      %2530 = vmatprep.subr.mxu0 0.0
      %2531 = vmatpush2.msra.mxu0 0.0
      %2532 = vmatprep.subr.mxu0 0.0
      %2533 = vmatpush2.msra.mxu0 0.0
      %2534 = vmatprep.subr.mxu0 0.0
      %2535 = vmatpush2.msra.mxu0 0.0
      %2536 = vmatprep.subr.mxu0 0.0
      %2537 = vmatpush2.msra.mxu0 0.0
      %2538 = vmatprep.subr.mxu0 0.0
      %2539 = vmatpush2.msra.mxu0 0.0
      %2540 = vmatprep.subr.mxu0 0.0
      %2541 = vmatpush2.msra.mxu0 0.0
      %2542 = vmatprep.subr.mxu0 0.0
      %2543 = vmatpush2.msra.mxu0 0.0
      %2544 = vmatprep.subr.mxu0 0.0
      %2545 = vmatpush2.msra.mxu0 0.0
      %2546 = vmatprep.subr.mxu0 0.0
      %2547 = vmatpush2.msra.mxu0 0.0
      %2548 = vmatprep.subr.mxu0 0.0
      %2549 = vmatpush2.msra.mxu0 0.0
      %2550 = vmatprep.subr.mxu0 0.0
      %2551 = vmatpush2.msra.mxu0 0.0
      %2552 = vmatprep.mubr.f32.mxu0 0.0
      %2553 = vmatmul.mubr.f32.gmra.mxu0 %v2469
      %v2554 = vpop.f32.mrf.mxu0
      %v2555 = vadd.f32 0.0, %v2554
      %v2556 = vpop.f32.mrf.mxu0
      %2557 = vmatprep.mubr.f32.mxu0 0.0
      %2558 = vmatmul.mubr.f32.gmra.mxu0 %v2470
      %v2559 = vpop.f32.mrf.mxu0
      %v2560 = vadd.f32 0.0, %v2559
      %v2561 = vpop.f32.mrf.mxu0
      %2562 = vdwg.mxu0
      %v2563 = vadd.f32 %v2467, %v2555
      %v2564 = vadd.f32 %v2468, %v2560
      %v2565 = vld [vmem:[#allocation2 + $0x40] sm:$0xff]
      %v2566 = vld [vmem:[#allocation2 + $0x48] sm:$0xff]
      %s2567 = scalar_lea.vmem %s5, 512
      %v2568 = vld [vmem:[%s2567] sm:$0xff]
      %v2569 = vld [vmem:[%s2567 + $0x8] sm:$0xff]
      %v2570 = vld [vmem:[%s2567 + $0x10] sm:$0xff]
      %v2571 = vld [vmem:[%s2567 + $0x18] sm:$0xff]
      %v2572 = vld [vmem:[%s2567 + $0x20] sm:$0xff]
      %v2573 = vld [vmem:[%s2567 + $0x28] sm:$0xff]
      %v2574 = vld [vmem:[%s2567 + $0x30] sm:$0xff]
      %v2575 = vld [vmem:[%s2567 + $0x38] sm:$0xff]
      %v2576 = vld [vmem:[%s2567 + $0x40] sm:$0xff]
      %v2577 = vld [vmem:[%s2567 + $0x48] sm:$0xff]
      %v2578 = vld [vmem:[%s2567 + $0x50] sm:$0xff]
      %v2579 = vld [vmem:[%s2567 + $0x58] sm:$0xff]
      %v2580 = vld [vmem:[%s2567 + $0x60] sm:$0xff]
      %v2581 = vld [vmem:[%s2567 + $0x68] sm:$0xff]
      %v2582 = vld [vmem:[%s2567 + $0x70] sm:$0xff]
      %v2583 = vld [vmem:[%s2567 + $0x78] sm:$0xff]
      %2584 = vmatprep.subr.mxu0 0.0
      %2585 = vmatpush1.msra.mxu0 %v2583
      %2586 = vmatprep.subr.mxu0 0.0
      %2587 = vmatpush1.msra.mxu0 %v2582
      %2588 = vmatprep.subr.mxu0 0.0
      %2589 = vmatpush1.msra.mxu0 %v2581
      %2590 = vmatprep.subr.mxu0 0.0
      %2591 = vmatpush1.msra.mxu0 %v2580
      %2592 = vmatprep.subr.mxu0 0.0
      %2593 = vmatpush1.msra.mxu0 %v2579
      %2594 = vmatprep.subr.mxu0 0.0
      %2595 = vmatpush1.msra.mxu0 %v2578
      %2596 = vmatprep.subr.mxu0 0.0
      %2597 = vmatpush1.msra.mxu0 %v2577
      %2598 = vmatprep.subr.mxu0 0.0
      %2599 = vmatpush1.msra.mxu0 %v2576
      %2600 = vmatprep.subr.mxu0 0.0
      %2601 = vmatpush1.msra.mxu0 %v2575
      %2602 = vmatprep.subr.mxu0 0.0
      %2603 = vmatpush1.msra.mxu0 %v2574
      %2604 = vmatprep.subr.mxu0 0.0
      %2605 = vmatpush1.msra.mxu0 %v2573
      %2606 = vmatprep.subr.mxu0 0.0
      %2607 = vmatpush1.msra.mxu0 %v2572
      %2608 = vmatprep.subr.mxu0 0.0
      %2609 = vmatpush1.msra.mxu0 %v2571
      %2610 = vmatprep.subr.mxu0 0.0
      %2611 = vmatpush1.msra.mxu0 %v2570
      %2612 = vmatprep.subr.mxu0 0.0
      %2613 = vmatpush1.msra.mxu0 %v2569
      %2614 = vmatprep.subr.mxu0 0.0
      %2615 = vmatpush1.msra.mxu0 %v2568
      %2616 = vmatprep.subr.mxu0 0.0
      %2617 = vmatpush2.msra.mxu0 0.0
      %2618 = vmatprep.subr.mxu0 0.0
      %2619 = vmatpush2.msra.mxu0 0.0
      %2620 = vmatprep.subr.mxu0 0.0
      %2621 = vmatpush2.msra.mxu0 0.0
      %2622 = vmatprep.subr.mxu0 0.0
      %2623 = vmatpush2.msra.mxu0 0.0
      %2624 = vmatprep.subr.mxu0 0.0
      %2625 = vmatpush2.msra.mxu0 0.0
      %2626 = vmatprep.subr.mxu0 0.0
      %2627 = vmatpush2.msra.mxu0 0.0
      %2628 = vmatprep.subr.mxu0 0.0
      %2629 = vmatpush2.msra.mxu0 0.0
      %2630 = vmatprep.subr.mxu0 0.0
      %2631 = vmatpush2.msra.mxu0 0.0
      %2632 = vmatprep.subr.mxu0 0.0
      %2633 = vmatpush2.msra.mxu0 0.0
      %2634 = vmatprep.subr.mxu0 0.0
      %2635 = vmatpush2.msra.mxu0 0.0
      %2636 = vmatprep.subr.mxu0 0.0
      %2637 = vmatpush2.msra.mxu0 0.0
      %2638 = vmatprep.subr.mxu0 0.0
      %2639 = vmatpush2.msra.mxu0 0.0
      %2640 = vmatprep.subr.mxu0 0.0
      %2641 = vmatpush2.msra.mxu0 0.0
      %2642 = vmatprep.subr.mxu0 0.0
      %2643 = vmatpush2.msra.mxu0 0.0
      %2644 = vmatprep.subr.mxu0 0.0
      %2645 = vmatpush2.msra.mxu0 0.0
      %2646 = vmatprep.subr.mxu0 0.0
      %2647 = vmatpush2.msra.mxu0 0.0
      %2648 = vmatprep.mubr.f32.mxu0 0.0
      %2649 = vmatmul.mubr.f32.gmra.mxu0 %v2565
      %v2650 = vpop.f32.mrf.mxu0
      %v2651 = vadd.f32 0.0, %v2650
      %v2652 = vpop.f32.mrf.mxu0
      %2653 = vmatprep.mubr.f32.mxu0 0.0
      %2654 = vmatmul.mubr.f32.gmra.mxu0 %v2566
      %v2655 = vpop.f32.mrf.mxu0
      %v2656 = vadd.f32 0.0, %v2655
      %v2657 = vpop.f32.mrf.mxu0
      %2658 = vdwg.mxu0
      %v2659 = vadd.f32 %v2563, %v2651
      %v2660 = vadd.f32 %v2564, %v2656
      %v2661 = vld [vmem:[#allocation2 + $0x50] sm:$0xff]
      %v2662 = vld [vmem:[#allocation2 + $0x58] sm:$0xff]
      %s2663 = scalar_lea.vmem %s5, 640
      %v2664 = vld [vmem:[%s2663] sm:$0xff]
      %v2665 = vld [vmem:[%s2663 + $0x8] sm:$0xff]
      %v2666 = vld [vmem:[%s2663 + $0x10] sm:$0xff]
      %v2667 = vld [vmem:[%s2663 + $0x18] sm:$0xff]
      %v2668 = vld [vmem:[%s2663 + $0x20] sm:$0xff]
      %v2669 = vld [vmem:[%s2663 + $0x28] sm:$0xff]
      %v2670 = vld [vmem:[%s2663 + $0x30] sm:$0xff]
      %v2671 = vld [vmem:[%s2663 + $0x38] sm:$0xff]
      %v2672 = vld [vmem:[%s2663 + $0x40] sm:$0xff]
      %v2673 = vld [vmem:[%s2663 + $0x48] sm:$0xff]
      %v2674 = vld [vmem:[%s2663 + $0x50] sm:$0xff]
      %v2675 = vld [vmem:[%s2663 + $0x58] sm:$0xff]
      %v2676 = vld [vmem:[%s2663 + $0x60] sm:$0xff]
      %v2677 = vld [vmem:[%s2663 + $0x68] sm:$0xff]
      %v2678 = vld [vmem:[%s2663 + $0x70] sm:$0xff]
      %v2679 = vld [vmem:[%s2663 + $0x78] sm:$0xff]
      %2680 = vmatprep.subr.mxu0 0.0
      %2681 = vmatpush1.msra.mxu0 %v2679
      %2682 = vmatprep.subr.mxu0 0.0
      %2683 = vmatpush1.msra.mxu0 %v2678
      %2684 = vmatprep.subr.mxu0 0.0
      %2685 = vmatpush1.msra.mxu0 %v2677
      %2686 = vmatprep.subr.mxu0 0.0
      %2687 = vmatpush1.msra.mxu0 %v2676
      %2688 = vmatprep.subr.mxu0 0.0
      %2689 = vmatpush1.msra.mxu0 %v2675
      %2690 = vmatprep.subr.mxu0 0.0
      %2691 = vmatpush1.msra.mxu0 %v2674
      %2692 = vmatprep.subr.mxu0 0.0
      %2693 = vmatpush1.msra.mxu0 %v2673
      %2694 = vmatprep.subr.mxu0 0.0
      %2695 = vmatpush1.msra.mxu0 %v2672
      %2696 = vmatprep.subr.mxu0 0.0
      %2697 = vmatpush1.msra.mxu0 %v2671
      %2698 = vmatprep.subr.mxu0 0.0
      %2699 = vmatpush1.msra.mxu0 %v2670
      %2700 = vmatprep.subr.mxu0 0.0
      %2701 = vmatpush1.msra.mxu0 %v2669
      %2702 = vmatprep.subr.mxu0 0.0
      %2703 = vmatpush1.msra.mxu0 %v2668
      %2704 = vmatprep.subr.mxu0 0.0
      %2705 = vmatpush1.msra.mxu0 %v2667
      %2706 = vmatprep.subr.mxu0 0.0
      %2707 = vmatpush1.msra.mxu0 %v2666
      %2708 = vmatprep.subr.mxu0 0.0
      %2709 = vmatpush1.msra.mxu0 %v2665
      %2710 = vmatprep.subr.mxu0 0.0
      %2711 = vmatpush1.msra.mxu0 %v2664
      %2712 = vmatprep.subr.mxu0 0.0
      %2713 = vmatpush2.msra.mxu0 0.0
      %2714 = vmatprep.subr.mxu0 0.0
      %2715 = vmatpush2.msra.mxu0 0.0
      %2716 = vmatprep.subr.mxu0 0.0
      %2717 = vmatpush2.msra.mxu0 0.0
      %2718 = vmatprep.subr.mxu0 0.0
      %2719 = vmatpush2.msra.mxu0 0.0
      %2720 = vmatprep.subr.mxu0 0.0
      %2721 = vmatpush2.msra.mxu0 0.0
      %2722 = vmatprep.subr.mxu0 0.0
      %2723 = vmatpush2.msra.mxu0 0.0
      %2724 = vmatprep.subr.mxu0 0.0
      %2725 = vmatpush2.msra.mxu0 0.0
      %2726 = vmatprep.subr.mxu0 0.0
      %2727 = vmatpush2.msra.mxu0 0.0
      %2728 = vmatprep.subr.mxu0 0.0
      %2729 = vmatpush2.msra.mxu0 0.0
      %2730 = vmatprep.subr.mxu0 0.0
      %2731 = vmatpush2.msra.mxu0 0.0
      %2732 = vmatprep.subr.mxu0 0.0
      %2733 = vmatpush2.msra.mxu0 0.0
      %2734 = vmatprep.subr.mxu0 0.0
      %2735 = vmatpush2.msra.mxu0 0.0
      %2736 = vmatprep.subr.mxu0 0.0
      %2737 = vmatpush2.msra.mxu0 0.0
      %2738 = vmatprep.subr.mxu0 0.0
      %2739 = vmatpush2.msra.mxu0 0.0
      %2740 = vmatprep.subr.mxu0 0.0
      %2741 = vmatpush2.msra.mxu0 0.0
      %2742 = vmatprep.subr.mxu0 0.0
      %2743 = vmatpush2.msra.mxu0 0.0
      %2744 = vmatprep.mubr.f32.mxu0 0.0
      %2745 = vmatmul.mubr.f32.gmra.mxu0 %v2661
      %v2746 = vpop.f32.mrf.mxu0
      %v2747 = vadd.f32 0.0, %v2746
      %v2748 = vpop.f32.mrf.mxu0
      %2749 = vmatprep.mubr.f32.mxu0 0.0
      %2750 = vmatmul.mubr.f32.gmra.mxu0 %v2662
      %v2751 = vpop.f32.mrf.mxu0
      %v2752 = vadd.f32 0.0, %v2751
      %v2753 = vpop.f32.mrf.mxu0
      %2754 = vdwg.mxu0
      %v2755 = vadd.f32 %v2659, %v2747
      %v2756 = vadd.f32 %v2660, %v2752
      %v2757 = vld [vmem:[#allocation2 + $0x60] sm:$0xff]
      %v2758 = vld [vmem:[#allocation2 + $0x68] sm:$0xff]
      %s2759 = scalar_lea.vmem %s5, 768
      %v2760 = vld [vmem:[%s2759] sm:$0xff]
      %v2761 = vld [vmem:[%s2759 + $0x8] sm:$0xff]
      %v2762 = vld [vmem:[%s2759 + $0x10] sm:$0xff]
      %v2763 = vld [vmem:[%s2759 + $0x18] sm:$0xff]
      %v2764 = vld [vmem:[%s2759 + $0x20] sm:$0xff]
      %v2765 = vld [vmem:[%s2759 + $0x28] sm:$0xff]
      %v2766 = vld [vmem:[%s2759 + $0x30] sm:$0xff]
      %v2767 = vld [vmem:[%s2759 + $0x38] sm:$0xff]
      %v2768 = vld [vmem:[%s2759 + $0x40] sm:$0xff]
      %v2769 = vld [vmem:[%s2759 + $0x48] sm:$0xff]
      %v2770 = vld [vmem:[%s2759 + $0x50] sm:$0xff]
      %v2771 = vld [vmem:[%s2759 + $0x58] sm:$0xff]
      %v2772 = vld [vmem:[%s2759 + $0x60] sm:$0xff]
      %v2773 = vld [vmem:[%s2759 + $0x68] sm:$0xff]
      %v2774 = vld [vmem:[%s2759 + $0x70] sm:$0xff]
      %v2775 = vld [vmem:[%s2759 + $0x78] sm:$0xff]
      %2776 = vmatprep.subr.mxu0 0.0
      %2777 = vmatpush1.msra.mxu0 %v2775
      %2778 = vmatprep.subr.mxu0 0.0
      %2779 = vmatpush1.msra.mxu0 %v2774
      %2780 = vmatprep.subr.mxu0 0.0
      %2781 = vmatpush1.msra.mxu0 %v2773
      %2782 = vmatprep.subr.mxu0 0.0
      %2783 = vmatpush1.msra.mxu0 %v2772
      %2784 = vmatprep.subr.mxu0 0.0
      %2785 = vmatpush1.msra.mxu0 %v2771
      %2786 = vmatprep.subr.mxu0 0.0
      %2787 = vmatpush1.msra.mxu0 %v2770
      %2788 = vmatprep.subr.mxu0 0.0
      %2789 = vmatpush1.msra.mxu0 %v2769
      %2790 = vmatprep.subr.mxu0 0.0
      %2791 = vmatpush1.msra.mxu0 %v2768
      %2792 = vmatprep.subr.mxu0 0.0
      %2793 = vmatpush1.msra.mxu0 %v2767
      %2794 = vmatprep.subr.mxu0 0.0
      %2795 = vmatpush1.msra.mxu0 %v2766
      %2796 = vmatprep.subr.mxu0 0.0
      %2797 = vmatpush1.msra.mxu0 %v2765
      %2798 = vmatprep.subr.mxu0 0.0
      %2799 = vmatpush1.msra.mxu0 %v2764
      %2800 = vmatprep.subr.mxu0 0.0
      %2801 = vmatpush1.msra.mxu0 %v2763
      %2802 = vmatprep.subr.mxu0 0.0
      %2803 = vmatpush1.msra.mxu0 %v2762
      %2804 = vmatprep.subr.mxu0 0.0
      %2805 = vmatpush1.msra.mxu0 %v2761
      %2806 = vmatprep.subr.mxu0 0.0
      %2807 = vmatpush1.msra.mxu0 %v2760
      %2808 = vmatprep.subr.mxu0 0.0
      %2809 = vmatpush2.msra.mxu0 0.0
      %2810 = vmatprep.subr.mxu0 0.0
      %2811 = vmatpush2.msra.mxu0 0.0
      %2812 = vmatprep.subr.mxu0 0.0
      %2813 = vmatpush2.msra.mxu0 0.0
      %2814 = vmatprep.subr.mxu0 0.0
      %2815 = vmatpush2.msra.mxu0 0.0
      %2816 = vmatprep.subr.mxu0 0.0
      %2817 = vmatpush2.msra.mxu0 0.0
      %2818 = vmatprep.subr.mxu0 0.0
      %2819 = vmatpush2.msra.mxu0 0.0
      %2820 = vmatprep.subr.mxu0 0.0
      %2821 = vmatpush2.msra.mxu0 0.0
      %2822 = vmatprep.subr.mxu0 0.0
      %2823 = vmatpush2.msra.mxu0 0.0
      %2824 = vmatprep.subr.mxu0 0.0
      %2825 = vmatpush2.msra.mxu0 0.0
      %2826 = vmatprep.subr.mxu0 0.0
      %2827 = vmatpush2.msra.mxu0 0.0
      %2828 = vmatprep.subr.mxu0 0.0
      %2829 = vmatpush2.msra.mxu0 0.0
      %2830 = vmatprep.subr.mxu0 0.0
      %2831 = vmatpush2.msra.mxu0 0.0
      %2832 = vmatprep.subr.mxu0 0.0
      %2833 = vmatpush2.msra.mxu0 0.0
      %2834 = vmatprep.subr.mxu0 0.0
      %2835 = vmatpush2.msra.mxu0 0.0
      %2836 = vmatprep.subr.mxu0 0.0
      %2837 = vmatpush2.msra.mxu0 0.0
      %2838 = vmatprep.subr.mxu0 0.0
      %2839 = vmatpush2.msra.mxu0 0.0
      %2840 = vmatprep.mubr.f32.mxu0 0.0
      %2841 = vmatmul.mubr.f32.gmra.mxu0 %v2757
      %v2842 = vpop.f32.mrf.mxu0
      %v2843 = vadd.f32 0.0, %v2842
      %v2844 = vpop.f32.mrf.mxu0
      %2845 = vmatprep.mubr.f32.mxu0 0.0
      %2846 = vmatmul.mubr.f32.gmra.mxu0 %v2758
      %v2847 = vpop.f32.mrf.mxu0
      %v2848 = vadd.f32 0.0, %v2847
      %v2849 = vpop.f32.mrf.mxu0
      %2850 = vdwg.mxu0
      %v2851 = vadd.f32 %v2755, %v2843
      %v2852 = vadd.f32 %v2756, %v2848
      %v2853 = vld [vmem:[#allocation2 + $0x70] sm:$0xff]
      %v2854 = vld [vmem:[#allocation2 + $0x78] sm:$0xff]
      %s2855 = scalar_lea.vmem %s5, 896
      %v2856 = vld [vmem:[%s2855] sm:$0xff]
      %v2857 = vld [vmem:[%s2855 + $0x8] sm:$0xff]
      %v2858 = vld [vmem:[%s2855 + $0x10] sm:$0xff]
      %v2859 = vld [vmem:[%s2855 + $0x18] sm:$0xff]
      %v2860 = vld [vmem:[%s2855 + $0x20] sm:$0xff]
      %v2861 = vld [vmem:[%s2855 + $0x28] sm:$0xff]
      %v2862 = vld [vmem:[%s2855 + $0x30] sm:$0xff]
      %v2863 = vld [vmem:[%s2855 + $0x38] sm:$0xff]
      %v2864 = vld [vmem:[%s2855 + $0x40] sm:$0xff]
      %v2865 = vld [vmem:[%s2855 + $0x48] sm:$0xff]
      %v2866 = vld [vmem:[%s2855 + $0x50] sm:$0xff]
      %v2867 = vld [vmem:[%s2855 + $0x58] sm:$0xff]
      %v2868 = vld [vmem:[%s2855 + $0x60] sm:$0xff]
      %v2869 = vld [vmem:[%s2855 + $0x68] sm:$0xff]
      %v2870 = vld [vmem:[%s2855 + $0x70] sm:$0xff]
      %v2871 = vld [vmem:[%s2855 + $0x78] sm:$0xff]
      %2872 = vmatprep.subr.mxu0 0.0
      %2873 = vmatpush1.msra.mxu0 %v2871
      %2874 = vmatprep.subr.mxu0 0.0
      %2875 = vmatpush1.msra.mxu0 %v2870
      %2876 = vmatprep.subr.mxu0 0.0
      %2877 = vmatpush1.msra.mxu0 %v2869
      %2878 = vmatprep.subr.mxu0 0.0
      %2879 = vmatpush1.msra.mxu0 %v2868
      %2880 = vmatprep.subr.mxu0 0.0
      %2881 = vmatpush1.msra.mxu0 %v2867
      %2882 = vmatprep.subr.mxu0 0.0
      %2883 = vmatpush1.msra.mxu0 %v2866
      %2884 = vmatprep.subr.mxu0 0.0
      %2885 = vmatpush1.msra.mxu0 %v2865
      %2886 = vmatprep.subr.mxu0 0.0
      %2887 = vmatpush1.msra.mxu0 %v2864
      %2888 = vmatprep.subr.mxu0 0.0
      %2889 = vmatpush1.msra.mxu0 %v2863
      %2890 = vmatprep.subr.mxu0 0.0
      %2891 = vmatpush1.msra.mxu0 %v2862
      %2892 = vmatprep.subr.mxu0 0.0
      %2893 = vmatpush1.msra.mxu0 %v2861
      %2894 = vmatprep.subr.mxu0 0.0
      %2895 = vmatpush1.msra.mxu0 %v2860
      %2896 = vmatprep.subr.mxu0 0.0
      %2897 = vmatpush1.msra.mxu0 %v2859
      %2898 = vmatprep.subr.mxu0 0.0
      %2899 = vmatpush1.msra.mxu0 %v2858
      %2900 = vmatprep.subr.mxu0 0.0
      %2901 = vmatpush1.msra.mxu0 %v2857
      %2902 = vmatprep.subr.mxu0 0.0
      %2903 = vmatpush1.msra.mxu0 %v2856
      %2904 = vmatprep.subr.mxu0 0.0
      %2905 = vmatpush2.msra.mxu0 0.0
      %2906 = vmatprep.subr.mxu0 0.0
      %2907 = vmatpush2.msra.mxu0 0.0
      %2908 = vmatprep.subr.mxu0 0.0
      %2909 = vmatpush2.msra.mxu0 0.0
      %2910 = vmatprep.subr.mxu0 0.0
      %2911 = vmatpush2.msra.mxu0 0.0
      %2912 = vmatprep.subr.mxu0 0.0
      %2913 = vmatpush2.msra.mxu0 0.0
      %2914 = vmatprep.subr.mxu0 0.0
      %2915 = vmatpush2.msra.mxu0 0.0
      %2916 = vmatprep.subr.mxu0 0.0
      %2917 = vmatpush2.msra.mxu0 0.0
      %2918 = vmatprep.subr.mxu0 0.0
      %2919 = vmatpush2.msra.mxu0 0.0
      %2920 = vmatprep.subr.mxu0 0.0
      %2921 = vmatpush2.msra.mxu0 0.0
      %2922 = vmatprep.subr.mxu0 0.0
      %2923 = vmatpush2.msra.mxu0 0.0
      %2924 = vmatprep.subr.mxu0 0.0
      %2925 = vmatpush2.msra.mxu0 0.0
      %2926 = vmatprep.subr.mxu0 0.0
      %2927 = vmatpush2.msra.mxu0 0.0
      %2928 = vmatprep.subr.mxu0 0.0
      %2929 = vmatpush2.msra.mxu0 0.0
      %2930 = vmatprep.subr.mxu0 0.0
      %2931 = vmatpush2.msra.mxu0 0.0
      %2932 = vmatprep.subr.mxu0 0.0
      %2933 = vmatpush2.msra.mxu0 0.0
      %2934 = vmatprep.subr.mxu0 0.0
      %2935 = vmatpush2.msra.mxu0 0.0
      %2936 = vmatprep.mubr.f32.mxu0 0.0
      %2937 = vmatmul.mubr.f32.gmra.mxu0 %v2853
      %v2938 = vpop.f32.mrf.mxu0
      %v2939 = vadd.f32 0.0, %v2938
      %v2940 = vpop.f32.mrf.mxu0
      %2941 = vmatprep.mubr.f32.mxu0 0.0
      %2942 = vmatmul.mubr.f32.gmra.mxu0 %v2854
      %v2943 = vpop.f32.mrf.mxu0
      %v2944 = vadd.f32 0.0, %v2943
      %v2945 = vpop.f32.mrf.mxu0
      %2946 = vdwg.mxu0
      %v2947 = vadd.f32 %v2851, %v2939
      %v2948 = vadd.f32 %v2852, %v2944
      %v2949 = vld [vmem:[#allocation2 + $0x80] sm:$0xff]
      %v2950 = vld [vmem:[#allocation2 + $0x88] sm:$0xff]
      %s2951 = scalar_lea.vmem %s5, 1024
      %v2952 = vld [vmem:[%s2951] sm:$0xff]
      %v2953 = vld [vmem:[%s2951 + $0x8] sm:$0xff]
      %v2954 = vld [vmem:[%s2951 + $0x10] sm:$0xff]
      %v2955 = vld [vmem:[%s2951 + $0x18] sm:$0xff]
      %v2956 = vld [vmem:[%s2951 + $0x20] sm:$0xff]
      %v2957 = vld [vmem:[%s2951 + $0x28] sm:$0xff]
      %v2958 = vld [vmem:[%s2951 + $0x30] sm:$0xff]
      %v2959 = vld [vmem:[%s2951 + $0x38] sm:$0xff]
      %v2960 = vld [vmem:[%s2951 + $0x40] sm:$0xff]
      %v2961 = vld [vmem:[%s2951 + $0x48] sm:$0xff]
      %v2962 = vld [vmem:[%s2951 + $0x50] sm:$0xff]
      %v2963 = vld [vmem:[%s2951 + $0x58] sm:$0xff]
      %v2964 = vld [vmem:[%s2951 + $0x60] sm:$0xff]
      %v2965 = vld [vmem:[%s2951 + $0x68] sm:$0xff]
      %v2966 = vld [vmem:[%s2951 + $0x70] sm:$0xff]
      %v2967 = vld [vmem:[%s2951 + $0x78] sm:$0xff]
      %2968 = vmatprep.subr.mxu0 0.0
      %2969 = vmatpush1.msra.mxu0 %v2967
      %2970 = vmatprep.subr.mxu0 0.0
      %2971 = vmatpush1.msra.mxu0 %v2966
      %2972 = vmatprep.subr.mxu0 0.0
      %2973 = vmatpush1.msra.mxu0 %v2965
      %2974 = vmatprep.subr.mxu0 0.0
      %2975 = vmatpush1.msra.mxu0 %v2964
      %2976 = vmatprep.subr.mxu0 0.0
      %2977 = vmatpush1.msra.mxu0 %v2963
      %2978 = vmatprep.subr.mxu0 0.0
      %2979 = vmatpush1.msra.mxu0 %v2962
      %2980 = vmatprep.subr.mxu0 0.0
      %2981 = vmatpush1.msra.mxu0 %v2961
      %2982 = vmatprep.subr.mxu0 0.0
      %2983 = vmatpush1.msra.mxu0 %v2960
      %2984 = vmatprep.subr.mxu0 0.0
      %2985 = vmatpush1.msra.mxu0 %v2959
      %2986 = vmatprep.subr.mxu0 0.0
      %2987 = vmatpush1.msra.mxu0 %v2958
      %2988 = vmatprep.subr.mxu0 0.0
      %2989 = vmatpush1.msra.mxu0 %v2957
      %2990 = vmatprep.subr.mxu0 0.0
      %2991 = vmatpush1.msra.mxu0 %v2956
      %2992 = vmatprep.subr.mxu0 0.0
      %2993 = vmatpush1.msra.mxu0 %v2955
      %2994 = vmatprep.subr.mxu0 0.0
      %2995 = vmatpush1.msra.mxu0 %v2954
      %2996 = vmatprep.subr.mxu0 0.0
      %2997 = vmatpush1.msra.mxu0 %v2953
      %2998 = vmatprep.subr.mxu0 0.0
      %2999 = vmatpush1.msra.mxu0 %v2952
      %3000 = vmatprep.subr.mxu0 0.0
      %3001 = vmatpush2.msra.mxu0 0.0
      %3002 = vmatprep.subr.mxu0 0.0
      %3003 = vmatpush2.msra.mxu0 0.0
      %3004 = vmatprep.subr.mxu0 0.0
      %3005 = vmatpush2.msra.mxu0 0.0
      %3006 = vmatprep.subr.mxu0 0.0
      %3007 = vmatpush2.msra.mxu0 0.0
      %3008 = vmatprep.subr.mxu0 0.0
      %3009 = vmatpush2.msra.mxu0 0.0
      %3010 = vmatprep.subr.mxu0 0.0
      %3011 = vmatpush2.msra.mxu0 0.0
      %3012 = vmatprep.subr.mxu0 0.0
      %3013 = vmatpush2.msra.mxu0 0.0
      %3014 = vmatprep.subr.mxu0 0.0
      %3015 = vmatpush2.msra.mxu0 0.0
      %3016 = vmatprep.subr.mxu0 0.0
      %3017 = vmatpush2.msra.mxu0 0.0
      %3018 = vmatprep.subr.mxu0 0.0
      %3019 = vmatpush2.msra.mxu0 0.0
      %3020 = vmatprep.subr.mxu0 0.0
      %3021 = vmatpush2.msra.mxu0 0.0
      %3022 = vmatprep.subr.mxu0 0.0
      %3023 = vmatpush2.msra.mxu0 0.0
      %3024 = vmatprep.subr.mxu0 0.0
      %3025 = vmatpush2.msra.mxu0 0.0
      %3026 = vmatprep.subr.mxu0 0.0
      %3027 = vmatpush2.msra.mxu0 0.0
      %3028 = vmatprep.subr.mxu0 0.0
      %3029 = vmatpush2.msra.mxu0 0.0
      %3030 = vmatprep.subr.mxu0 0.0
      %3031 = vmatpush2.msra.mxu0 0.0
      %3032 = vmatprep.mubr.f32.mxu0 0.0
      %3033 = vmatmul.mubr.f32.gmra.mxu0 %v2949
      %v3034 = vpop.f32.mrf.mxu0
      %v3035 = vadd.f32 0.0, %v3034
      %v3036 = vpop.f32.mrf.mxu0
      %3037 = vmatprep.mubr.f32.mxu0 0.0
      %3038 = vmatmul.mubr.f32.gmra.mxu0 %v2950
      %v3039 = vpop.f32.mrf.mxu0
      %v3040 = vadd.f32 0.0, %v3039
      %v3041 = vpop.f32.mrf.mxu0
      %3042 = vdwg.mxu0
      %v3043 = vadd.f32 %v2947, %v3035
      %v3044 = vadd.f32 %v2948, %v3040
      %v3045 = vld [vmem:[%s6] sm:$0x1]
      %v3047 = vlaneseq
      %v3048 = vshrl.u32 %v3047, 7
      %v3049 = vsub.s32 0, %v3048
      %v3050 = vrot.slane %v3045, %v3049
      %v3052 = vadd.f32 %v3043, %v3050
      %v3053 = vadd.f32 %v3044, %v3050
      %v3054 = vmax.f32 %v3052, 0.0
      %v3055 = vmax.f32 %v3053, 0.0
      %vm3056 = vcmask 523264
      %3057 = vst.msk [vmem:[%s283] sm:$0xff] %vm3056, %v3054
      %3058 = vst.msk [vmem:[%s283 + $0x8] sm:$0xff] %vm3056, %v3055
      %s3059 = smul.u32 2, %s18
      %p3060 = scmp.lt.s32.totalorder %s3059, 3
      %s3061 = scalar_select %p3060, %s3059, 3
      %s3062 = smul.addr %s3061, 8
      %s3063 = scalar_lea.vmem %s7, %s3062
      // Predicated region
      $region49: #{cnn_preprocess_forward.1} parent=47 // pred_check
        %p3064 = pneg %p188
      $region50: #{cnn_preprocess_forward.1} parent=47 // pred_check_branch
        %3066 = sbr.rel (%p3064) target = $region52
      $region51: #{cnn_preprocess_forward.1} parent=47 // pred_region
        %s3067 = smul.u32 2, %s18
      $region52: #{cnn_preprocess_forward.1} parent=47 // pred_fallthru
        _
    $region48: #{cnn_preprocess_forward.1} parent=5 // pred_fallthru
      _
    %p3068 = scmp.le.s32.totalorder 2, %s13
    // Predicated region
    $region53: #{cnn_preprocess_forward.1} parent=5 // pred_check
      %p3069 = pneg %p3068
    $region54: #{cnn_preprocess_forward.1} parent=5 // pred_check_branch
      %3071 = sbr.rel (%p3069) target = $region56
    $region55: #{cnn_preprocess_forward.1} parent=5 // pred_region
      %s3072 = ssub.s32 %s13, 2
      // Predicated region
      $region57: #{cnn_preprocess_forward.1} parent=55 // pred_check
        %p3073 = pneg %p194
      $region58: #{cnn_preprocess_forward.1} parent=55 // pred_check_branch
        %3075 = sbr.rel (%p3073) target = $region60
      $region59: #{cnn_preprocess_forward.1} parent=55 // pred_region
        %s3076 = smul.u32 2, %s19
        %p3077 = scmp.lt.s32.totalorder %s3076, 3
        %s3078 = scalar_select %p3077, %s3076, 3
        %s3079 = smul.addr %s3078, 8
        %s3080 = scalar_lea.vmem %s7, %s3079
      $region60: #{cnn_preprocess_forward.1} parent=55 // pred_fallthru
        _
    $region56: #{cnn_preprocess_forward.1} parent=5 // pred_fallthru
      _
  $region6: #{cnn_preprocess_forward.1} parent=0 // loop_footer
    %s17 = sadd.s32 1, %s13
  $region7: #{cnn_preprocess_forward.1} parent=0 // loop_footer_branch
    %12 = sbr.rel target = $region3
  $region8: #{cnn_preprocess_forward.1} parent=0 // loop_exit
    _

</llo_original>
